<compile_context>
chip_gen: v5e
topology: v5e:2x2
jax: 0.10.0
libtpu: 0.0.40
codegen_flags: <defaults>
</compile_context>

<pallas_src>
import jax
import jax.numpy as jnp
from jax.experimental import pallas as pl


# ----------------------------- Pallas kernels ------------------------------ #

def conv1_pool_kernel(p_ref, w_ref, shift_ref, o_ref):
    """Fused conv1(1->16,k3,s1,p1) + folded-BN + ReLU + 2x2 max-pool.

    p_ref:     [4, M, 9]  im2col patches, one slab per pool tap (dh,dw)
    w_ref:     [9, 16]    conv1 weight with BN scale folded in (f32)
    shift_ref: [1, 16]    folded BN shift (includes conv bias)
    o_ref:     [M, 16]    pooled activations, rows ordered (b, oh, ow)
    """
    def tap(t):
        z = jnp.dot(p_ref[t], w_ref[...], preferred_element_type=jnp.float32)
        return jnp.maximum(z + shift_ref[...], 0.0)

    # MaxPool(ReLU(BN(conv))) == elementwise max of the 4 per-tap ReLU outputs.
    o_ref[...] = jnp.maximum(jnp.maximum(tap(0), tap(1)),
                             jnp.maximum(tap(2), tap(3)))


def conv_bn_relu_kernel(p_ref, w_ref, shift_ref, o_ref):
    """out = relu(patches @ W_scaled + shift); BN scale folded into W (bf16)."""
    acc = jnp.dot(p_ref[...], w_ref[...], preferred_element_type=jnp.float32)
    o_ref[...] = jnp.maximum(acc + shift_ref[...], 0.0)


def conv3_mlp_kernel(p_ref, w3_ref, shift3_ref, w1b_ref, b1_ref, w2_ref, b2_ref,
                     o_ref):
    """Fused conv3(32->64,k3,s2,p1) + BN + ReLU + flatten + fc1 + fc2.

    p_ref:      [S, B, 288]  conv3 im2col patches, one slab per output position
    w3_ref:     [288, 64]    conv3 weight (BN scale folded), bf16
    shift3_ref: [1, 64]      folded BN shift, f32
    w1b_ref:    [S, 64, 128] fc1 weight re-blocked per spatial position,
                             hidden padded 100->128, bf16
    b1_ref:     [1, 128]     fc1 bias (zero padded), f32
    w2_ref:     [128, 10]    fc2 weight (padded rows are zero), f32
    b2_ref:     [1, 10]      fc2 bias, f32
    o_ref:      [B, 10]      logits
    """
    S = p_ref.shape[0]
    B = o_ref.shape[0]
    h = jnp.zeros((B, 128), jnp.float32) + b1_ref[...]
    for s in range(S):                                   # static unroll (S=16)
        z = jnp.dot(p_ref[s], w3_ref[...], preferred_element_type=jnp.float32)
        z = jnp.maximum(z + shift3_ref[...], 0.0)        # [B, 64] f32
        h = h + jnp.dot(z.astype(w1b_ref.dtype), w1b_ref[s],
                        preferred_element_type=jnp.float32)
    o_ref[...] = (jnp.dot(h, w2_ref[...], preferred_element_type=jnp.float32)
                  + b2_ref[...])


# ------------------------------ Pallas callers ----------------------------- #
# All operands are tiny (<< VMEM), so each call is a single whole-array block.

def conv1_block(x_nhw, w1f, shift1):
    """x_nhw: [B,28,28] f32 -> pooled conv1 activations [B*14*14, 16]."""
    b = x_nhw.shape[0]
    xp = jnp.pad(x_nhw, ((0, 0), (1, 1), (1, 1)))            # [B,30,30]
    taps = []
    for dh in (0, 1):
        for dw in (0, 1):
            cols = [xp[:, dh + kh:dh + kh + 27:2, dw + kw:dw + kw + 27:2]
                    for kh in range(3) for kw in range(3)]
            taps.append(jnp.stack(cols, axis=-1).reshape(b * 196, 9))
    patches = jnp.stack(taps, axis=0)                         # [4, B*196, 9]
    return pl.pallas_call(
        conv1_pool_kernel,
        out_shape=jax.ShapeDtypeStruct((b * 196, 16), jnp.float32),
    )(patches, w1f, shift1)


def im2col_s2p1(y_nhwc):
    """k3, stride 2, pad 1 im2col. y: [B,H,W,C] -> ([B,OH,OW,9C], OH, OW)."""
    b, h, w, c = y_nhwc.shape
    yp = jnp.pad(y_nhwc, ((0, 0), (1, 1), (1, 1), (0, 0)))
    oh, ow = (h - 1) // 2 + 1, (w - 1) // 2 + 1
    cols = [yp[:, kh:kh + 2 * (oh - 1) + 1:2, kw:kw + 2 * (ow - 1) + 1:2, :]
            for kh in range(3) for kw in range(3)]
    return jnp.concatenate(cols, axis=-1), oh, ow


def conv2_block(y1, w2f, shift2, b):
    y = y1.reshape(b, 14, 14, 16)
    patches, oh, ow = im2col_s2p1(y)                          # [B,7,7,144]
    patches = patches.reshape(b * oh * ow, 144).astype(jnp.bfloat16)
    return pl.pallas_call(
        conv_bn_relu_kernel,
        out_shape=jax.ShapeDtypeStruct((b * oh * ow, 32), jnp.float32),
    )(patches, w2f, shift2)


def conv3_mlp_block(y2, w3f, shift3, w1b, b1p, w2p, b2, b):
    y = y2.reshape(b, 7, 7, 32)
    patches, oh, ow = im2col_s2p1(y)                          # [B,4,4,288]
    # Row order (spatial, batch) so fc1 accumulates per conv3 output position
    # (avoids any runtime flatten/transpose of the conv3 activation).
    patches = jnp.transpose(patches, (1, 2, 0, 3)).reshape(oh * ow, b, 288)
    patches = patches.astype(jnp.bfloat16)
    return pl.pallas_call(
        conv3_mlp_kernel,
        out_shape=jax.ShapeDtypeStruct((b, 10), jnp.float32),
    )(patches, w3f, shift3, w1b, b1p, w2p, b2)


# ------------------------------ Parameters --------------------------------- #

def fold_bn(conv_bias, gamma, beta, mean, var, eps=1e-5):
    """Fold eval-mode BatchNorm (+ conv bias) into per-channel scale/shift."""
    scale = gamma / jnp.sqrt(var + eps)
    shift = beta + (conv_bias - mean) * scale
    return scale, shift


def make_params(key):
    ks = jax.random.split(key, 16)
    p = {}

    def conv_w(k, kh, kw, cin, cout):
        # layout [KH,KW,Cin,Cout] -> [KH*KW*Cin, Cout], matching im2col order.
        return (0.05 * jax.random.normal(k, (kh, kw, cin, cout), jnp.float32)
                ).reshape(kh * kw * cin, cout)

    def bn(k, c):
        k1, k2, k3, k4 = jax.random.split(k, 4)
        gamma = 1.0 + 0.1 * jax.random.normal(k1, (c,), jnp.float32)
        beta = 0.1 * jax.random.normal(k2, (c,), jnp.float32)
        mean = 0.1 * jax.random.normal(k3, (c,), jnp.float32)
        var = jax.random.uniform(k4, (c,), jnp.float32, 0.5, 1.5)
        return gamma, beta, mean, var

    p["w1"] = conv_w(ks[0], 3, 3, 1, 16)
    p["b1"] = 0.01 * jax.random.normal(ks[1], (16,), jnp.float32)
    p["bn1"] = bn(ks[2], 16)
    p["w2"] = conv_w(ks[3], 3, 3, 16, 32)
    p["b2"] = 0.01 * jax.random.normal(ks[4], (32,), jnp.float32)
    p["bn2"] = bn(ks[5], 32)
    p["w3"] = conv_w(ks[6], 3, 3, 32, 64)
    p["b3"] = 0.01 * jax.random.normal(ks[7], (64,), jnp.float32)
    p["bn3"] = bn(ks[8], 64)
    p["fc1_w"] = 0.03 * jax.random.normal(ks[9], (4 * 4 * 64, 100), jnp.float32)
    p["fc1_b"] = 0.01 * jax.random.normal(ks[10], (100,), jnp.float32)
    p["fc2_w"] = 0.1 * jax.random.normal(ks[11], (100, 10), jnp.float32)
    p["fc2_b"] = 0.01 * jax.random.normal(ks[12], (10,), jnp.float32)
    return p


def prepare_params(p):
    """Fold BN into conv weights, re-block/pad FC weights, cast MXU operands."""
    s1, t1 = fold_bn(p["b1"], *p["bn1"])
    s2, t2 = fold_bn(p["b2"], *p["bn2"])
    s3, t3 = fold_bn(p["b3"], *p["bn3"])
    q = {}
    q["w1f"] = (p["w1"] * s1[None, :]).astype(jnp.float32)        # [9,16]
    q["shift1"] = t1.reshape(1, 16)
    q["w2f"] = (p["w2"] * s2[None, :]).astype(jnp.bfloat16)       # [144,32]
    q["shift2"] = t2.reshape(1, 32)
    q["w3f"] = (p["w3"] * s3[None, :]).astype(jnp.bfloat16)       # [288,64]
    q["shift3"] = t3.reshape(1, 64)
    # torch flatten index f = c*16 + s (channel-major).  Re-block fc1 weight as
    # [s, c, out] so the kernel sums over conv3 output positions; pad 100->128.
    w1b = p["fc1_w"].reshape(64, 16, 100).transpose(1, 0, 2)       # [16,64,100]
    q["w1b"] = jnp.pad(w1b, ((0, 0), (0, 0), (0, 28))).astype(jnp.bfloat16)
    q["b1p"] = jnp.pad(p["fc1_b"], (0, 28)).reshape(1, 128)
    q["w2p"] = jnp.pad(p["fc2_w"], ((0, 28), (0, 0)))              # [128,10]
    q["b2"] = p["fc2_b"].reshape(1, 10)
    return q


# -------------------------------- Forward ----------------------------------- #

@jax.jit
def my_cnn_forward(x_nchw, prepared):
    """Forward pass equivalent to my_cnn.forward (eval mode). x: [B,1,28,28]."""
    b = x_nchw.shape[0]
    # NCHW with C==1 -> [B,H,W] (pure reshape, no data movement).
    x = x_nchw.reshape(b, 28, 28).astype(jnp.float32)

    y1 = conv1_block(x, prepared["w1f"], prepared["shift1"])        # [B*196,16]
    y2 = conv2_block(y1, prepared["w2f"], prepared["shift2"], b)    # [B*49, 32]
    out = conv3_mlp_block(y2, prepared["w3f"], prepared["shift3"],
                          prepared["w1b"], prepared["b1p"],
                          prepared["w2p"], prepared["b2"], b)       # [B, 10]
    return out


if __name__ == "__main__":
    key = jax.random.PRNGKey(0)
    k_x, k_p = jax.random.split(key)
    # mlp1 (4*4*64 inputs) pins the spatial size to 28x28 (MNIST); batch=2.
    x = jax.random.normal(k_x, (2, 1, 28, 28), jnp.float32)
    params = make_params(k_p)
    prepared = prepare_params(params)

    logits = my_cnn_forward(x, prepared)
    jax.block_until_ready(logits)
    assert logits.shape == (2, 10) and logits.dtype == jnp.float32
    print("KERNEL_OK")
</pallas_src>

<mosaic_0001>
module attributes {stable_mosaic.version = 11 : i64} {
  func.func @conv1_pool_kernel(%arg0: memref<4x392x9xf32, #tpu.memory_space<vmem>>, %arg1: memref<9x16xf32, #tpu.memory_space<vmem>>, %arg2: memref<1x16xf32, #tpu.memory_space<vmem>>, %arg3: memref<392x16xf32, #tpu.memory_space<vmem>>) attributes {dimension_semantics = [], scalar_prefetch = 0 : i64, scratch_operands = 0 : i64, tpu.core_type = #tpu.core_type<tc>} {
    %c0 = arith.constant 0 : index
    %c0_0 = arith.constant 0 : index
    %c0_1 = arith.constant 0 : index
    %0 = vector.load %arg0[%c0, %c0_0, %c0_1] : memref<4x392x9xf32, #tpu.memory_space<vmem>>, vector<1x392x9xf32>
    %1 = vector.shape_cast %0 : vector<1x392x9xf32> to vector<392x9xf32>
    %c0_2 = arith.constant 0 : index
    %c0_3 = arith.constant 0 : index
    %2 = vector.load %arg1[%c0_2, %c0_3] : memref<9x16xf32, #tpu.memory_space<vmem>>, vector<9x16xf32>
    %cst = arith.constant dense<0.000000e+00> : vector<392x16xf32>
    %3 = tpu.matmul %1, %2, %cst {dimension_numbers = #tpu.dot_dimension_numbers<[1], [0], [0], [1], [0, 0, 1, 1], [], []>} : vector<392x9xf32>, vector<9x16xf32>, vector<392x16xf32> -> vector<392x16xf32>
    %c0_4 = arith.constant 0 : index
    %c0_5 = arith.constant 0 : index
    %4 = vector.load %arg2[%c0_4, %c0_5] : memref<1x16xf32, #tpu.memory_space<vmem>>, vector<1x16xf32>
    %5 = vector.broadcast %4 : vector<1x16xf32> to vector<392x16xf32>
    %6 = arith.addf %3, %5 : vector<392x16xf32>
    %cst_6 = arith.constant 0.000000e+00 : f32
    %7 = vector.broadcast %cst_6 : f32 to vector<392x16xf32>
    %8 = arith.maximumf %6, %7 : vector<392x16xf32>
    %c1 = arith.constant 1 : index
    %c0_7 = arith.constant 0 : index
    %c0_8 = arith.constant 0 : index
    %9 = vector.load %arg0[%c1, %c0_7, %c0_8] : memref<4x392x9xf32, #tpu.memory_space<vmem>>, vector<1x392x9xf32>
    %10 = vector.shape_cast %9 : vector<1x392x9xf32> to vector<392x9xf32>
    %c0_9 = arith.constant 0 : index
    %c0_10 = arith.constant 0 : index
    %11 = vector.load %arg1[%c0_9, %c0_10] : memref<9x16xf32, #tpu.memory_space<vmem>>, vector<9x16xf32>
    %cst_11 = arith.constant dense<0.000000e+00> : vector<392x16xf32>
    %12 = tpu.matmul %10, %11, %cst_11 {dimension_numbers = #tpu.dot_dimension_numbers<[1], [0], [0], [1], [0, 0, 1, 1], [], []>} : vector<392x9xf32>, vector<9x16xf32>, vector<392x16xf32> -> vector<392x16xf32>
    %c0_12 = arith.constant 0 : index
    %c0_13 = arith.constant 0 : index
    %13 = vector.load %arg2[%c0_12, %c0_13] : memref<1x16xf32, #tpu.memory_space<vmem>>, vector<1x16xf32>
    %14 = vector.broadcast %13 : vector<1x16xf32> to vector<392x16xf32>
    %15 = arith.addf %12, %14 : vector<392x16xf32>
    %cst_14 = arith.constant 0.000000e+00 : f32
    %16 = vector.broadcast %cst_14 : f32 to vector<392x16xf32>
    %17 = arith.maximumf %15, %16 : vector<392x16xf32>
    %18 = arith.maximumf %8, %17 : vector<392x16xf32>
    %c2 = arith.constant 2 : index
    %c0_15 = arith.constant 0 : index
    %c0_16 = arith.constant 0 : index
    %19 = vector.load %arg0[%c2, %c0_15, %c0_16] : memref<4x392x9xf32, #tpu.memory_space<vmem>>, vector<1x392x9xf32>
    %20 = vector.shape_cast %19 : vector<1x392x9xf32> to vector<392x9xf32>
    %c0_17 = arith.constant 0 : index
    %c0_18 = arith.constant 0 : index
    %21 = vector.load %arg1[%c0_17, %c0_18] : memref<9x16xf32, #tpu.memory_space<vmem>>, vector<9x16xf32>
    %cst_19 = arith.constant dense<0.000000e+00> : vector<392x16xf32>
    %22 = tpu.matmul %20, %21, %cst_19 {dimension_numbers = #tpu.dot_dimension_numbers<[1], [0], [0], [1], [0, 0, 1, 1], [], []>} : vector<392x9xf32>, vector<9x16xf32>, vector<392x16xf32> -> vector<392x16xf32>
    %c0_20 = arith.constant 0 : index
    %c0_21 = arith.constant 0 : index
    %23 = vector.load %arg2[%c0_20, %c0_21] : memref<1x16xf32, #tpu.memory_space<vmem>>, vector<1x16xf32>
    %24 = vector.broadcast %23 : vector<1x16xf32> to vector<392x16xf32>
    %25 = arith.addf %22, %24 : vector<392x16xf32>
    %cst_22 = arith.constant 0.000000e+00 : f32
    %26 = vector.broadcast %cst_22 : f32 to vector<392x16xf32>
    %27 = arith.maximumf %25, %26 : vector<392x16xf32>
    %c3 = arith.constant 3 : index
    %c0_23 = arith.constant 0 : index
    %c0_24 = arith.constant 0 : index
    %28 = vector.load %arg0[%c3, %c0_23, %c0_24] : memref<4x392x9xf32, #tpu.memory_space<vmem>>, vector<1x392x9xf32>
    %29 = vector.shape_cast %28 : vector<1x392x9xf32> to vector<392x9xf32>
    %c0_25 = arith.constant 0 : index
    %c0_26 = arith.constant 0 : index
    %30 = vector.load %arg1[%c0_25, %c0_26] : memref<9x16xf32, #tpu.memory_space<vmem>>, vector<9x16xf32>
    %cst_27 = arith.constant dense<0.000000e+00> : vector<392x16xf32>
    %31 = tpu.matmul %29, %30, %cst_27 {dimension_numbers = #tpu.dot_dimension_numbers<[1], [0], [0], [1], [0, 0, 1, 1], [], []>} : vector<392x9xf32>, vector<9x16xf32>, vector<392x16xf32> -> vector<392x16xf32>
    %c0_28 = arith.constant 0 : index
    %c0_29 = arith.constant 0 : index
    %32 = vector.load %arg2[%c0_28, %c0_29] : memref<1x16xf32, #tpu.memory_space<vmem>>, vector<1x16xf32>
    %33 = vector.broadcast %32 : vector<1x16xf32> to vector<392x16xf32>
    %34 = arith.addf %31, %33 : vector<392x16xf32>
    %cst_30 = arith.constant 0.000000e+00 : f32
    %35 = vector.broadcast %cst_30 : f32 to vector<392x16xf32>
    %36 = arith.maximumf %34, %35 : vector<392x16xf32>
    %37 = arith.maximumf %27, %36 : vector<392x16xf32>
    %38 = arith.maximumf %18, %37 : vector<392x16xf32>
    %c0_31 = arith.constant 0 : index
    %c0_32 = arith.constant 0 : index
    %39 = vector.load %arg3[%c0_31, %c0_32] : memref<392x16xf32, #tpu.memory_space<vmem>>, vector<392x16xf32>
    tpu.vector_store %arg3[%c0_31, %c0_32], %38 {strides = array<i32>} : memref<392x16xf32, #tpu.memory_space<vmem>>, vector<392x16xf32>,
    return
  }
}

module attributes {stable_mosaic.version = 11 : i64} {
  func.func @conv_bn_relu_kernel(%arg0: memref<98x144xbf16, #tpu.memory_space<vmem>>, %arg1: memref<144x32xbf16, #tpu.memory_space<vmem>>, %arg2: memref<1x32xf32, #tpu.memory_space<vmem>>, %arg3: memref<98x32xf32, #tpu.memory_space<vmem>>) attributes {dimension_semantics = [], scalar_prefetch = 0 : i64, scratch_operands = 0 : i64, tpu.core_type = #tpu.core_type<tc>} {
    %c0 = arith.constant 0 : index
    %c0_0 = arith.constant 0 : index
    %0 = vector.load %arg0[%c0, %c0_0] : memref<98x144xbf16, #tpu.memory_space<vmem>>, vector<98x144xbf16>
    %c0_1 = arith.constant 0 : index
    %c0_2 = arith.constant 0 : index
    %1 = vector.load %arg1[%c0_1, %c0_2] : memref<144x32xbf16, #tpu.memory_space<vmem>>, vector<144x32xbf16>
    %cst = arith.constant dense<0.000000e+00> : vector<98x32xf32>
    %2 = tpu.matmul %0, %1, %cst {dimension_numbers = #tpu.dot_dimension_numbers<[1], [0], [0], [1], [0, 0, 1, 1], [], []>} : vector<98x144xbf16>, vector<144x32xbf16>, vector<98x32xf32> -> vector<98x32xf32>
    %c0_3 = arith.constant 0 : index
    %c0_4 = arith.constant 0 : index
    %3 = vector.load %arg2[%c0_3, %c0_4] : memref<1x32xf32, #tpu.memory_space<vmem>>, vector<1x32xf32>
    %4 = vector.broadcast %3 : vector<1x32xf32> to vector<98x32xf32>
    %5 = arith.addf %2, %4 : vector<98x32xf32>
    %cst_5 = arith.constant 0.000000e+00 : f32
    %6 = vector.broadcast %cst_5 : f32 to vector<98x32xf32>
    %7 = arith.maximumf %5, %6 : vector<98x32xf32>
    %c0_6 = arith.constant 0 : index
    %c0_7 = arith.constant 0 : index
    %8 = vector.load %arg3[%c0_6, %c0_7] : memref<98x32xf32, #tpu.memory_space<vmem>>, vector<98x32xf32>
    tpu.vector_store %arg3[%c0_6, %c0_7], %7 {strides = array<i32>} : memref<98x32xf32, #tpu.memory_space<vmem>>, vector<98x32xf32>,
    return
  }
}

module attributes {stable_mosaic.version = 11 : i64} {
  func.func @conv3_mlp_kernel(%arg0: memref<16x2x288xbf16, #tpu.memory_space<vmem>>, %arg1: memref<288x64xbf16, #tpu.memory_space<vmem>>, %arg2: memref<1x64xf32, #tpu.memory_space<vmem>>, %arg3: memref<16x64x128xbf16, #tpu.memory_space<vmem>>, %arg4: memref<1x128xf32, #tpu.memory_space<vmem>>, %arg5: memref<128x10xf32, #tpu.memory_space<vmem>>, %arg6: memref<1x10xf32, #tpu.memory_space<vmem>>, %arg7: memref<2x10xf32, #tpu.memory_space<vmem>>) attributes {dimension_semantics = [], scalar_prefetch = 0 : i64, scratch_operands = 0 : i64, tpu.core_type = #tpu.core_type<tc>} {
    %cst = arith.constant 0.000000e+00 : f32
    %0 = vector.broadcast %cst : f32 to vector<2x128xf32>
    %c0 = arith.constant 0 : index
    %c0_0 = arith.constant 0 : index
    %1 = vector.load %arg4[%c0, %c0_0] : memref<1x128xf32, #tpu.memory_space<vmem>>, vector<1x128xf32>
    %2 = vector.broadcast %1 : vector<1x128xf32> to vector<2x128xf32>
    %3 = arith.addf %0, %2 : vector<2x128xf32>
    %c0_1 = arith.constant 0 : index
    %c0_2 = arith.constant 0 : index
    %c0_3 = arith.constant 0 : index
    %4 = vector.load %arg0[%c0_1, %c0_2, %c0_3] : memref<16x2x288xbf16, #tpu.memory_space<vmem>>, vector<1x2x288xbf16>
    %5 = vector.shape_cast %4 : vector<1x2x288xbf16> to vector<2x288xbf16>
    %c0_4 = arith.constant 0 : index
    %c0_5 = arith.constant 0 : index
    %6 = vector.load %arg1[%c0_4, %c0_5] : memref<288x64xbf16, #tpu.memory_space<vmem>>, vector<288x64xbf16>
    %cst_6 = arith.constant dense<0.000000e+00> : vector<2x64xf32>
    %7 = tpu.matmul %5, %6, %cst_6 {dimension_numbers = #tpu.dot_dimension_numbers<[1], [0], [0], [1], [0, 0, 1, 1], [], []>} : vector<2x288xbf16>, vector<288x64xbf16>, vector<2x64xf32> -> vector<2x64xf32>
    %c0_7 = arith.constant 0 : index
    %c0_8 = arith.constant 0 : index
    %8 = vector.load %arg2[%c0_7, %c0_8] : memref<1x64xf32, #tpu.memory_space<vmem>>, vector<1x64xf32>
    %9 = vector.broadcast %8 : vector<1x64xf32> to vector<2x64xf32>
    %10 = arith.addf %7, %9 : vector<2x64xf32>
    %cst_9 = arith.constant 0.000000e+00 : f32
    %11 = vector.broadcast %cst_9 : f32 to vector<2x64xf32>
    %12 = arith.maximumf %10, %11 : vector<2x64xf32>
    %13 = arith.truncf %12 : vector<2x64xf32> to vector<2x64xbf16>
    %c0_10 = arith.constant 0 : index
    %c0_11 = arith.constant 0 : index
    %c0_12 = arith.constant 0 : index
    %14 = vector.load %arg3[%c0_10, %c0_11, %c0_12] : memref<16x64x128xbf16, #tpu.memory_space<vmem>>, vector<1x64x128xbf16>
    %15 = vector.shape_cast %14 : vector<1x64x128xbf16> to vector<64x128xbf16>
    %cst_13 = arith.constant dense<0.000000e+00> : vector<2x128xf32>
    %16 = tpu.matmul %13, %15, %cst_13 {dimension_numbers = #tpu.dot_dimension_numbers<[1], [0], [0], [1], [0, 0, 1, 1], [], []>} : vector<2x64xbf16>, vector<64x128xbf16>, vector<2x128xf32> -> vector<2x128xf32>
    %17 = arith.addf %3, %16 : vector<2x128xf32>
    %c1 = arith.constant 1 : index
    %c0_14 = arith.constant 0 : index
    %c0_15 = arith.constant 0 : index
    %18 = vector.load %arg0[%c1, %c0_14, %c0_15] : memref<16x2x288xbf16, #tpu.memory_space<vmem>>, vector<1x2x288xbf16>
    %19 = vector.shape_cast %18 : vector<1x2x288xbf16> to vector<2x288xbf16>
    %c0_16 = arith.constant 0 : index
    %c0_17 = arith.constant 0 : index
    %20 = vector.load %arg1[%c0_16, %c0_17] : memref<288x64xbf16, #tpu.memory_space<vmem>>, vector<288x64xbf16>
    %cst_18 = arith.constant dense<0.000000e+00> : vector<2x64xf32>
    %21 = tpu.matmul %19, %20, %cst_18 {dimension_numbers = #tpu.dot_dimension_numbers<[1], [0], [0], [1], [0, 0, 1, 1], [], []>} : vector<2x288xbf16>, vector<288x64xbf16>, vector<2x64xf32> -> vector<2x64xf32>
    %c0_19 = arith.constant 0 : index
    %c0_20 = arith.constant 0 : index
    %22 = vector.load %arg2[%c0_19, %c0_20] : memref<1x64xf32, #tpu.memory_space<vmem>>, vector<1x64xf32>
    %23 = vector.broadcast %22 : vector<1x64xf32> to vector<2x64xf32>
    %24 = arith.addf %21, %23 : vector<2x64xf32>
    %cst_21 = arith.constant 0.000000e+00 : f32
    %25 = vector.broadcast %cst_21 : f32 to vector<2x64xf32>
    %26 = arith.maximumf %24, %25 : vector<2x64xf32>
    %27 = arith.truncf %26 : vector<2x64xf32> to vector<2x64xbf16>
    %c1_22 = arith.constant 1 : index
    %c0_23 = arith.constant 0 : index
    %c0_24 = arith.constant 0 : index
    %28 = vector.load %arg3[%c1_22, %c0_23, %c0_24] : memref<16x64x128xbf16, #tpu.memory_space<vmem>>, vector<1x64x128xbf16>
    %29 = vector.shape_cast %28 : vector<1x64x128xbf16> to vector<64x128xbf16>
    %cst_25 = arith.constant dense<0.000000e+00> : vector<2x128xf32>
    %30 = tpu.matmul %27, %29, %cst_25 {dimension_numbers = #tpu.dot_dimension_numbers<[1], [0], [0], [1], [0, 0, 1, 1], [], []>} : vector<2x64xbf16>, vector<64x128xbf16>, vector<2x128xf32> -> vector<2x128xf32>
    %31 = arith.addf %17, %30 : vector<2x128xf32>
    %c2 = arith.constant 2 : index
    %c0_26 = arith.constant 0 : index
    %c0_27 = arith.constant 0 : index
    %32 = vector.load %arg0[%c2, %c0_26, %c0_27] : memref<16x2x288xbf16, #tpu.memory_space<vmem>>, vector<1x2x288xbf16>
    %33 = vector.shape_cast %32 : vector<1x2x288xbf16> to vector<2x288xbf16>
    %c0_28 = arith.constant 0 : index
    %c0_29 = arith.constant 0 : index
    %34 = vector.load %arg1[%c0_28, %c0_29] : memref<288x64xbf16, #tpu.memory_space<vmem>>, vector<288x64xbf16>
    %cst_30 = arith.constant dense<0.000000e+00> : vector<2x64xf32>
    %35 = tpu.matmul %33, %34, %cst_30 {dimension_numbers = #tpu.dot_dimension_numbers<[1], [0], [0], [1], [0, 0, 1, 1], [], []>} : vector<2x288xbf16>, vector<288x64xbf16>, vector<2x64xf32> -> vector<2x64xf32>
    %c0_31 = arith.constant 0 : index
    %c0_32 = arith.constant 0 : index
    %36 = vector.load %arg2[%c0_31, %c0_32] : memref<1x64xf32, #tpu.memory_space<vmem>>, vector<1x64xf32>
    %37 = vector.broadcast %36 : vector<1x64xf32> to vector<2x64xf32>
    %38 = arith.addf %35, %37 : vector<2x64xf32>
    %cst_33 = arith.constant 0.000000e+00 : f32
    %39 = vector.broadcast %cst_33 : f32 to vector<2x64xf32>
    %40 = arith.maximumf %38, %39 : vector<2x64xf32>
    %41 = arith.truncf %40 : vector<2x64xf32> to vector<2x64xbf16>
    %c2_34 = arith.constant 2 : index
    %c0_35 = arith.constant 0 : index
    %c0_36 = arith.constant 0 : index
    %42 = vector.load %arg3[%c2_34, %c0_35, %c0_36] : memref<16x64x128xbf16, #tpu.memory_space<vmem>>, vector<1x64x128xbf16>
    %43 = vector.shape_cast %42 : vector<1x64x128xbf16> to vector<64x128xbf16>
    %cst_37 = arith.constant dense<0.000000e+00> : vector<2x128xf32>
    %44 = tpu.matmul %41, %43, %cst_37 {dimension_numbers = #tpu.dot_dimension_numbers<[1], [0], [0], [1], [0, 0, 1, 1], [], []>} : vector<2x64xbf16>, vector<64x128xbf16>, vector<2x128xf32> -> vector<2x128xf32>
    %45 = arith.addf %31, %44 : vector<2x128xf32>
    %c3 = arith.constant 3 : index
    %c0_38 = arith.constant 0 : index
    %c0_39 = arith.constant 0 : index
    %46 = vector.load %arg0[%c3, %c0_38, %c0_39] : memref<16x2x288xbf16, #tpu.memory_space<vmem>>, vector<1x2x288xbf16>
    %47 = vector.shape_cast %46 : vector<1x2x288xbf16> to vector<2x288xbf16>
    %c0_40 = arith.constant 0 : index
    %c0_41 = arith.constant 0 : index
    %48 = vector.load %arg1[%c0_40, %c0_41] : memref<288x64xbf16, #tpu.memory_space<vmem>>, vector<288x64xbf16>
    %cst_42 = arith.constant dense<0.000000e+00> : vector<2x64xf32>
    %49 = tpu.matmul %47, %48, %cst_42 {dimension_numbers = #tpu.dot_dimension_numbers<[1], [0], [0], [1], [0, 0, 1, 1], [], []>} : vector<2x288xbf16>, vector<288x64xbf16>, vector<2x64xf32> -> vector<2x64xf32>
    %c0_43 = arith.constant 0 : index
    %c0_44 = arith.constant 0 : index
    %50 = vector.load %arg2[%c0_43, %c0_44] : memref<1x64xf32, #tpu.memory_space<vmem>>, vector<1x64xf32>
    %51 = vector.broadcast %50 : vector<1x64xf32> to vector<2x64xf32>
    %52 = arith.addf %49, %51 : vector<2x64xf32>
    %cst_45 = arith.constant 0.000000e+00 : f32
    %53 = vector.broadcast %cst_45 : f32 to vector<2x64xf32>
    %54 = arith.maximumf %52, %53 : vector<2x64xf32>
    %55 = arith.truncf %54 : vector<2x64xf32> to vector<2x64xbf16>
    %c3_46 = arith.constant 3 : index
    %c0_47 = arith.constant 0 : index
    %c0_48 = arith.constant 0 : index
    %56 = vector.load %arg3[%c3_46, %c0_47, %c0_48] : memref<16x64x128xbf16, #tpu.memory_space<vmem>>, vector<1x64x128xbf16>
    %57 = vector.shape_cast %56 : vector<1x64x128xbf16> to vector<64x128xbf16>
    %cst_49 = arith.constant dense<0.000000e+00> : vector<2x128xf32>
    %58 = tpu.matmul %55, %57, %cst_49 {dimension_numbers = #tpu.dot_dimension_numbers<[1], [0], [0], [1], [0, 0, 1, 1], [], []>} : vector<2x64xbf16>, vector<64x128xbf16>, vector<2x128xf32> -> vector<2x128xf32>
    %59 = arith.addf %45, %58 : vector<2x128xf32>
    %c4 = arith.constant 4 : index
    %c0_50 = arith.constant 0 : index
    %c0_51 = arith.constant 0 : index
    %60 = vector.load %arg0[%c4, %c0_50, %c0_51] : memref<16x2x288xbf16, #tpu.memory_space<vmem>>, vector<1x2x288xbf16>
    %61 = vector.shape_cast %60 : vector<1x2x288xbf16> to vector<2x288xbf16>
    %c0_52 = arith.constant 0 : index
    %c0_53 = arith.constant 0 : index
    %62 = vector.load %arg1[%c0_52, %c0_53] : memref<288x64xbf16, #tpu.memory_space<vmem>>, vector<288x64xbf16>
    %cst_54 = arith.constant dense<0.000000e+00> : vector<2x64xf32>
    %63 = tpu.matmul %61, %62, %cst_54 {dimension_numbers = #tpu.dot_dimension_numbers<[1], [0], [0], [1], [0, 0, 1, 1], [], []>} : vector<2x288xbf16>, vector<288x64xbf16>, vector<2x64xf32> -> vector<2x64xf32>
    %c0_55 = arith.constant 0 : index
    %c0_56 = arith.constant 0 : index
    %64 = vector.load %arg2[%c0_55, %c0_56] : memref<1x64xf32, #tpu.memory_space<vmem>>, vector<1x64xf32>
    %65 = vector.broadcast %64 : vector<1x64xf32> to vector<2x64xf32>
    %66 = arith.addf %63, %65 : vector<2x64xf32>
    %cst_57 = arith.constant 0.000000e+00 : f32
    %67 = vector.broadcast %cst_57 : f32 to vector<2x64xf32>
    %68 = arith.maximumf %66, %67 : vector<2x64xf32>
    %69 = arith.truncf %68 : vector<2x64xf32> to vector<2x64xbf16>
    %c4_58 = arith.constant 4 : index
    %c0_59 = arith.constant 0 : index
    %c0_60 = arith.constant 0 : index
    %70 = vector.load %arg3[%c4_58, %c0_59, %c0_60] : memref<16x64x128xbf16, #tpu.memory_space<vmem>>, vector<1x64x128xbf16>
    %71 = vector.shape_cast %70 : vector<1x64x128xbf16> to vector<64x128xbf16>
    %cst_61 = arith.constant dense<0.000000e+00> : vector<2x128xf32>
    %72 = tpu.matmul %69, %71, %cst_61 {dimension_numbers = #tpu.dot_dimension_numbers<[1], [0], [0], [1], [0, 0, 1, 1], [], []>} : vector<2x64xbf16>, vector<64x128xbf16>, vector<2x128xf32> -> vector<2x128xf32>
    %73 = arith.addf %59, %72 : vector<2x128xf32>
    %c5 = arith.constant 5 : index
    %c0_62 = arith.constant 0 : index
    %c0_63 = arith.constant 0 : index
    %74 = vector.load %arg0[%c5, %c0_62, %c0_63] : memref<16x2x288xbf16, #tpu.memory_space<vmem>>, vector<1x2x288xbf16>
    %75 = vector.shape_cast %74 : vector<1x2x288xbf16> to vector<2x288xbf16>
    %c0_64 = arith.constant 0 : index
    %c0_65 = arith.constant 0 : index
    %76 = vector.load %arg1[%c0_64, %c0_65] : memref<288x64xbf16, #tpu.memory_space<vmem>>, vector<288x64xbf16>
    %cst_66 = arith.constant dense<0.000000e+00> : vector<2x64xf32>
    %77 = tpu.matmul %75, %76, %cst_66 {dimension_numbers = #tpu.dot_dimension_numbers<[1], [0], [0], [1], [0, 0, 1, 1], [], []>} : vector<2x288xbf16>, vector<288x64xbf16>, vector<2x64xf32> -> vector<2x64xf32>
    %c0_67 = arith.constant 0 : index
    %c0_68 = arith.constant 0 : index
    %78 = vector.load %arg2[%c0_67, %c0_68] : memref<1x64xf32, #tpu.memory_space<vmem>>, vector<1x64xf32>
    %79 = vector.broadcast %78 : vector<1x64xf32> to vector<2x64xf32>
    %80 = arith.addf %77, %79 : vector<2x64xf32>
    %cst_69 = arith.constant 0.000000e+00 : f32
    %81 = vector.broadcast %cst_69 : f32 to vector<2x64xf32>
    %82 = arith.maximumf %80, %81 : vector<2x64xf32>
    %83 = arith.truncf %82 : vector<2x64xf32> to vector<2x64xbf16>
    %c5_70 = arith.constant 5 : index
    %c0_71 = arith.constant 0 : index
    %c0_72 = arith.constant 0 : index
    %84 = vector.load %arg3[%c5_70, %c0_71, %c0_72] : memref<16x64x128xbf16, #tpu.memory_space<vmem>>, vector<1x64x128xbf16>
    %85 = vector.shape_cast %84 : vector<1x64x128xbf16> to vector<64x128xbf16>
    %cst_73 = arith.constant dense<0.000000e+00> : vector<2x128xf32>
    %86 = tpu.matmul %83, %85, %cst_73 {dimension_numbers = #tpu.dot_dimension_numbers<[1], [0], [0], [1], [0, 0, 1, 1], [], []>} : vector<2x64xbf16>, vector<64x128xbf16>, vector<2x128xf32> -> vector<2x128xf32>
    %87 = arith.addf %73, %86 : vector<2x128xf32>
    %c6 = arith.constant 6 : index
    %c0_74 = arith.constant 0 : index
    %c0_75 = arith.constant 0 : index
    %88 = vector.load %arg0[%c6, %c0_74, %c0_75] : memref<16x2x288xbf16, #tpu.memory_space<vmem>>, vector<1x2x288xbf16>
    %89 = vector.shape_cast %88 : vector<1x2x288xbf16> to vector<2x288xbf16>
    %c0_76 = arith.constant 0 : index
    %c0_77 = arith.constant 0 : index
    %90 = vector.load %arg1[%c0_76, %c0_77] : memref<288x64xbf16, #tpu.memory_space<vmem>>, vector<288x64xbf16>
    %cst_78 = arith.constant dense<0.000000e+00> : vector<2x64xf32>
    %91 = tpu.matmul %89, %90, %cst_78 {dimension_numbers = #tpu.dot_dimension_numbers<[1], [0], [0], [1], [0, 0, 1, 1], [], []>} : vector<2x288xbf16>, vector<288x64xbf16>, vector<2x64xf32> -> vector<2x64xf32>
    %c0_79 = arith.constant 0 : index
    %c0_80 = arith.constant 0 : index
    %92 = vector.load %arg2[%c0_79, %c0_80] : memref<1x64xf32, #tpu.memory_space<vmem>>, vector<1x64xf32>
    %93 = vector.broadcast %92 : vector<1x64xf32> to vector<2x64xf32>
    %94 = arith.addf %91, %93 : vector<2x64xf32>
    %cst_81 = arith.constant 0.000000e+00 : f32
    %95 = vector.broadcast %cst_81 : f32 to vector<2x64xf32>
    %96 = arith.maximumf %94, %95 : vector<2x64xf32>
    %97 = arith.truncf %96 : vector<2x64xf32> to vector<2x64xbf16>
    %c6_82 = arith.constant 6 : index
    %c0_83 = arith.constant 0 : index
    %c0_84 = arith.constant 0 : index
    %98 = vector.load %arg3[%c6_82, %c0_83, %c0_84] : memref<16x64x128xbf16, #tpu.memory_space<vmem>>, vector<1x64x128xbf16>
    %99 = vector.shape_cast %98 : vector<1x64x128xbf16> to vector<64x128xbf16>
    %cst_85 = arith.constant dense<0.000000e+00> : vector<2x128xf32>
    %100 = tpu.matmul %97, %99, %cst_85 {dimension_numbers = #tpu.dot_dimension_numbers<[1], [0], [0], [1], [0, 0, 1, 1], [], []>} : vector<2x64xbf16>, vector<64x128xbf16>, vector<2x128xf32> -> vector<2x128xf32>
    %101 = arith.addf %87, %100 : vector<2x128xf32>
    %c7 = arith.constant 7 : index
    %c0_86 = arith.constant 0 : index
    %c0_87 = arith.constant 0 : index
    %102 = vector.load %arg0[%c7, %c0_86, %c0_87] : memref<16x2x288xbf16, #tpu.memory_space<vmem>>, vector<1x2x288xbf16>
    %103 = vector.shape_cast %102 : vector<1x2x288xbf16> to vector<2x288xbf16>
    %c0_88 = arith.constant 0 : index
    %c0_89 = arith.constant 0 : index
    %104 = vector.load %arg1[%c0_88, %c0_89] : memref<288x64xbf16, #tpu.memory_space<vmem>>, vector<288x64xbf16>
    %cst_90 = arith.constant dense<0.000000e+00> : vector<2x64xf32>
    %105 = tpu.matmul %103, %104, %cst_90 {dimension_numbers = #tpu.dot_dimension_numbers<[1], [0], [0], [1], [0, 0, 1, 1], [], []>} : vector<2x288xbf16>, vector<288x64xbf16>, vector<2x64xf32> -> vector<2x64xf32>
    %c0_91 = arith.constant 0 : index
    %c0_92 = arith.constant 0 : index
    %106 = vector.load %arg2[%c0_91, %c0_92] : memref<1x64xf32, #tpu.memory_space<vmem>>, vector<1x64xf32>
    %107 = vector.broadcast %106 : vector<1x64xf32> to vector<2x64xf32>
    %108 = arith.addf %105, %107 : vector<2x64xf32>
    %cst_93 = arith.constant 0.000000e+00 : f32
    %109 = vector.broadcast %cst_93 : f32 to vector<2x64xf32>
    %110 = arith.maximumf %108, %109 : vector<2x64xf32>
    %111 = arith.truncf %110 : vector<2x64xf32> to vector<2x64xbf16>
    %c7_94 = arith.constant 7 : index
    %c0_95 = arith.constant 0 : index
    %c0_96 = arith.constant 0 : index
    %112 = vector.load %arg3[%c7_94, %c0_95, %c0_96] : memref<16x64x128xbf16, #tpu.memory_space<vmem>>, vector<1x64x128xbf16>
    %113 = vector.shape_cast %112 : vector<1x64x128xbf16> to vector<64x128xbf16>
    %cst_97 = arith.constant dense<0.000000e+00> : vector<2x128xf32>
    %114 = tpu.matmul %111, %113, %cst_97 {dimension_numbers = #tpu.dot_dimension_numbers<[1], [0], [0], [1], [0, 0, 1, 1], [], []>} : vector<2x64xbf16>, vector<64x128xbf16>, vector<2x128xf32> -> vector<2x128xf32>
    %115 = arith.addf %101, %114 : vector<2x128xf32>
    %c8 = arith.constant 8 : index
    %c0_98 = arith.constant 0 : index
    %c0_99 = arith.constant 0 : index
    %116 = vector.load %arg0[%c8, %c0_98, %c0_99] : memref<16x2x288xbf16, #tpu.memory_space<vmem>>, vector<1x2x288xbf16>
    %117 = vector.shape_cast %116 : vector<1x2x288xbf16> to vector<2x288xbf16>
    %c0_100 = arith.constant 0 : index
    %c0_101 = arith.constant 0 : index
    %118 = vector.load %arg1[%c0_100, %c0_101] : memref<288x64xbf16, #tpu.memory_space<vmem>>, vector<288x64xbf16>
    %cst_102 = arith.constant dense<0.000000e+00> : vector<2x64xf32>
    %119 = tpu.matmul %117, %118, %cst_102 {dimension_numbers = #tpu.dot_dimension_numbers<[1], [0], [0], [1], [0, 0, 1, 1], [], []>} : vector<2x288xbf16>, vector<288x64xbf16>, vector<2x64xf32> -> vector<2x64xf32>
    %c0_103 = arith.constant 0 : index
    %c0_104 = arith.constant 0 : index
    %120 = vector.load %arg2[%c0_103, %c0_104] : memref<1x64xf32, #tpu.memory_space<vmem>>, vector<1x64xf32>
    %121 = vector.broadcast %120 : vector<1x64xf32> to vector<2x64xf32>
    %122 = arith.addf %119, %121 : vector<2x64xf32>
    %cst_105 = arith.constant 0.000000e+00 : f32
    %123 = vector.broadcast %cst_105 : f32 to vector<2x64xf32>
    %124 = arith.maximumf %122, %123 : vector<2x64xf32>
    %125 = arith.truncf %124 : vector<2x64xf32> to vector<2x64xbf16>
    %c8_106 = arith.constant 8 : index
    %c0_107 = arith.constant 0 : index
    %c0_108 = arith.constant 0 : index
    %126 = vector.load %arg3[%c8_106, %c0_107, %c0_108] : memref<16x64x128xbf16, #tpu.memory_space<vmem>>, vector<1x64x128xbf16>
    %127 = vector.shape_cast %126 : vector<1x64x128xbf16> to vector<64x128xbf16>
    %cst_109 = arith.constant dense<0.000000e+00> : vector<2x128xf32>
    %128 = tpu.matmul %125, %127, %cst_109 {dimension_numbers = #tpu.dot_dimension_numbers<[1], [0], [0], [1], [0, 0, 1, 1], [], []>} : vector<2x64xbf16>, vector<64x128xbf16>, vector<2x128xf32> -> vector<2x128xf32>
    %129 = arith.addf %115, %128 : vector<2x128xf32>
    %c9 = arith.constant 9 : index
    %c0_110 = arith.constant 0 : index
    %c0_111 = arith.constant 0 : index
    %130 = vector.load %arg0[%c9, %c0_110, %c0_111] : memref<16x2x288xbf16, #tpu.memory_space<vmem>>, vector<1x2x288xbf16>
    %131 = vector.shape_cast %130 : vector<1x2x288xbf16> to vector<2x288xbf16>
    %c0_112 = arith.constant 0 : index
    %c0_113 = arith.constant 0 : index
    %132 = vector.load %arg1[%c0_112, %c0_113] : memref<288x64xbf16, #tpu.memory_space<vmem>>, vector<288x64xbf16>
    %cst_114 = arith.constant dense<0.000000e+00> : vector<2x64xf32>
    %133 = tpu.matmul %131, %132, %cst_114 {dimension_numbers = #tpu.dot_dimension_numbers<[1], [0], [0], [1], [0, 0, 1, 1], [], []>} : vector<2x288xbf16>, vector<288x64xbf16>, vector<2x64xf32> -> vector<2x64xf32>
    %c0_115 = arith.constant 0 : index
    %c0_116 = arith.constant 0 : index
    %134 = vector.load %arg2[%c0_115, %c0_116] : memref<1x64xf32, #tpu.memory_space<vmem>>, vector<1x64xf32>
    %135 = vector.broadcast %134 : vector<1x64xf32> to vector<2x64xf32>
    %136 = arith.addf %133, %135 : vector<2x64xf32>
    %cst_117 = arith.constant 0.000000e+00 : f32
    %137 = vector.broadcast %cst_117 : f32 to vector<2x64xf32>
    %138 = arith.maximumf %136, %137 : vector<2x64xf32>
    %139 = arith.truncf %138 : vector<2x64xf32> to vector<2x64xbf16>
    %c9_118 = arith.constant 9 : index
    %c0_119 = arith.constant 0 : index
    %c0_120 = arith.constant 0 : index
    %140 = vector.load %arg3[%c9_118, %c0_119, %c0_120] : memref<16x64x128xbf16, #tpu.memory_space<vmem>>, vector<1x64x128xbf16>
    %141 = vector.shape_cast %140 : vector<1x64x128xbf16> to vector<64x128xbf16>
    %cst_121 = arith.constant dense<0.000000e+00> : vector<2x128xf32>
    %142 = tpu.matmul %139, %141, %cst_121 {dimension_numbers = #tpu.dot_dimension_numbers<[1], [0], [0], [1], [0, 0, 1, 1], [], []>} : vector<2x64xbf16>, vector<64x128xbf16>, vector<2x128xf32> -> vector<2x128xf32>
    %143 = arith.addf %129, %142 : vector<2x128xf32>
    %c10 = arith.constant 10 : index
    %c0_122 = arith.constant 0 : index
    %c0_123 = arith.constant 0 : index
    %144 = vector.load %arg0[%c10, %c0_122, %c0_123] : memref<16x2x288xbf16, #tpu.memory_space<vmem>>, vector<1x2x288xbf16>
    %145 = vector.shape_cast %144 : vector<1x2x288xbf16> to vector<2x288xbf16>
    %c0_124 = arith.constant 0 : index
    %c0_125 = arith.constant 0 : index
    %146 = vector.load %arg1[%c0_124, %c0_125] : memref<288x64xbf16, #tpu.memory_space<vmem>>, vector<288x64xbf16>
    %cst_126 = arith.constant dense<0.000000e+00> : vector<2x64xf32>
    %147 = tpu.matmul %145, %146, %cst_126 {dimension_numbers = #tpu.dot_dimension_numbers<[1], [0], [0], [1], [0, 0, 1, 1], [], []>} : vector<2x288xbf16>, vector<288x64xbf16>, vector<2x64xf32> -> vector<2x64xf32>
    %c0_127 = arith.constant 0 : index
    %c0_128 = arith.constant 0 : index
    %148 = vector.load %arg2[%c0_127, %c0_128] : memref<1x64xf32, #tpu.memory_space<vmem>>, vector<1x64xf32>
    %149 = vector.broadcast %148 : vector<1x64xf32> to vector<2x64xf32>
    %150 = arith.addf %147, %149 : vector<2x64xf32>
    %cst_129 = arith.constant 0.000000e+00 : f32
    %151 = vector.broadcast %cst_129 : f32 to vector<2x64xf32>
    %152 = arith.maximumf %150, %151 : vector<2x64xf32>
    %153 = arith.truncf %152 : vector<2x64xf32> to vector<2x64xbf16>
    %c10_130 = arith.constant 10 : index
    %c0_131 = arith.constant 0 : index
    %c0_132 = arith.constant 0 : index
    %154 = vector.load %arg3[%c10_130, %c0_131, %c0_132] : memref<16x64x128xbf16, #tpu.memory_space<vmem>>, vector<1x64x128xbf16>
    %155 = vector.shape_cast %154 : vector<1x64x128xbf16> to vector<64x128xbf16>
    %cst_133 = arith.constant dense<0.000000e+00> : vector<2x128xf32>
    %156 = tpu.matmul %153, %155, %cst_133 {dimension_numbers = #tpu.dot_dimension_numbers<[1], [0], [0], [1], [0, 0, 1, 1], [], []>} : vector<2x64xbf16>, vector<64x128xbf16>, vector<2x128xf32> -> vector<2x128xf32>
    %157 = arith.addf %143, %156 : vector<2x128xf32>
    %c11 = arith.constant 11 : index
    %c0_134 = arith.constant 0 : index
    %c0_135 = arith.constant 0 : index
    %158 = vector.load %arg0[%c11, %c0_134, %c0_135] : memref<16x2x288xbf16, #tpu.memory_space<vmem>>, vector<1x2x288xbf16>
    %159 = vector.shape_cast %158 : vector<1x2x288xbf16> to vector<2x288xbf16>
    %c0_136 = arith.constant 0 : index
    %c0_137 = arith.constant 0 : index
    %160 = vector.load %arg1[%c0_136, %c0_137] : memref<288x64xbf16, #tpu.memory_space<vmem>>, vector<288x64xbf16>
    %cst_138 = arith.constant dense<0.000000e+00> : vector<2x64xf32>
    %161 = tpu.matmul %159, %160, %cst_138 {dimension_numbers = #tpu.dot_dimension_numbers<[1], [0], [0], [1], [0, 0, 1, 1], [], []>} : vector<2x288xbf16>, vector<288x64xbf16>, vector<2x64xf32> -> vector<2x64xf32>
    %c0_139 = arith.constant 0 : index
    %c0_140 = arith.constant 0 : index
    %162 = vector.load %arg2[%c0_139, %c0_140] : memref<1x64xf32, #tpu.memory_space<vmem>>, vector<1x64xf32>
    %163 = vector.broadcast %162 : vector<1x64xf32> to vector<2x64xf32>
    %164 = arith.addf %161, %163 : vector<2x64xf32>
    %cst_141 = arith.constant 0.000000e+00 : f32
    %165 = vector.broadcast %cst_141 : f32 to vector<2x64xf32>
    %166 = arith.maximumf %164, %165 : vector<2x64xf32>
    %167 = arith.truncf %166 : vector<2x64xf32> to vector<2x64xbf16>
    %c11_142 = arith.constant 11 : index
    %c0_143 = arith.constant 0 : index
    %c0_144 = arith.constant 0 : index
    %168 = vector.load %arg3[%c11_142, %c0_143, %c0_144] : memref<16x64x128xbf16, #tpu.memory_space<vmem>>, vector<1x64x128xbf16>
    %169 = vector.shape_cast %168 : vector<1x64x128xbf16> to vector<64x128xbf16>
    %cst_145 = arith.constant dense<0.000000e+00> : vector<2x128xf32>
    %170 = tpu.matmul %167, %169, %cst_145 {dimension_numbers = #tpu.dot_dimension_numbers<[1], [0], [0], [1], [0, 0, 1, 1], [], []>} : vector<2x64xbf16>, vector<64x128xbf16>, vector<2x128xf32> -> vector<2x128xf32>
    %171 = arith.addf %157, %170 : vector<2x128xf32>
    %c12 = arith.constant 12 : index
    %c0_146 = arith.constant 0 : index
    %c0_147 = arith.constant 0 : index
    %172 = vector.load %arg0[%c12, %c0_146, %c0_147] : memref<16x2x288xbf16, #tpu.memory_space<vmem>>, vector<1x2x288xbf16>
    %173 = vector.shape_cast %172 : vector<1x2x288xbf16> to vector<2x288xbf16>
    %c0_148 = arith.constant 0 : index
    %c0_149 = arith.constant 0 : index
    %174 = vector.load %arg1[%c0_148, %c0_149] : memref<288x64xbf16, #tpu.memory_space<vmem>>, vector<288x64xbf16>
    %cst_150 = arith.constant dense<0.000000e+00> : vector<2x64xf32>
    %175 = tpu.matmul %173, %174, %cst_150 {dimension_numbers = #tpu.dot_dimension_numbers<[1], [0], [0], [1], [0, 0, 1, 1], [], []>} : vector<2x288xbf16>, vector<288x64xbf16>, vector<2x64xf32> -> vector<2x64xf32>
    %c0_151 = arith.constant 0 : index
    %c0_152 = arith.constant 0 : index
    %176 = vector.load %arg2[%c0_151, %c0_152] : memref<1x64xf32, #tpu.memory_space<vmem>>, vector<1x64xf32>
    %177 = vector.broadcast %176 : vector<1x64xf32> to vector<2x64xf32>
    %178 = arith.addf %175, %177 : vector<2x64xf32>
    %cst_153 = arith.constant 0.000000e+00 : f32
    %179 = vector.broadcast %cst_153 : f32 to vector<2x64xf32>
    %180 = arith.maximumf %178, %179 : vector<2x64xf32>
    %181 = arith.truncf %180 : vector<2x64xf32> to vector<2x64xbf16>
    %c12_154 = arith.constant 12 : index
    %c0_155 = arith.constant 0 : index
    %c0_156 = arith.constant 0 : index
    %182 = vector.load %arg3[%c12_154, %c0_155, %c0_156] : memref<16x64x128xbf16, #tpu.memory_space<vmem>>, vector<1x64x128xbf16>
    %183 = vector.shape_cast %182 : vector<1x64x128xbf16> to vector<64x128xbf16>
    %cst_157 = arith.constant dense<0.000000e+00> : vector<2x128xf32>
    %184 = tpu.matmul %181, %183, %cst_157 {dimension_numbers = #tpu.dot_dimension_numbers<[1], [0], [0], [1], [0, 0, 1, 1], [], []>} : vector<2x64xbf16>, vector<64x128xbf16>, vector<2x128xf32> -> vector<2x128xf32>
    %185 = arith.addf %171, %184 : vector<2x128xf32>
    %c13 = arith.constant 13 : index
    %c0_158 = arith.constant 0 : index
    %c0_159 = arith.constant 0 : index
    %186 = vector.load %arg0[%c13, %c0_158, %c0_159] : memref<16x2x288xbf16, #tpu.memory_space<vmem>>, vector<1x2x288xbf16>
    %187 = vector.shape_cast %186 : vector<1x2x288xbf16> to vector<2x288xbf16>
    %c0_160 = arith.constant 0 : index
    %c0_161 = arith.constant 0 : index
    %188 = vector.load %arg1[%c0_160, %c0_161] : memref<288x64xbf16, #tpu.memory_space<vmem>>, vector<288x64xbf16>
    %cst_162 = arith.constant dense<0.000000e+00> : vector<2x64xf32>
    %189 = tpu.matmul %187, %188, %cst_162 {dimension_numbers = #tpu.dot_dimension_numbers<[1], [0], [0], [1], [0, 0, 1, 1], [], []>} : vector<2x288xbf16>, vector<288x64xbf16>, vector<2x64xf32> -> vector<2x64xf32>
    %c0_163 = arith.constant 0 : index
    %c0_164 = arith.constant 0 : index
    %190 = vector.load %arg2[%c0_163, %c0_164] : memref<1x64xf32, #tpu.memory_space<vmem>>, vector<1x64xf32>
    %191 = vector.broadcast %190 : vector<1x64xf32> to vector<2x64xf32>
    %192 = arith.addf %189, %191 : vector<2x64xf32>
    %cst_165 = arith.constant 0.000000e+00 : f32
    %193 = vector.broadcast %cst_165 : f32 to vector<2x64xf32>
    %194 = arith.maximumf %192, %193 : vector<2x64xf32>
    %195 = arith.truncf %194 : vector<2x64xf32> to vector<2x64xbf16>
    %c13_166 = arith.constant 13 : index
    %c0_167 = arith.constant 0 : index
    %c0_168 = arith.constant 0 : index
    %196 = vector.load %arg3[%c13_166, %c0_167, %c0_168] : memref<16x64x128xbf16, #tpu.memory_space<vmem>>, vector<1x64x128xbf16>
    %197 = vector.shape_cast %196 : vector<1x64x128xbf16> to vector<64x128xbf16>
    %cst_169 = arith.constant dense<0.000000e+00> : vector<2x128xf32>
    %198 = tpu.matmul %195, %197, %cst_169 {dimension_numbers = #tpu.dot_dimension_numbers<[1], [0], [0], [1], [0, 0, 1, 1], [], []>} : vector<2x64xbf16>, vector<64x128xbf16>, vector<2x128xf32> -> vector<2x128xf32>
    %199 = arith.addf %185, %198 : vector<2x128xf32>
    %c14 = arith.constant 14 : index
    %c0_170 = arith.constant 0 : index
    %c0_171 = arith.constant 0 : index
    %200 = vector.load %arg0[%c14, %c0_170, %c0_171] : memref<16x2x288xbf16, #tpu.memory_space<vmem>>, vector<1x2x288xbf16>
    %201 = vector.shape_cast %200 : vector<1x2x288xbf16> to vector<2x288xbf16>
    %c0_172 = arith.constant 0 : index
    %c0_173 = arith.constant 0 : index
    %202 = vector.load %arg1[%c0_172, %c0_173] : memref<288x64xbf16, #tpu.memory_space<vmem>>, vector<288x64xbf16>
    %cst_174 = arith.constant dense<0.000000e+00> : vector<2x64xf32>
    %203 = tpu.matmul %201, %202, %cst_174 {dimension_numbers = #tpu.dot_dimension_numbers<[1], [0], [0], [1], [0, 0, 1, 1], [], []>} : vector<2x288xbf16>, vector<288x64xbf16>, vector<2x64xf32> -> vector<2x64xf32>
    %c0_175 = arith.constant 0 : index
    %c0_176 = arith.constant 0 : index
    %204 = vector.load %arg2[%c0_175, %c0_176] : memref<1x64xf32, #tpu.memory_space<vmem>>, vector<1x64xf32>
    %205 = vector.broadcast %204 : vector<1x64xf32> to vector<2x64xf32>
    %206 = arith.addf %203, %205 : vector<2x64xf32>
    %cst_177 = arith.constant 0.000000e+00 : f32
    %207 = vector.broadcast %cst_177 : f32 to vector<2x64xf32>
    %208 = arith.maximumf %206, %207 : vector<2x64xf32>
    %209 = arith.truncf %208 : vector<2x64xf32> to vector<2x64xbf16>
    %c14_178 = arith.constant 14 : index
    %c0_179 = arith.constant 0 : index
    %c0_180 = arith.constant 0 : index
    %210 = vector.load %arg3[%c14_178, %c0_179, %c0_180] : memref<16x64x128xbf16, #tpu.memory_space<vmem>>, vector<1x64x128xbf16>
    %211 = vector.shape_cast %210 : vector<1x64x128xbf16> to vector<64x128xbf16>
    %cst_181 = arith.constant dense<0.000000e+00> : vector<2x128xf32>
    %212 = tpu.matmul %209, %211, %cst_181 {dimension_numbers = #tpu.dot_dimension_numbers<[1], [0], [0], [1], [0, 0, 1, 1], [], []>} : vector<2x64xbf16>, vector<64x128xbf16>, vector<2x128xf32> -> vector<2x128xf32>
    %213 = arith.addf %199, %212 : vector<2x128xf32>
    %c15 = arith.constant 15 : index
    %c0_182 = arith.constant 0 : index
    %c0_183 = arith.constant 0 : index
    %214 = vector.load %arg0[%c15, %c0_182, %c0_183] : memref<16x2x288xbf16, #tpu.memory_space<vmem>>, vector<1x2x288xbf16>
    %215 = vector.shape_cast %214 : vector<1x2x288xbf16> to vector<2x288xbf16>
    %c0_184 = arith.constant 0 : index
    %c0_185 = arith.constant 0 : index
    %216 = vector.load %arg1[%c0_184, %c0_185] : memref<288x64xbf16, #tpu.memory_space<vmem>>, vector<288x64xbf16>
    %cst_186 = arith.constant dense<0.000000e+00> : vector<2x64xf32>
    %217 = tpu.matmul %215, %216, %cst_186 {dimension_numbers = #tpu.dot_dimension_numbers<[1], [0], [0], [1], [0, 0, 1, 1], [], []>} : vector<2x288xbf16>, vector<288x64xbf16>, vector<2x64xf32> -> vector<2x64xf32>
    %c0_187 = arith.constant 0 : index
    %c0_188 = arith.constant 0 : index
    %218 = vector.load %arg2[%c0_187, %c0_188] : memref<1x64xf32, #tpu.memory_space<vmem>>, vector<1x64xf32>
    %219 = vector.broadcast %218 : vector<1x64xf32> to vector<2x64xf32>
    %220 = arith.addf %217, %219 : vector<2x64xf32>
    %cst_189 = arith.constant 0.000000e+00 : f32
    %221 = vector.broadcast %cst_189 : f32 to vector<2x64xf32>
    %222 = arith.maximumf %220, %221 : vector<2x64xf32>
    %223 = arith.truncf %222 : vector<2x64xf32> to vector<2x64xbf16>
    %c15_190 = arith.constant 15 : index
    %c0_191 = arith.constant 0 : index
    %c0_192 = arith.constant 0 : index
    %224 = vector.load %arg3[%c15_190, %c0_191, %c0_192] : memref<16x64x128xbf16, #tpu.memory_space<vmem>>, vector<1x64x128xbf16>
    %225 = vector.shape_cast %224 : vector<1x64x128xbf16> to vector<64x128xbf16>
    %cst_193 = arith.constant dense<0.000000e+00> : vector<2x128xf32>
    %226 = tpu.matmul %223, %225, %cst_193 {dimension_numbers = #tpu.dot_dimension_numbers<[1], [0], [0], [1], [0, 0, 1, 1], [], []>} : vector<2x64xbf16>, vector<64x128xbf16>, vector<2x128xf32> -> vector<2x128xf32>
    %227 = arith.addf %213, %226 : vector<2x128xf32>
    %c0_194 = arith.constant 0 : index
    %c0_195 = arith.constant 0 : index
    %228 = vector.load %arg5[%c0_194, %c0_195] : memref<128x10xf32, #tpu.memory_space<vmem>>, vector<128x10xf32>
    %cst_196 = arith.constant dense<0.000000e+00> : vector<2x10xf32>
    %229 = tpu.matmul %227, %228, %cst_196 {dimension_numbers = #tpu.dot_dimension_numbers<[1], [0], [0], [1], [0, 0, 1, 1], [], []>} : vector<2x128xf32>, vector<128x10xf32>, vector<2x10xf32> -> vector<2x10xf32>
    %c0_197 = arith.constant 0 : index
    %c0_198 = arith.constant 0 : index
    %230 = vector.load %arg6[%c0_197, %c0_198] : memref<1x10xf32, #tpu.memory_space<vmem>>, vector<1x10xf32>
    %231 = vector.broadcast %230 : vector<1x10xf32> to vector<2x10xf32>
    %232 = arith.addf %229, %231 : vector<2x10xf32>
    %c0_199 = arith.constant 0 : index
    %c0_200 = arith.constant 0 : index
    %233 = vector.load %arg7[%c0_199, %c0_200] : memref<2x10xf32, #tpu.memory_space<vmem>>, vector<2x10xf32>
    tpu.vector_store %arg7[%c0_199, %c0_200], %232 {strides = array<i32>} : memref<2x10xf32, #tpu.memory_space<vmem>>, vector<2x10xf32>,
    return
  }
}

</mosaic_0001>

<llo_original>
// kernel: my_cnn_forward.3
$region0: #{my_cnn_forward.3}
  #allocation0 [shape = 'u32[]', space=smem, size = 0x4, offset = 0x4, fixed_abs, tag = 'smem constant byte address 0x4 - core index']
  #allocation1 [shape = 'u32[72,128]{1,0:T(1,128)}', space=vmem, size = 0x9000, scoped, tag = 'internal scratch']
  %s0 = inlined_call_operand.vmem [shape: f32[4,392,9], index: 0, kind: input, shape index: {}]
  %s1 = inlined_call_operand.vmem [shape: f32[9,16], index: 1, kind: input, shape index: {}]
  %s2 = inlined_call_operand.vmem [shape: f32[1,16], index: 2, kind: input, shape index: {}]
  %s3 = inlined_call_operand.vmem [shape: f32[392,16], index: 3, kind: output, shape index: {}]
  %s4 = sld [smem:[#allocation0]]
  $region22: #{my_cnn_forward.3} parent=0
    _
  %s6 = ssub.s32 1, %s4
  %s7 = scalar_select 0, %s6, %s4
  // Predicated region
  $region2: #{my_cnn_forward.3} parent=0 // pred_check
    _
  $region3: #{my_cnn_forward.3} parent=0 // pred_check_branch
    %9 = sbr.rel (0) target = $region5
  $region4: #{my_cnn_forward.3} parent=0 // pred_region
    _
  $region5: #{my_cnn_forward.3} parent=0 // pred_fallthru
    _
  // Predicated region
  $region6: #{my_cnn_forward.3} parent=0 // pred_check
    _
  $region7: #{my_cnn_forward.3} parent=0 // pred_check_branch
    %11 = sbr.rel (0) target = $region9
  $region8: #{my_cnn_forward.3} parent=0 // pred_region
    _
  $region9: #{my_cnn_forward.3} parent=0 // pred_fallthru
    _
  // Predicated region
  $region10: #{my_cnn_forward.3} parent=0 // pred_check
    _
  $region11: #{my_cnn_forward.3} parent=0 // pred_check_branch
    %13 = sbr.rel (0) target = $region13
  $region12: #{my_cnn_forward.3} parent=0 // pred_region
    _
  $region13: #{my_cnn_forward.3} parent=0 // pred_fallthru
    _
  %v14 = vld [vmem:[%s0] sm:$0xff]
  %v15 = vld [vmem:[%s0 + $0x8] sm:$0xff]
  %v16 = vld [vmem:[%s0 + $0x10] sm:$0xff]
  %v17 = vld [vmem:[%s0 + $0x18] sm:$0xff]
  %v18 = vld [vmem:[%s0 + $0x20] sm:$0xff]
  %v19 = vld [vmem:[%s0 + $0x28] sm:$0xff]
  %v20 = vld [vmem:[%s0 + $0x30] sm:$0xff]
  %v21 = vld [vmem:[%s0 + $0x38] sm:$0xff]
  %v22 = vld [vmem:[%s0 + $0x40] sm:$0xff]
  %v23 = vld [vmem:[%s0 + $0x48] sm:$0xff]
  %v24 = vld [vmem:[%s0 + $0x50] sm:$0xff]
  %v25 = vld [vmem:[%s0 + $0x58] sm:$0xff]
  %v26 = vld [vmem:[%s0 + $0x60] sm:$0xff]
  %v27 = vld [vmem:[%s0 + $0x68] sm:$0xff]
  %v28 = vld [vmem:[%s0 + $0x70] sm:$0xff]
  %v29 = vld [vmem:[%s0 + $0x78] sm:$0xff]
  %v30 = vld [vmem:[%s0 + $0x80] sm:$0xff]
  %v31 = vld [vmem:[%s0 + $0x88] sm:$0xff]
  %v32 = vld [vmem:[%s0 + $0x90] sm:$0xff]
  %v33 = vld [vmem:[%s0 + $0x98] sm:$0xff]
  %v34 = vld [vmem:[%s0 + $0xa0] sm:$0xff]
  %v35 = vld [vmem:[%s0 + $0xa8] sm:$0xff]
  %v36 = vld [vmem:[%s0 + $0xb0] sm:$0xff]
  %v37 = vld [vmem:[%s0 + $0xb8] sm:$0xff]
  %v38 = vld [vmem:[%s0 + $0xc0] sm:$0xff]
  %v39 = vld [vmem:[%s0 + $0xc8] sm:$0xff]
  %v40 = vld [vmem:[%s0 + $0xd0] sm:$0xff]
  %v41 = vld [vmem:[%s0 + $0xd8] sm:$0xff]
  %v42 = vld [vmem:[%s0 + $0xe0] sm:$0xff]
  %v43 = vld [vmem:[%s0 + $0xe8] sm:$0xff]
  %v44 = vld [vmem:[%s0 + $0xf0] sm:$0xff]
  %v45 = vld [vmem:[%s0 + $0xf8] sm:$0xff]
  %v46 = vld [vmem:[%s0 + $0x100] sm:$0xff]
  %v47 = vld [vmem:[%s0 + $0x108] sm:$0xff]
  %v48 = vld [vmem:[%s0 + $0x110] sm:$0xff]
  %v49 = vld [vmem:[%s0 + $0x118] sm:$0xff]
  %v50 = vld [vmem:[%s0 + $0x120] sm:$0xff]
  %v51 = vld [vmem:[%s0 + $0x128] sm:$0xff]
  %v52 = vld [vmem:[%s0 + $0x130] sm:$0xff]
  %v53 = vld [vmem:[%s0 + $0x138] sm:$0xff]
  %v54 = vld [vmem:[%s0 + $0x140] sm:$0xff]
  %v55 = vld [vmem:[%s0 + $0x148] sm:$0xff]
  %v56 = vld [vmem:[%s0 + $0x150] sm:$0xff]
  %v57 = vld [vmem:[%s0 + $0x158] sm:$0xff]
  %v58 = vld [vmem:[%s0 + $0x160] sm:$0xff]
  %v59 = vld [vmem:[%s0 + $0x168] sm:$0xff]
  %v60 = vld [vmem:[%s0 + $0x170] sm:$0xff]
  %v61 = vld [vmem:[%s0 + $0x178] sm:$0xff]
  %v62 = vld [vmem:[%s0 + $0x180] sm:$0xff]
  %v63 = vld [vmem:[%s1] sm:$0xff]
  %v64 = vld [vmem:[%s1 + $0x8] sm:$0x1]
  %v65 = vld [vmem:[%s2] sm:$0x1]
  %v67 = vperm.slane %v65, 0
  %vm69 = vcmask 72704
  %v71 = vsel %vm69, %v14, 0
  %v74 = vsel %vm69, %v15, 0
  %v77 = vsel %vm69, %v16, 0
  %v80 = vsel %vm69, %v17, 0
  %v83 = vsel %vm69, %v18, 0
  %v86 = vsel %vm69, %v19, 0
  %v89 = vsel %vm69, %v20, 0
  %v92 = vsel %vm69, %v21, 0
  %v95 = vsel %vm69, %v22, 0
  %v98 = vsel %vm69, %v23, 0
  %v101 = vsel %vm69, %v24, 0
  %v104 = vsel %vm69, %v25, 0
  %v107 = vsel %vm69, %v26, 0
  %v110 = vsel %vm69, %v27, 0
  %v113 = vsel %vm69, %v28, 0
  %v116 = vsel %vm69, %v29, 0
  %v119 = vsel %vm69, %v30, 0
  %v122 = vsel %vm69, %v31, 0
  %v125 = vsel %vm69, %v32, 0
  %v128 = vsel %vm69, %v33, 0
  %v131 = vsel %vm69, %v34, 0
  %v134 = vsel %vm69, %v35, 0
  %v137 = vsel %vm69, %v36, 0
  %v140 = vsel %vm69, %v37, 0
  %v143 = vsel %vm69, %v38, 0
  %v146 = vsel %vm69, %v39, 0
  %v149 = vsel %vm69, %v40, 0
  %v152 = vsel %vm69, %v41, 0
  %v155 = vsel %vm69, %v42, 0
  %v158 = vsel %vm69, %v43, 0
  %v161 = vsel %vm69, %v44, 0
  %v164 = vsel %vm69, %v45, 0
  %v167 = vsel %vm69, %v46, 0
  %v170 = vsel %vm69, %v47, 0
  %v173 = vsel %vm69, %v48, 0
  %v176 = vsel %vm69, %v49, 0
  %v179 = vsel %vm69, %v50, 0
  %v182 = vsel %vm69, %v51, 0
  %v185 = vsel %vm69, %v52, 0
  %v188 = vsel %vm69, %v53, 0
  %v191 = vsel %vm69, %v54, 0
  %v194 = vsel %vm69, %v55, 0
  %v197 = vsel %vm69, %v56, 0
  %v200 = vsel %vm69, %v57, 0
  %v203 = vsel %vm69, %v58, 0
  %v206 = vsel %vm69, %v59, 0
  %v209 = vsel %vm69, %v60, 0
  %v212 = vsel %vm69, %v61, 0
  %v215 = vsel %vm69, %v62, 0
  %vm217 = vcmask 1040384
  %v219 = vsel %vm217, %v64, 0
  %221 = vmatpush.msra.mxu0 0.0
  %222 = vmatpush.msra.mxu0 0.0
  %223 = vmatpush.msra.mxu0 0.0
  %224 = vmatpush.msra.mxu0 0.0
  %225 = vmatpush.msra.mxu0 0.0
  %226 = vmatpush.msra.mxu0 0.0
  %227 = vmatpush.msra.mxu0 0.0
  %228 = vmatpush.msra.mxu0 0.0
  %229 = vmatpush.msra.mxu0 0.0
  %230 = vmatpush.msra.mxu0 0.0
  %231 = vmatpush.msra.mxu0 0.0
  %232 = vmatpush.msra.mxu0 0.0
  %233 = vmatpush.msra.mxu0 0.0
  %234 = vmatpush.msra.mxu0 0.0
  %235 = vmatpush.msra.mxu0 %v219
  %236 = vmatpush.msra.mxu0 %v63
  %237 = vmatmul.f32.gmra.mxu0 %v71
  %v238 = vpop.f32.mrf.mxu0
  %v239 = vadd.f32 %v67, %v238
  %240 = vmatmul.f32.gmra.mxu0 %v74
  %v241 = vpop.f32.mrf.mxu0
  %v242 = vadd.f32 %v67, %v241
  %243 = vmatmul.f32.gmra.mxu0 %v77
  %v244 = vpop.f32.mrf.mxu0
  %v245 = vadd.f32 %v67, %v244
  %246 = vmatmul.f32.gmra.mxu0 %v80
  %v247 = vpop.f32.mrf.mxu0
  %v248 = vadd.f32 %v67, %v247
  %249 = vmatmul.f32.gmra.mxu0 %v83
  %v250 = vpop.f32.mrf.mxu0
  %v251 = vadd.f32 %v67, %v250
  %252 = vmatmul.f32.gmra.mxu0 %v86
  %v253 = vpop.f32.mrf.mxu0
  %v254 = vadd.f32 %v67, %v253
  %255 = vmatmul.f32.gmra.mxu0 %v89
  %v256 = vpop.f32.mrf.mxu0
  %v257 = vadd.f32 %v67, %v256
  %258 = vmatmul.f32.gmra.mxu0 %v92
  %v259 = vpop.f32.mrf.mxu0
  %v260 = vadd.f32 %v67, %v259
  %261 = vmatmul.f32.gmra.mxu0 %v95
  %v262 = vpop.f32.mrf.mxu0
  %v263 = vadd.f32 %v67, %v262
  %264 = vmatmul.f32.gmra.mxu0 %v98
  %v265 = vpop.f32.mrf.mxu0
  %v266 = vadd.f32 %v67, %v265
  %267 = vmatmul.f32.gmra.mxu0 %v101
  %v268 = vpop.f32.mrf.mxu0
  %v269 = vadd.f32 %v67, %v268
  %270 = vmatmul.f32.gmra.mxu0 %v104
  %v271 = vpop.f32.mrf.mxu0
  %v272 = vadd.f32 %v67, %v271
  %273 = vmatmul.f32.gmra.mxu0 %v107
  %v274 = vpop.f32.mrf.mxu0
  %v275 = vadd.f32 %v67, %v274
  %276 = vmatmul.f32.gmra.mxu0 %v110
  %v277 = vpop.f32.mrf.mxu0
  %v278 = vadd.f32 %v67, %v277
  %279 = vmatmul.f32.gmra.mxu0 %v113
  %v280 = vpop.f32.mrf.mxu0
  %v281 = vadd.f32 %v67, %v280
  %282 = vmatmul.f32.gmra.mxu0 %v116
  %v283 = vpop.f32.mrf.mxu0
  %v284 = vadd.f32 %v67, %v283
  %285 = vmatmul.f32.gmra.mxu0 %v119
  %v286 = vpop.f32.mrf.mxu0
  %v287 = vadd.f32 %v67, %v286
  %288 = vmatmul.f32.gmra.mxu0 %v122
  %v289 = vpop.f32.mrf.mxu0
  %v290 = vadd.f32 %v67, %v289
  %291 = vmatmul.f32.gmra.mxu0 %v125
  %v292 = vpop.f32.mrf.mxu0
  %v293 = vadd.f32 %v67, %v292
  %294 = vmatmul.f32.gmra.mxu0 %v128
  %v295 = vpop.f32.mrf.mxu0
  %v296 = vadd.f32 %v67, %v295
  %297 = vmatmul.f32.gmra.mxu0 %v131
  %v298 = vpop.f32.mrf.mxu0
  %v299 = vadd.f32 %v67, %v298
  %300 = vmatmul.f32.gmra.mxu0 %v134
  %v301 = vpop.f32.mrf.mxu0
  %v302 = vadd.f32 %v67, %v301
  %303 = vmatmul.f32.gmra.mxu0 %v137
  %v304 = vpop.f32.mrf.mxu0
  %v305 = vadd.f32 %v67, %v304
  %306 = vmatmul.f32.gmra.mxu0 %v140
  %v307 = vpop.f32.mrf.mxu0
  %v308 = vadd.f32 %v67, %v307
  %309 = vmatmul.f32.gmra.mxu0 %v143
  %v310 = vpop.f32.mrf.mxu0
  %v311 = vadd.f32 %v67, %v310
  %312 = vmatmul.f32.gmra.mxu0 %v146
  %v313 = vpop.f32.mrf.mxu0
  %v314 = vadd.f32 %v67, %v313
  %315 = vmatmul.f32.gmra.mxu0 %v149
  %v316 = vpop.f32.mrf.mxu0
  %v317 = vadd.f32 %v67, %v316
  %318 = vmatmul.f32.gmra.mxu0 %v152
  %v319 = vpop.f32.mrf.mxu0
  %v320 = vadd.f32 %v67, %v319
  %321 = vmatmul.f32.gmra.mxu0 %v155
  %v322 = vpop.f32.mrf.mxu0
  %v323 = vadd.f32 %v67, %v322
  %324 = vmatmul.f32.gmra.mxu0 %v158
  %v325 = vpop.f32.mrf.mxu0
  %v326 = vadd.f32 %v67, %v325
  %327 = vmatmul.f32.gmra.mxu0 %v161
  %v328 = vpop.f32.mrf.mxu0
  %v329 = vadd.f32 %v67, %v328
  %330 = vmatmul.f32.gmra.mxu0 %v164
  %v331 = vpop.f32.mrf.mxu0
  %v332 = vadd.f32 %v67, %v331
  %333 = vmatmul.f32.gmra.mxu0 %v167
  %v334 = vpop.f32.mrf.mxu0
  %v335 = vadd.f32 %v67, %v334
  %336 = vmatmul.f32.gmra.mxu0 %v170
  %v337 = vpop.f32.mrf.mxu0
  %v338 = vadd.f32 %v67, %v337
  %339 = vmatmul.f32.gmra.mxu0 %v173
  %v340 = vpop.f32.mrf.mxu0
  %v341 = vadd.f32 %v67, %v340
  %342 = vmatmul.f32.gmra.mxu0 %v176
  %v343 = vpop.f32.mrf.mxu0
  %v344 = vadd.f32 %v67, %v343
  %345 = vmatmul.f32.gmra.mxu0 %v179
  %v346 = vpop.f32.mrf.mxu0
  %v347 = vadd.f32 %v67, %v346
  %348 = vmatmul.f32.gmra.mxu0 %v182
  %v349 = vpop.f32.mrf.mxu0
  %v350 = vadd.f32 %v67, %v349
  %351 = vmatmul.f32.gmra.mxu0 %v185
  %v352 = vpop.f32.mrf.mxu0
  %v353 = vadd.f32 %v67, %v352
  %354 = vmatmul.f32.gmra.mxu0 %v188
  %v355 = vpop.f32.mrf.mxu0
  %v356 = vadd.f32 %v67, %v355
  %357 = vmatmul.f32.gmra.mxu0 %v191
  %v358 = vpop.f32.mrf.mxu0
  %v359 = vadd.f32 %v67, %v358
  %360 = vmatmul.f32.gmra.mxu0 %v194
  %v361 = vpop.f32.mrf.mxu0
  %v362 = vadd.f32 %v67, %v361
  %363 = vmatmul.f32.gmra.mxu0 %v197
  %v364 = vpop.f32.mrf.mxu0
  %v365 = vadd.f32 %v67, %v364
  %366 = vmatmul.f32.gmra.mxu0 %v200
  %v367 = vpop.f32.mrf.mxu0
  %v368 = vadd.f32 %v67, %v367
  %369 = vmatmul.f32.gmra.mxu0 %v203
  %v370 = vpop.f32.mrf.mxu0
  %v371 = vadd.f32 %v67, %v370
  %372 = vmatmul.f32.gmra.mxu0 %v206
  %v373 = vpop.f32.mrf.mxu0
  %v374 = vadd.f32 %v67, %v373
  %375 = vmatmul.f32.gmra.mxu0 %v209
  %v376 = vpop.f32.mrf.mxu0
  %v377 = vadd.f32 %v67, %v376
  %378 = vmatmul.f32.gmra.mxu0 %v212
  %v379 = vpop.f32.mrf.mxu0
  %v380 = vadd.f32 %v67, %v379
  %381 = vmatmul.f32.gmra.mxu0 %v215
  %v382 = vpop.f32.mrf.mxu0
  %v383 = vadd.f32 %v67, %v382
  %384 = vdwg.mxu0
  %v385 = vmax.f32 %v239, 0.0
  %v386 = vmax.f32 %v242, 0.0
  %v387 = vmax.f32 %v245, 0.0
  %v388 = vmax.f32 %v248, 0.0
  %v389 = vmax.f32 %v251, 0.0
  %v390 = vmax.f32 %v254, 0.0
  %v391 = vmax.f32 %v257, 0.0
  %v392 = vmax.f32 %v260, 0.0
  %v393 = vmax.f32 %v263, 0.0
  %v394 = vmax.f32 %v266, 0.0
  %v395 = vmax.f32 %v269, 0.0
  %v396 = vmax.f32 %v272, 0.0
  %v397 = vmax.f32 %v275, 0.0
  %v398 = vmax.f32 %v278, 0.0
  %v399 = vmax.f32 %v281, 0.0
  %v400 = vmax.f32 %v284, 0.0
  %v401 = vmax.f32 %v287, 0.0
  %v402 = vmax.f32 %v290, 0.0
  %v403 = vmax.f32 %v293, 0.0
  %v404 = vmax.f32 %v296, 0.0
  %v405 = vmax.f32 %v299, 0.0
  %v406 = vmax.f32 %v302, 0.0
  %v407 = vmax.f32 %v305, 0.0
  %v408 = vmax.f32 %v308, 0.0
  %v409 = vmax.f32 %v311, 0.0
  %v410 = vmax.f32 %v314, 0.0
  %v411 = vmax.f32 %v317, 0.0
  %v412 = vmax.f32 %v320, 0.0
  %v413 = vmax.f32 %v323, 0.0
  %v414 = vmax.f32 %v326, 0.0
  %v415 = vmax.f32 %v329, 0.0
  %v416 = vmax.f32 %v332, 0.0
  %v417 = vmax.f32 %v335, 0.0
  %v418 = vmax.f32 %v338, 0.0
  %v419 = vmax.f32 %v341, 0.0
  %v420 = vmax.f32 %v344, 0.0
  %v421 = vmax.f32 %v347, 0.0
  %v422 = vmax.f32 %v350, 0.0
  %v423 = vmax.f32 %v353, 0.0
  %v424 = vmax.f32 %v356, 0.0
  %v425 = vmax.f32 %v359, 0.0
  %v426 = vmax.f32 %v362, 0.0
  %v427 = vmax.f32 %v365, 0.0
  %v428 = vmax.f32 %v368, 0.0
  %v429 = vmax.f32 %v371, 0.0
  %v430 = vmax.f32 %v374, 0.0
  %v431 = vmax.f32 %v377, 0.0
  %v432 = vmax.f32 %v380, 0.0
  %v433 = vmax.f32 %v383, 0.0
  %s434 = scalar_lea.vmem %s0, 392
  %v435 = vld [vmem:[%s434] sm:$0xff]
  %v436 = vld [vmem:[%s434 + $0x8] sm:$0xff]
  %v437 = vld [vmem:[%s434 + $0x10] sm:$0xff]
  %v438 = vld [vmem:[%s434 + $0x18] sm:$0xff]
  %v439 = vld [vmem:[%s434 + $0x20] sm:$0xff]
  %v440 = vld [vmem:[%s434 + $0x28] sm:$0xff]
  %v441 = vld [vmem:[%s434 + $0x30] sm:$0xff]
  %v442 = vld [vmem:[%s434 + $0x38] sm:$0xff]
  %v443 = vld [vmem:[%s434 + $0x40] sm:$0xff]
  %v444 = vld [vmem:[%s434 + $0x48] sm:$0xff]
  %v445 = vld [vmem:[%s434 + $0x50] sm:$0xff]
  %v446 = vld [vmem:[%s434 + $0x58] sm:$0xff]
  %v447 = vld [vmem:[%s434 + $0x60] sm:$0xff]
  %v448 = vld [vmem:[%s434 + $0x68] sm:$0xff]
  %v449 = vld [vmem:[%s434 + $0x70] sm:$0xff]
  %v450 = vld [vmem:[%s434 + $0x78] sm:$0xff]
  %v451 = vld [vmem:[%s434 + $0x80] sm:$0xff]
  %v452 = vld [vmem:[%s434 + $0x88] sm:$0xff]
  %v453 = vld [vmem:[%s434 + $0x90] sm:$0xff]
  %v454 = vld [vmem:[%s434 + $0x98] sm:$0xff]
  %v455 = vld [vmem:[%s434 + $0xa0] sm:$0xff]
  %v456 = vld [vmem:[%s434 + $0xa8] sm:$0xff]
  %v457 = vld [vmem:[%s434 + $0xb0] sm:$0xff]
  %v458 = vld [vmem:[%s434 + $0xb8] sm:$0xff]
  %v459 = vld [vmem:[%s434 + $0xc0] sm:$0xff]
  %v460 = vld [vmem:[%s434 + $0xc8] sm:$0xff]
  %v461 = vld [vmem:[%s434 + $0xd0] sm:$0xff]
  %v462 = vld [vmem:[%s434 + $0xd8] sm:$0xff]
  %v463 = vld [vmem:[%s434 + $0xe0] sm:$0xff]
  %v464 = vld [vmem:[%s434 + $0xe8] sm:$0xff]
  %v465 = vld [vmem:[%s434 + $0xf0] sm:$0xff]
  %v466 = vld [vmem:[%s434 + $0xf8] sm:$0xff]
  %v467 = vld [vmem:[%s434 + $0x100] sm:$0xff]
  %v468 = vld [vmem:[%s434 + $0x108] sm:$0xff]
  %v469 = vld [vmem:[%s434 + $0x110] sm:$0xff]
  %v470 = vld [vmem:[%s434 + $0x118] sm:$0xff]
  %v471 = vld [vmem:[%s434 + $0x120] sm:$0xff]
  %v472 = vld [vmem:[%s434 + $0x128] sm:$0xff]
  %v473 = vld [vmem:[%s434 + $0x130] sm:$0xff]
  %v474 = vld [vmem:[%s434 + $0x138] sm:$0xff]
  %v475 = vld [vmem:[%s434 + $0x140] sm:$0xff]
  %v476 = vld [vmem:[%s434 + $0x148] sm:$0xff]
  %v477 = vld [vmem:[%s434 + $0x150] sm:$0xff]
  %v478 = vld [vmem:[%s434 + $0x158] sm:$0xff]
  %v479 = vld [vmem:[%s434 + $0x160] sm:$0xff]
  %v480 = vld [vmem:[%s434 + $0x168] sm:$0xff]
  %v481 = vld [vmem:[%s434 + $0x170] sm:$0xff]
  %v482 = vld [vmem:[%s434 + $0x178] sm:$0xff]
  %v483 = vld [vmem:[%s434 + $0x180] sm:$0xff]
  %v485 = vsel %vm69, %v435, 0
  %v488 = vsel %vm69, %v436, 0
  %v491 = vsel %vm69, %v437, 0
  %v494 = vsel %vm69, %v438, 0
  %v497 = vsel %vm69, %v439, 0
  %v500 = vsel %vm69, %v440, 0
  %v503 = vsel %vm69, %v441, 0
  %v506 = vsel %vm69, %v442, 0
  %v509 = vsel %vm69, %v443, 0
  %v512 = vsel %vm69, %v444, 0
  %v515 = vsel %vm69, %v445, 0
  %v518 = vsel %vm69, %v446, 0
  %v521 = vsel %vm69, %v447, 0
  %v524 = vsel %vm69, %v448, 0
  %v527 = vsel %vm69, %v449, 0
  %v530 = vsel %vm69, %v450, 0
  %v533 = vsel %vm69, %v451, 0
  %v536 = vsel %vm69, %v452, 0
  %v539 = vsel %vm69, %v453, 0
  %v542 = vsel %vm69, %v454, 0
  %v545 = vsel %vm69, %v455, 0
  %v548 = vsel %vm69, %v456, 0
  %v551 = vsel %vm69, %v457, 0
  %v554 = vsel %vm69, %v458, 0
  %v557 = vsel %vm69, %v459, 0
  %v560 = vsel %vm69, %v460, 0
  %v563 = vsel %vm69, %v461, 0
  %v566 = vsel %vm69, %v462, 0
  %v569 = vsel %vm69, %v463, 0
  %v572 = vsel %vm69, %v464, 0
  %v575 = vsel %vm69, %v465, 0
  %v578 = vsel %vm69, %v466, 0
  %v581 = vsel %vm69, %v467, 0
  %v584 = vsel %vm69, %v468, 0
  %v587 = vsel %vm69, %v469, 0
  %v590 = vsel %vm69, %v470, 0
  %v593 = vsel %vm69, %v471, 0
  %v596 = vsel %vm69, %v472, 0
  %v599 = vsel %vm69, %v473, 0
  %v602 = vsel %vm69, %v474, 0
  %v605 = vsel %vm69, %v475, 0
  %v608 = vsel %vm69, %v476, 0
  %v611 = vsel %vm69, %v477, 0
  %v614 = vsel %vm69, %v478, 0
  %v617 = vsel %vm69, %v479, 0
  %v620 = vsel %vm69, %v480, 0
  %v623 = vsel %vm69, %v481, 0
  %v626 = vsel %vm69, %v482, 0
  %v629 = vsel %vm69, %v483, 0
  %631 = vmatpush.msra.mxu0 0.0
  %632 = vmatpush.msra.mxu0 0.0
  %633 = vmatpush.msra.mxu0 0.0
  %634 = vmatpush.msra.mxu0 0.0
  %635 = vmatpush.msra.mxu0 0.0
  %636 = vmatpush.msra.mxu0 0.0
  %637 = vmatpush.msra.mxu0 0.0
  %638 = vmatpush.msra.mxu0 0.0
  %639 = vmatpush.msra.mxu0 0.0
  %640 = vmatpush.msra.mxu0 0.0
  %641 = vmatpush.msra.mxu0 0.0
  %642 = vmatpush.msra.mxu0 0.0
  %643 = vmatpush.msra.mxu0 0.0
  %644 = vmatpush.msra.mxu0 0.0
  %645 = vmatpush.msra.mxu0 %v219
  %646 = vmatpush.msra.mxu0 %v63
  %647 = vmatmul.f32.gmra.mxu0 %v485
  %v648 = vpop.f32.mrf.mxu0
  %v649 = vadd.f32 %v67, %v648
  %650 = vmatmul.f32.gmra.mxu0 %v488
  %v651 = vpop.f32.mrf.mxu0
  %v652 = vadd.f32 %v67, %v651
  %653 = vmatmul.f32.gmra.mxu0 %v491
  %v654 = vpop.f32.mrf.mxu0
  %v655 = vadd.f32 %v67, %v654
  %656 = vmatmul.f32.gmra.mxu0 %v494
  %v657 = vpop.f32.mrf.mxu0
  %v658 = vadd.f32 %v67, %v657
  %659 = vmatmul.f32.gmra.mxu0 %v497
  %v660 = vpop.f32.mrf.mxu0
  %v661 = vadd.f32 %v67, %v660
  %662 = vmatmul.f32.gmra.mxu0 %v500
  %v663 = vpop.f32.mrf.mxu0
  %v664 = vadd.f32 %v67, %v663
  %665 = vmatmul.f32.gmra.mxu0 %v503
  %v666 = vpop.f32.mrf.mxu0
  %v667 = vadd.f32 %v67, %v666
  %668 = vmatmul.f32.gmra.mxu0 %v506
  %v669 = vpop.f32.mrf.mxu0
  %v670 = vadd.f32 %v67, %v669
  %671 = vmatmul.f32.gmra.mxu0 %v509
  %v672 = vpop.f32.mrf.mxu0
  %v673 = vadd.f32 %v67, %v672
  %674 = vmatmul.f32.gmra.mxu0 %v512
  %v675 = vpop.f32.mrf.mxu0
  %v676 = vadd.f32 %v67, %v675
  %677 = vmatmul.f32.gmra.mxu0 %v515
  %v678 = vpop.f32.mrf.mxu0
  %v679 = vadd.f32 %v67, %v678
  %680 = vmatmul.f32.gmra.mxu0 %v518
  %v681 = vpop.f32.mrf.mxu0
  %v682 = vadd.f32 %v67, %v681
  %683 = vmatmul.f32.gmra.mxu0 %v521
  %v684 = vpop.f32.mrf.mxu0
  %v685 = vadd.f32 %v67, %v684
  %686 = vmatmul.f32.gmra.mxu0 %v524
  %v687 = vpop.f32.mrf.mxu0
  %v688 = vadd.f32 %v67, %v687
  %689 = vmatmul.f32.gmra.mxu0 %v527
  %v690 = vpop.f32.mrf.mxu0
  %v691 = vadd.f32 %v67, %v690
  %692 = vmatmul.f32.gmra.mxu0 %v530
  %v693 = vpop.f32.mrf.mxu0
  %v694 = vadd.f32 %v67, %v693
  %695 = vmatmul.f32.gmra.mxu0 %v533
  %v696 = vpop.f32.mrf.mxu0
  %v697 = vadd.f32 %v67, %v696
  %698 = vmatmul.f32.gmra.mxu0 %v536
  %v699 = vpop.f32.mrf.mxu0
  %v700 = vadd.f32 %v67, %v699
  %701 = vmatmul.f32.gmra.mxu0 %v539
  %v702 = vpop.f32.mrf.mxu0
  %v703 = vadd.f32 %v67, %v702
  %704 = vmatmul.f32.gmra.mxu0 %v542
  %v705 = vpop.f32.mrf.mxu0
  %v706 = vadd.f32 %v67, %v705
  %707 = vmatmul.f32.gmra.mxu0 %v545
  %v708 = vpop.f32.mrf.mxu0
  %v709 = vadd.f32 %v67, %v708
  %710 = vmatmul.f32.gmra.mxu0 %v548
  %v711 = vpop.f32.mrf.mxu0
  %v712 = vadd.f32 %v67, %v711
  %713 = vmatmul.f32.gmra.mxu0 %v551
  %v714 = vpop.f32.mrf.mxu0
  %v715 = vadd.f32 %v67, %v714
  %716 = vmatmul.f32.gmra.mxu0 %v554
  %v717 = vpop.f32.mrf.mxu0
  %v718 = vadd.f32 %v67, %v717
  %719 = vmatmul.f32.gmra.mxu0 %v557
  %v720 = vpop.f32.mrf.mxu0
  %v721 = vadd.f32 %v67, %v720
  %722 = vmatmul.f32.gmra.mxu0 %v560
  %v723 = vpop.f32.mrf.mxu0
  %v724 = vadd.f32 %v67, %v723
  %725 = vmatmul.f32.gmra.mxu0 %v563
  %v726 = vpop.f32.mrf.mxu0
  %v727 = vadd.f32 %v67, %v726
  %728 = vmatmul.f32.gmra.mxu0 %v566
  %v729 = vpop.f32.mrf.mxu0
  %v730 = vadd.f32 %v67, %v729
  %731 = vmatmul.f32.gmra.mxu0 %v569
  %v732 = vpop.f32.mrf.mxu0
  %v733 = vadd.f32 %v67, %v732
  %734 = vmatmul.f32.gmra.mxu0 %v572
  %v735 = vpop.f32.mrf.mxu0
  %v736 = vadd.f32 %v67, %v735
  %737 = vmatmul.f32.gmra.mxu0 %v575
  %v738 = vpop.f32.mrf.mxu0
  %v739 = vadd.f32 %v67, %v738
  %740 = vmatmul.f32.gmra.mxu0 %v578
  %v741 = vpop.f32.mrf.mxu0
  %v742 = vadd.f32 %v67, %v741
  %743 = vmatmul.f32.gmra.mxu0 %v581
  %v744 = vpop.f32.mrf.mxu0
  %v745 = vadd.f32 %v67, %v744
  %746 = vmatmul.f32.gmra.mxu0 %v584
  %v747 = vpop.f32.mrf.mxu0
  %v748 = vadd.f32 %v67, %v747
  %749 = vmatmul.f32.gmra.mxu0 %v587
  %v750 = vpop.f32.mrf.mxu0
  %v751 = vadd.f32 %v67, %v750
  %752 = vmatmul.f32.gmra.mxu0 %v590
  %v753 = vpop.f32.mrf.mxu0
  %v754 = vadd.f32 %v67, %v753
  %755 = vmatmul.f32.gmra.mxu0 %v593
  %v756 = vpop.f32.mrf.mxu0
  %v757 = vadd.f32 %v67, %v756
  %758 = vmatmul.f32.gmra.mxu0 %v596
  %v759 = vpop.f32.mrf.mxu0
  %v760 = vadd.f32 %v67, %v759
  %761 = vmatmul.f32.gmra.mxu0 %v599
  %v762 = vpop.f32.mrf.mxu0
  %v763 = vadd.f32 %v67, %v762
  %764 = vmatmul.f32.gmra.mxu0 %v602
  %v765 = vpop.f32.mrf.mxu0
  %v766 = vadd.f32 %v67, %v765
  %767 = vmatmul.f32.gmra.mxu0 %v605
  %v768 = vpop.f32.mrf.mxu0
  %v769 = vadd.f32 %v67, %v768
  %770 = vmatmul.f32.gmra.mxu0 %v608
  %v771 = vpop.f32.mrf.mxu0
  %v772 = vadd.f32 %v67, %v771
  %773 = vmatmul.f32.gmra.mxu0 %v611
  %v774 = vpop.f32.mrf.mxu0
  %v775 = vadd.f32 %v67, %v774
  %776 = vmatmul.f32.gmra.mxu0 %v614
  %v777 = vpop.f32.mrf.mxu0
  %v778 = vadd.f32 %v67, %v777
  %779 = vmatmul.f32.gmra.mxu0 %v617
  %v780 = vpop.f32.mrf.mxu0
  %v781 = vadd.f32 %v67, %v780
  %782 = vmatmul.f32.gmra.mxu0 %v620
  %v783 = vpop.f32.mrf.mxu0
  %v784 = vadd.f32 %v67, %v783
  %785 = vmatmul.f32.gmra.mxu0 %v623
  %v786 = vpop.f32.mrf.mxu0
  %v787 = vadd.f32 %v67, %v786
  %788 = vmatmul.f32.gmra.mxu0 %v626
  %v789 = vpop.f32.mrf.mxu0
  %v790 = vadd.f32 %v67, %v789
  %791 = vmatmul.f32.gmra.mxu0 %v629
  %v792 = vpop.f32.mrf.mxu0
  %v793 = vadd.f32 %v67, %v792
  %794 = vdwg.mxu0
  %v795 = vmax.f32 %v649, 0.0
  %v796 = vmax.f32 %v652, 0.0
  %v797 = vmax.f32 %v655, 0.0
  %v798 = vmax.f32 %v658, 0.0
  %v799 = vmax.f32 %v661, 0.0
  %v800 = vmax.f32 %v664, 0.0
  %v801 = vmax.f32 %v667, 0.0
  %v802 = vmax.f32 %v670, 0.0
  %v803 = vmax.f32 %v673, 0.0
  %v804 = vmax.f32 %v676, 0.0
  %v805 = vmax.f32 %v679, 0.0
  %v806 = vmax.f32 %v682, 0.0
  %v807 = vmax.f32 %v685, 0.0
  %v808 = vmax.f32 %v688, 0.0
  %v809 = vmax.f32 %v691, 0.0
  %v810 = vmax.f32 %v694, 0.0
  %v811 = vmax.f32 %v697, 0.0
  %v812 = vmax.f32 %v700, 0.0
  %v813 = vmax.f32 %v703, 0.0
  %v814 = vmax.f32 %v706, 0.0
  %v815 = vmax.f32 %v709, 0.0
  %v816 = vmax.f32 %v712, 0.0
  %v817 = vmax.f32 %v715, 0.0
  %v818 = vmax.f32 %v718, 0.0
  %v819 = vmax.f32 %v721, 0.0
  %v820 = vmax.f32 %v724, 0.0
  %v821 = vmax.f32 %v727, 0.0
  %v822 = vmax.f32 %v730, 0.0
  %v823 = vmax.f32 %v733, 0.0
  %v824 = vmax.f32 %v736, 0.0
  %v825 = vmax.f32 %v739, 0.0
  %v826 = vmax.f32 %v742, 0.0
  %v827 = vmax.f32 %v745, 0.0
  %v828 = vmax.f32 %v748, 0.0
  %v829 = vmax.f32 %v751, 0.0
  %v830 = vmax.f32 %v754, 0.0
  %v831 = vmax.f32 %v757, 0.0
  %v832 = vmax.f32 %v760, 0.0
  %v833 = vmax.f32 %v763, 0.0
  %v834 = vmax.f32 %v766, 0.0
  %v835 = vmax.f32 %v769, 0.0
  %v836 = vmax.f32 %v772, 0.0
  %v837 = vmax.f32 %v775, 0.0
  %v838 = vmax.f32 %v778, 0.0
  %v839 = vmax.f32 %v781, 0.0
  %v840 = vmax.f32 %v784, 0.0
  %v841 = vmax.f32 %v787, 0.0
  %v842 = vmax.f32 %v790, 0.0
  %v843 = vmax.f32 %v793, 0.0
  %v844 = vmax.f32 %v385, %v795
  %v845 = vmax.f32 %v386, %v796
  %v846 = vmax.f32 %v387, %v797
  %v847 = vmax.f32 %v388, %v798
  %v848 = vmax.f32 %v389, %v799
  %v849 = vmax.f32 %v390, %v800
  %v850 = vmax.f32 %v391, %v801
  %v851 = vmax.f32 %v392, %v802
  %v852 = vmax.f32 %v393, %v803
  %v853 = vmax.f32 %v394, %v804
  %v854 = vmax.f32 %v395, %v805
  %v855 = vmax.f32 %v396, %v806
  %v856 = vmax.f32 %v397, %v807
  %v857 = vmax.f32 %v398, %v808
  %v858 = vmax.f32 %v399, %v809
  %v859 = vmax.f32 %v400, %v810
  %v860 = vmax.f32 %v401, %v811
  %v861 = vmax.f32 %v402, %v812
  %v862 = vmax.f32 %v403, %v813
  %v863 = vmax.f32 %v404, %v814
  %v864 = vmax.f32 %v405, %v815
  %v865 = vmax.f32 %v406, %v816
  %v866 = vmax.f32 %v407, %v817
  %v867 = vmax.f32 %v408, %v818
  %v868 = vmax.f32 %v409, %v819
  %v869 = vmax.f32 %v410, %v820
  %v870 = vmax.f32 %v411, %v821
  %v871 = vmax.f32 %v412, %v822
  %v872 = vmax.f32 %v413, %v823
  %v873 = vmax.f32 %v414, %v824
  %v874 = vmax.f32 %v415, %v825
  %v875 = vmax.f32 %v416, %v826
  %v876 = vmax.f32 %v417, %v827
  %v877 = vmax.f32 %v418, %v828
  %v878 = vmax.f32 %v419, %v829
  %v879 = vmax.f32 %v420, %v830
  %v880 = vmax.f32 %v421, %v831
  %v881 = vmax.f32 %v422, %v832
  %v882 = vmax.f32 %v423, %v833
  %v883 = vmax.f32 %v424, %v834
  %v884 = vmax.f32 %v425, %v835
  %v885 = vmax.f32 %v426, %v836
  %v886 = vmax.f32 %v427, %v837
  %v887 = vmax.f32 %v428, %v838
  %v888 = vmax.f32 %v429, %v839
  %v889 = vmax.f32 %v430, %v840
  %v890 = vmax.f32 %v431, %v841
  %v891 = vmax.f32 %v432, %v842
  %v892 = vmax.f32 %v433, %v843
  %s893 = scalar_lea.vmem %s0, 784
  %v894 = vld [vmem:[%s893] sm:$0xff]
  %v895 = vld [vmem:[%s893 + $0x8] sm:$0xff]
  %v896 = vld [vmem:[%s893 + $0x10] sm:$0xff]
  %v897 = vld [vmem:[%s893 + $0x18] sm:$0xff]
  %v898 = vld [vmem:[%s893 + $0x20] sm:$0xff]
  %v899 = vld [vmem:[%s893 + $0x28] sm:$0xff]
  %v900 = vld [vmem:[%s893 + $0x30] sm:$0xff]
  %v901 = vld [vmem:[%s893 + $0x38] sm:$0xff]
  %v902 = vld [vmem:[%s893 + $0x40] sm:$0xff]
  %v903 = vld [vmem:[%s893 + $0x48] sm:$0xff]
  %v904 = vld [vmem:[%s893 + $0x50] sm:$0xff]
  %v905 = vld [vmem:[%s893 + $0x58] sm:$0xff]
  %v906 = vld [vmem:[%s893 + $0x60] sm:$0xff]
  %v907 = vld [vmem:[%s893 + $0x68] sm:$0xff]
  %v908 = vld [vmem:[%s893 + $0x70] sm:$0xff]
  %v909 = vld [vmem:[%s893 + $0x78] sm:$0xff]
  %v910 = vld [vmem:[%s893 + $0x80] sm:$0xff]
  %v911 = vld [vmem:[%s893 + $0x88] sm:$0xff]
  %v912 = vld [vmem:[%s893 + $0x90] sm:$0xff]
  %v913 = vld [vmem:[%s893 + $0x98] sm:$0xff]
  %v914 = vld [vmem:[%s893 + $0xa0] sm:$0xff]
  %v915 = vld [vmem:[%s893 + $0xa8] sm:$0xff]
  %v916 = vld [vmem:[%s893 + $0xb0] sm:$0xff]
  %v917 = vld [vmem:[%s893 + $0xb8] sm:$0xff]
  %v918 = vld [vmem:[%s893 + $0xc0] sm:$0xff]
  %v919 = vld [vmem:[%s893 + $0xc8] sm:$0xff]
  %v920 = vld [vmem:[%s893 + $0xd0] sm:$0xff]
  %v921 = vld [vmem:[%s893 + $0xd8] sm:$0xff]
  %v922 = vld [vmem:[%s893 + $0xe0] sm:$0xff]
  %v923 = vld [vmem:[%s893 + $0xe8] sm:$0xff]
  %v924 = vld [vmem:[%s893 + $0xf0] sm:$0xff]
  %v925 = vld [vmem:[%s893 + $0xf8] sm:$0xff]
  %v926 = vld [vmem:[%s893 + $0x100] sm:$0xff]
  %v927 = vld [vmem:[%s893 + $0x108] sm:$0xff]
  %v928 = vld [vmem:[%s893 + $0x110] sm:$0xff]
  %v929 = vld [vmem:[%s893 + $0x118] sm:$0xff]
  %v930 = vld [vmem:[%s893 + $0x120] sm:$0xff]
  %v931 = vld [vmem:[%s893 + $0x128] sm:$0xff]
  %v932 = vld [vmem:[%s893 + $0x130] sm:$0xff]
  %v933 = vld [vmem:[%s893 + $0x138] sm:$0xff]
  %v934 = vld [vmem:[%s893 + $0x140] sm:$0xff]
  %v935 = vld [vmem:[%s893 + $0x148] sm:$0xff]
  %v936 = vld [vmem:[%s893 + $0x150] sm:$0xff]
  %v937 = vld [vmem:[%s893 + $0x158] sm:$0xff]
  %v938 = vld [vmem:[%s893 + $0x160] sm:$0xff]
  %v939 = vld [vmem:[%s893 + $0x168] sm:$0xff]
  %v940 = vld [vmem:[%s893 + $0x170] sm:$0xff]
  %v941 = vld [vmem:[%s893 + $0x178] sm:$0xff]
  %v942 = vld [vmem:[%s893 + $0x180] sm:$0xff]
  %v944 = vsel %vm69, %v894, 0
  %v947 = vsel %vm69, %v895, 0
  %v950 = vsel %vm69, %v896, 0
  %v953 = vsel %vm69, %v897, 0
  %v956 = vsel %vm69, %v898, 0
  %v959 = vsel %vm69, %v899, 0
  %v962 = vsel %vm69, %v900, 0
  %v965 = vsel %vm69, %v901, 0
  %v968 = vsel %vm69, %v902, 0
  %v971 = vsel %vm69, %v903, 0
  %v974 = vsel %vm69, %v904, 0
  %v977 = vsel %vm69, %v905, 0
  %v980 = vsel %vm69, %v906, 0
  %v983 = vsel %vm69, %v907, 0
  %v986 = vsel %vm69, %v908, 0
  %v989 = vsel %vm69, %v909, 0
  %v992 = vsel %vm69, %v910, 0
  %v995 = vsel %vm69, %v911, 0
  %v998 = vsel %vm69, %v912, 0
  %v1001 = vsel %vm69, %v913, 0
  %v1004 = vsel %vm69, %v914, 0
  %v1007 = vsel %vm69, %v915, 0
  %v1010 = vsel %vm69, %v916, 0
  %v1013 = vsel %vm69, %v917, 0
  %v1016 = vsel %vm69, %v918, 0
  %v1019 = vsel %vm69, %v919, 0
  %v1022 = vsel %vm69, %v920, 0
  %v1025 = vsel %vm69, %v921, 0
  %v1028 = vsel %vm69, %v922, 0
  %v1031 = vsel %vm69, %v923, 0
  %v1034 = vsel %vm69, %v924, 0
  %v1037 = vsel %vm69, %v925, 0
  %v1040 = vsel %vm69, %v926, 0
  %v1043 = vsel %vm69, %v927, 0
  %v1046 = vsel %vm69, %v928, 0
  %v1049 = vsel %vm69, %v929, 0
  %v1052 = vsel %vm69, %v930, 0
  %v1055 = vsel %vm69, %v931, 0
  %v1058 = vsel %vm69, %v932, 0
  %v1061 = vsel %vm69, %v933, 0
  %v1064 = vsel %vm69, %v934, 0
  %v1067 = vsel %vm69, %v935, 0
  %v1070 = vsel %vm69, %v936, 0
  %v1073 = vsel %vm69, %v937, 0
  %v1076 = vsel %vm69, %v938, 0
  %v1079 = vsel %vm69, %v939, 0
  %v1082 = vsel %vm69, %v940, 0
  %v1085 = vsel %vm69, %v941, 0
  %v1088 = vsel %vm69, %v942, 0
  %1090 = vmatpush.msra.mxu0 0.0
  %1091 = vmatpush.msra.mxu0 0.0
  %1092 = vmatpush.msra.mxu0 0.0
  %1093 = vmatpush.msra.mxu0 0.0
  %1094 = vmatpush.msra.mxu0 0.0
  %1095 = vmatpush.msra.mxu0 0.0
  %1096 = vmatpush.msra.mxu0 0.0
  %1097 = vmatpush.msra.mxu0 0.0
  %1098 = vmatpush.msra.mxu0 0.0
  %1099 = vmatpush.msra.mxu0 0.0
  %1100 = vmatpush.msra.mxu0 0.0
  %1101 = vmatpush.msra.mxu0 0.0
  %1102 = vmatpush.msra.mxu0 0.0
  %1103 = vmatpush.msra.mxu0 0.0
  %1104 = vmatpush.msra.mxu0 %v219
  %1105 = vmatpush.msra.mxu0 %v63
  %1106 = vmatmul.f32.gmra.mxu0 %v944
  %v1107 = vpop.f32.mrf.mxu0
  %v1108 = vadd.f32 %v67, %v1107
  %1109 = vmatmul.f32.gmra.mxu0 %v947
  %v1110 = vpop.f32.mrf.mxu0
  %v1111 = vadd.f32 %v67, %v1110
  %1112 = vmatmul.f32.gmra.mxu0 %v950
  %v1113 = vpop.f32.mrf.mxu0
  %v1114 = vadd.f32 %v67, %v1113
  %1115 = vmatmul.f32.gmra.mxu0 %v953
  %v1116 = vpop.f32.mrf.mxu0
  %v1117 = vadd.f32 %v67, %v1116
  %1118 = vmatmul.f32.gmra.mxu0 %v956
  %v1119 = vpop.f32.mrf.mxu0
  %v1120 = vadd.f32 %v67, %v1119
  %1121 = vmatmul.f32.gmra.mxu0 %v959
  %v1122 = vpop.f32.mrf.mxu0
  %v1123 = vadd.f32 %v67, %v1122
  %1124 = vmatmul.f32.gmra.mxu0 %v962
  %v1125 = vpop.f32.mrf.mxu0
  %v1126 = vadd.f32 %v67, %v1125
  %1127 = vmatmul.f32.gmra.mxu0 %v965
  %v1128 = vpop.f32.mrf.mxu0
  %v1129 = vadd.f32 %v67, %v1128
  %1130 = vmatmul.f32.gmra.mxu0 %v968
  %v1131 = vpop.f32.mrf.mxu0
  %v1132 = vadd.f32 %v67, %v1131
  %1133 = vmatmul.f32.gmra.mxu0 %v971
  %v1134 = vpop.f32.mrf.mxu0
  %v1135 = vadd.f32 %v67, %v1134
  %1136 = vmatmul.f32.gmra.mxu0 %v974
  %v1137 = vpop.f32.mrf.mxu0
  %v1138 = vadd.f32 %v67, %v1137
  %1139 = vmatmul.f32.gmra.mxu0 %v977
  %v1140 = vpop.f32.mrf.mxu0
  %v1141 = vadd.f32 %v67, %v1140
  %1142 = vmatmul.f32.gmra.mxu0 %v980
  %v1143 = vpop.f32.mrf.mxu0
  %v1144 = vadd.f32 %v67, %v1143
  %1145 = vmatmul.f32.gmra.mxu0 %v983
  %v1146 = vpop.f32.mrf.mxu0
  %v1147 = vadd.f32 %v67, %v1146
  %1148 = vmatmul.f32.gmra.mxu0 %v986
  %v1149 = vpop.f32.mrf.mxu0
  %v1150 = vadd.f32 %v67, %v1149
  %1151 = vmatmul.f32.gmra.mxu0 %v989
  %v1152 = vpop.f32.mrf.mxu0
  %v1153 = vadd.f32 %v67, %v1152
  %1154 = vmatmul.f32.gmra.mxu0 %v992
  %v1155 = vpop.f32.mrf.mxu0
  %v1156 = vadd.f32 %v67, %v1155
  %1157 = vmatmul.f32.gmra.mxu0 %v995
  %v1158 = vpop.f32.mrf.mxu0
  %v1159 = vadd.f32 %v67, %v1158
  %1160 = vmatmul.f32.gmra.mxu0 %v998
  %v1161 = vpop.f32.mrf.mxu0
  %v1162 = vadd.f32 %v67, %v1161
  %1163 = vmatmul.f32.gmra.mxu0 %v1001
  %v1164 = vpop.f32.mrf.mxu0
  %v1165 = vadd.f32 %v67, %v1164
  %1166 = vmatmul.f32.gmra.mxu0 %v1004
  %v1167 = vpop.f32.mrf.mxu0
  %v1168 = vadd.f32 %v67, %v1167
  %1169 = vmatmul.f32.gmra.mxu0 %v1007
  %v1170 = vpop.f32.mrf.mxu0
  %v1171 = vadd.f32 %v67, %v1170
  %1172 = vmatmul.f32.gmra.mxu0 %v1010
  %v1173 = vpop.f32.mrf.mxu0
  %v1174 = vadd.f32 %v67, %v1173
  %1175 = vmatmul.f32.gmra.mxu0 %v1013
  %v1176 = vpop.f32.mrf.mxu0
  %v1177 = vadd.f32 %v67, %v1176
  %1178 = vmatmul.f32.gmra.mxu0 %v1016
  %v1179 = vpop.f32.mrf.mxu0
  %v1180 = vadd.f32 %v67, %v1179
  %1181 = vmatmul.f32.gmra.mxu0 %v1019
  %v1182 = vpop.f32.mrf.mxu0
  %v1183 = vadd.f32 %v67, %v1182
  %1184 = vmatmul.f32.gmra.mxu0 %v1022
  %v1185 = vpop.f32.mrf.mxu0
  %v1186 = vadd.f32 %v67, %v1185
  %1187 = vmatmul.f32.gmra.mxu0 %v1025
  %v1188 = vpop.f32.mrf.mxu0
  %v1189 = vadd.f32 %v67, %v1188
  %1190 = vmatmul.f32.gmra.mxu0 %v1028
  %v1191 = vpop.f32.mrf.mxu0
  %v1192 = vadd.f32 %v67, %v1191
  %1193 = vmatmul.f32.gmra.mxu0 %v1031
  %v1194 = vpop.f32.mrf.mxu0
  %v1195 = vadd.f32 %v67, %v1194
  %1196 = vmatmul.f32.gmra.mxu0 %v1034
  %v1197 = vpop.f32.mrf.mxu0
  %v1198 = vadd.f32 %v67, %v1197
  %1199 = vmatmul.f32.gmra.mxu0 %v1037
  %v1200 = vpop.f32.mrf.mxu0
  %v1201 = vadd.f32 %v67, %v1200
  %1202 = vmatmul.f32.gmra.mxu0 %v1040
  %v1203 = vpop.f32.mrf.mxu0
  %v1204 = vadd.f32 %v67, %v1203
  %1205 = vmatmul.f32.gmra.mxu0 %v1043
  %v1206 = vpop.f32.mrf.mxu0
  %v1207 = vadd.f32 %v67, %v1206
  %1208 = vmatmul.f32.gmra.mxu0 %v1046
  %v1209 = vpop.f32.mrf.mxu0
  %v1210 = vadd.f32 %v67, %v1209
  %1211 = vmatmul.f32.gmra.mxu0 %v1049
  %v1212 = vpop.f32.mrf.mxu0
  %v1213 = vadd.f32 %v67, %v1212
  %1214 = vmatmul.f32.gmra.mxu0 %v1052
  %v1215 = vpop.f32.mrf.mxu0
  %v1216 = vadd.f32 %v67, %v1215
  %1217 = vmatmul.f32.gmra.mxu0 %v1055
  %v1218 = vpop.f32.mrf.mxu0
  %v1219 = vadd.f32 %v67, %v1218
  %1220 = vmatmul.f32.gmra.mxu0 %v1058
  %v1221 = vpop.f32.mrf.mxu0
  %v1222 = vadd.f32 %v67, %v1221
  %1223 = vmatmul.f32.gmra.mxu0 %v1061
  %v1224 = vpop.f32.mrf.mxu0
  %v1225 = vadd.f32 %v67, %v1224
  %1226 = vmatmul.f32.gmra.mxu0 %v1064
  %v1227 = vpop.f32.mrf.mxu0
  %v1228 = vadd.f32 %v67, %v1227
  %1229 = vmatmul.f32.gmra.mxu0 %v1067
  %v1230 = vpop.f32.mrf.mxu0
  %v1231 = vadd.f32 %v67, %v1230
  %1232 = vmatmul.f32.gmra.mxu0 %v1070
  %v1233 = vpop.f32.mrf.mxu0
  %v1234 = vadd.f32 %v67, %v1233
  %1235 = vmatmul.f32.gmra.mxu0 %v1073
  %v1236 = vpop.f32.mrf.mxu0
  %v1237 = vadd.f32 %v67, %v1236
  %1238 = vmatmul.f32.gmra.mxu0 %v1076
  %v1239 = vpop.f32.mrf.mxu0
  %v1240 = vadd.f32 %v67, %v1239
  %1241 = vmatmul.f32.gmra.mxu0 %v1079
  %v1242 = vpop.f32.mrf.mxu0
  %v1243 = vadd.f32 %v67, %v1242
  %1244 = vmatmul.f32.gmra.mxu0 %v1082
  %v1245 = vpop.f32.mrf.mxu0
  %v1246 = vadd.f32 %v67, %v1245
  %1247 = vmatmul.f32.gmra.mxu0 %v1085
  %v1248 = vpop.f32.mrf.mxu0
  %v1249 = vadd.f32 %v67, %v1248
  %1250 = vmatmul.f32.gmra.mxu0 %v1088
  %v1251 = vpop.f32.mrf.mxu0
  %v1252 = vadd.f32 %v67, %v1251
  %1253 = vdwg.mxu0
  %v1254 = vmax.f32 %v1108, 0.0
  %v1255 = vmax.f32 %v1111, 0.0
  %v1256 = vmax.f32 %v1114, 0.0
  %v1257 = vmax.f32 %v1117, 0.0
  %v1258 = vmax.f32 %v1120, 0.0
  %v1259 = vmax.f32 %v1123, 0.0
  %v1260 = vmax.f32 %v1126, 0.0
  %v1261 = vmax.f32 %v1129, 0.0
  %v1262 = vmax.f32 %v1132, 0.0
  %v1263 = vmax.f32 %v1135, 0.0
  %v1264 = vmax.f32 %v1138, 0.0
  %v1265 = vmax.f32 %v1141, 0.0
  %v1266 = vmax.f32 %v1144, 0.0
  %v1267 = vmax.f32 %v1147, 0.0
  %v1268 = vmax.f32 %v1150, 0.0
  %v1269 = vmax.f32 %v1153, 0.0
  %v1270 = vmax.f32 %v1156, 0.0
  %v1271 = vmax.f32 %v1159, 0.0
  %v1272 = vmax.f32 %v1162, 0.0
  %v1273 = vmax.f32 %v1165, 0.0
  %v1274 = vmax.f32 %v1168, 0.0
  %v1275 = vmax.f32 %v1171, 0.0
  %v1276 = vmax.f32 %v1174, 0.0
  %v1277 = vmax.f32 %v1177, 0.0
  %v1278 = vmax.f32 %v1180, 0.0
  %v1279 = vmax.f32 %v1183, 0.0
  %v1280 = vmax.f32 %v1186, 0.0
  %v1281 = vmax.f32 %v1189, 0.0
  %v1282 = vmax.f32 %v1192, 0.0
  %v1283 = vmax.f32 %v1195, 0.0
  %v1284 = vmax.f32 %v1198, 0.0
  %v1285 = vmax.f32 %v1201, 0.0
  %v1286 = vmax.f32 %v1204, 0.0
  %v1287 = vmax.f32 %v1207, 0.0
  %v1288 = vmax.f32 %v1210, 0.0
  %v1289 = vmax.f32 %v1213, 0.0
  %v1290 = vmax.f32 %v1216, 0.0
  %v1291 = vmax.f32 %v1219, 0.0
  %v1292 = vmax.f32 %v1222, 0.0
  %v1293 = vmax.f32 %v1225, 0.0
  %v1294 = vmax.f32 %v1228, 0.0
  %v1295 = vmax.f32 %v1231, 0.0
  %v1296 = vmax.f32 %v1234, 0.0
  %v1297 = vmax.f32 %v1237, 0.0
  %v1298 = vmax.f32 %v1240, 0.0
  %v1299 = vmax.f32 %v1243, 0.0
  %v1300 = vmax.f32 %v1246, 0.0
  %v1301 = vmax.f32 %v1249, 0.0
  %v1302 = vmax.f32 %v1252, 0.0
  %s1303 = scalar_lea.vmem %s0, 1176
  %v1304 = vld [vmem:[%s1303] sm:$0xff]
  %v1305 = vld [vmem:[%s1303 + $0x8] sm:$0xff]
  %v1306 = vld [vmem:[%s1303 + $0x10] sm:$0xff]
  %v1307 = vld [vmem:[%s1303 + $0x18] sm:$0xff]
  %v1308 = vld [vmem:[%s1303 + $0x20] sm:$0xff]
  %v1309 = vld [vmem:[%s1303 + $0x28] sm:$0xff]
  %v1310 = vld [vmem:[%s1303 + $0x30] sm:$0xff]
  %v1311 = vld [vmem:[%s1303 + $0x38] sm:$0xff]
  %v1312 = vld [vmem:[%s1303 + $0x40] sm:$0xff]
  %v1313 = vld [vmem:[%s1303 + $0x48] sm:$0xff]
  %v1314 = vld [vmem:[%s1303 + $0x50] sm:$0xff]
  %v1315 = vld [vmem:[%s1303 + $0x58] sm:$0xff]
  %v1316 = vld [vmem:[%s1303 + $0x60] sm:$0xff]
  %v1317 = vld [vmem:[%s1303 + $0x68] sm:$0xff]
  %v1318 = vld [vmem:[%s1303 + $0x70] sm:$0xff]
  %v1319 = vld [vmem:[%s1303 + $0x78] sm:$0xff]
  %v1320 = vld [vmem:[%s1303 + $0x80] sm:$0xff]
  %v1321 = vld [vmem:[%s1303 + $0x88] sm:$0xff]
  %v1322 = vld [vmem:[%s1303 + $0x90] sm:$0xff]
  %v1323 = vld [vmem:[%s1303 + $0x98] sm:$0xff]
  %v1324 = vld [vmem:[%s1303 + $0xa0] sm:$0xff]
  %v1325 = vld [vmem:[%s1303 + $0xa8] sm:$0xff]
  %v1326 = vld [vmem:[%s1303 + $0xb0] sm:$0xff]
  %v1327 = vld [vmem:[%s1303 + $0xb8] sm:$0xff]
  %v1328 = vld [vmem:[%s1303 + $0xc0] sm:$0xff]
  %v1329 = vld [vmem:[%s1303 + $0xc8] sm:$0xff]
  %v1330 = vld [vmem:[%s1303 + $0xd0] sm:$0xff]
  %v1331 = vld [vmem:[%s1303 + $0xd8] sm:$0xff]
  %v1332 = vld [vmem:[%s1303 + $0xe0] sm:$0xff]
  %v1333 = vld [vmem:[%s1303 + $0xe8] sm:$0xff]
  %v1334 = vld [vmem:[%s1303 + $0xf0] sm:$0xff]
  %v1335 = vld [vmem:[%s1303 + $0xf8] sm:$0xff]
  %v1336 = vld [vmem:[%s1303 + $0x100] sm:$0xff]
  %v1337 = vld [vmem:[%s1303 + $0x108] sm:$0xff]
  %v1338 = vld [vmem:[%s1303 + $0x110] sm:$0xff]
  %v1339 = vld [vmem:[%s1303 + $0x118] sm:$0xff]
  %v1340 = vld [vmem:[%s1303 + $0x120] sm:$0xff]
  %v1341 = vld [vmem:[%s1303 + $0x128] sm:$0xff]
  %v1342 = vld [vmem:[%s1303 + $0x130] sm:$0xff]
  %v1343 = vld [vmem:[%s1303 + $0x138] sm:$0xff]
  %v1344 = vld [vmem:[%s1303 + $0x140] sm:$0xff]
  %v1345 = vld [vmem:[%s1303 + $0x148] sm:$0xff]
  %v1346 = vld [vmem:[%s1303 + $0x150] sm:$0xff]
  %v1347 = vld [vmem:[%s1303 + $0x158] sm:$0xff]
  %v1348 = vld [vmem:[%s1303 + $0x160] sm:$0xff]
  %v1349 = vld [vmem:[%s1303 + $0x168] sm:$0xff]
  %v1350 = vld [vmem:[%s1303 + $0x170] sm:$0xff]
  %v1351 = vld [vmem:[%s1303 + $0x178] sm:$0xff]
  %v1352 = vld [vmem:[%s1303 + $0x180] sm:$0xff]
  %v1354 = vsel %vm69, %v1304, 0
  %v1357 = vsel %vm69, %v1305, 0
  %v1360 = vsel %vm69, %v1306, 0
  %v1363 = vsel %vm69, %v1307, 0
  %v1366 = vsel %vm69, %v1308, 0
  %v1369 = vsel %vm69, %v1309, 0
  %v1372 = vsel %vm69, %v1310, 0
  %v1375 = vsel %vm69, %v1311, 0
  %v1378 = vsel %vm69, %v1312, 0
  %v1381 = vsel %vm69, %v1313, 0
  %v1384 = vsel %vm69, %v1314, 0
  %v1387 = vsel %vm69, %v1315, 0
  %v1390 = vsel %vm69, %v1316, 0
  %v1393 = vsel %vm69, %v1317, 0
  %v1396 = vsel %vm69, %v1318, 0
  %v1399 = vsel %vm69, %v1319, 0
  %v1402 = vsel %vm69, %v1320, 0
  %v1405 = vsel %vm69, %v1321, 0
  %v1408 = vsel %vm69, %v1322, 0
  %v1411 = vsel %vm69, %v1323, 0
  %v1414 = vsel %vm69, %v1324, 0
  %v1417 = vsel %vm69, %v1325, 0
  %v1420 = vsel %vm69, %v1326, 0
  %v1423 = vsel %vm69, %v1327, 0
  %v1426 = vsel %vm69, %v1328, 0
  %v1429 = vsel %vm69, %v1329, 0
  %v1432 = vsel %vm69, %v1330, 0
  %v1435 = vsel %vm69, %v1331, 0
  %v1438 = vsel %vm69, %v1332, 0
  %v1441 = vsel %vm69, %v1333, 0
  %v1444 = vsel %vm69, %v1334, 0
  %v1447 = vsel %vm69, %v1335, 0
  %v1450 = vsel %vm69, %v1336, 0
  %v1453 = vsel %vm69, %v1337, 0
  %v1456 = vsel %vm69, %v1338, 0
  %v1459 = vsel %vm69, %v1339, 0
  %v1462 = vsel %vm69, %v1340, 0
  %v1465 = vsel %vm69, %v1341, 0
  %v1468 = vsel %vm69, %v1342, 0
  %v1471 = vsel %vm69, %v1343, 0
  %v1474 = vsel %vm69, %v1344, 0
  %v1477 = vsel %vm69, %v1345, 0
  %v1480 = vsel %vm69, %v1346, 0
  %v1483 = vsel %vm69, %v1347, 0
  %v1486 = vsel %vm69, %v1348, 0
  %v1489 = vsel %vm69, %v1349, 0
  %v1492 = vsel %vm69, %v1350, 0
  %v1495 = vsel %vm69, %v1351, 0
  %v1498 = vsel %vm69, %v1352, 0
  %1500 = vmatpush.msra.mxu0 0.0
  %1501 = vmatpush.msra.mxu0 0.0
  %1502 = vmatpush.msra.mxu0 0.0
  %1503 = vmatpush.msra.mxu0 0.0
  %1504 = vmatpush.msra.mxu0 0.0
  %1505 = vmatpush.msra.mxu0 0.0
  %1506 = vmatpush.msra.mxu0 0.0
  %1507 = vmatpush.msra.mxu0 0.0
  %1508 = vmatpush.msra.mxu0 0.0
  %1509 = vmatpush.msra.mxu0 0.0
  %1510 = vmatpush.msra.mxu0 0.0
  %1511 = vmatpush.msra.mxu0 0.0
  %1512 = vmatpush.msra.mxu0 0.0
  %1513 = vmatpush.msra.mxu0 0.0
  %1514 = vmatpush.msra.mxu0 %v219
  %1515 = vmatpush.msra.mxu0 %v63
  %1516 = vmatmul.f32.gmra.mxu0 %v1354
  %v1517 = vpop.f32.mrf.mxu0
  %v1518 = vadd.f32 %v67, %v1517
  %1519 = vmatmul.f32.gmra.mxu0 %v1357
  %v1520 = vpop.f32.mrf.mxu0
  %v1521 = vadd.f32 %v67, %v1520
  %1522 = vmatmul.f32.gmra.mxu0 %v1360
  %v1523 = vpop.f32.mrf.mxu0
  %v1524 = vadd.f32 %v67, %v1523
  %1525 = vmatmul.f32.gmra.mxu0 %v1363
  %v1526 = vpop.f32.mrf.mxu0
  %v1527 = vadd.f32 %v67, %v1526
  %1528 = vmatmul.f32.gmra.mxu0 %v1366
  %v1529 = vpop.f32.mrf.mxu0
  %v1530 = vadd.f32 %v67, %v1529
  %1531 = vmatmul.f32.gmra.mxu0 %v1369
  %v1532 = vpop.f32.mrf.mxu0
  %v1533 = vadd.f32 %v67, %v1532
  %1534 = vmatmul.f32.gmra.mxu0 %v1372
  %v1535 = vpop.f32.mrf.mxu0
  %v1536 = vadd.f32 %v67, %v1535
  %1537 = vmatmul.f32.gmra.mxu0 %v1375
  %v1538 = vpop.f32.mrf.mxu0
  %v1539 = vadd.f32 %v67, %v1538
  %1540 = vmatmul.f32.gmra.mxu0 %v1378
  %v1541 = vpop.f32.mrf.mxu0
  %v1542 = vadd.f32 %v67, %v1541
  %1543 = vmatmul.f32.gmra.mxu0 %v1381
  %v1544 = vpop.f32.mrf.mxu0
  %v1545 = vadd.f32 %v67, %v1544
  %1546 = vmatmul.f32.gmra.mxu0 %v1384
  %v1547 = vpop.f32.mrf.mxu0
  %v1548 = vadd.f32 %v67, %v1547
  %1549 = vmatmul.f32.gmra.mxu0 %v1387
  %v1550 = vpop.f32.mrf.mxu0
  %v1551 = vadd.f32 %v67, %v1550
  %1552 = vmatmul.f32.gmra.mxu0 %v1390
  %v1553 = vpop.f32.mrf.mxu0
  %v1554 = vadd.f32 %v67, %v1553
  %1555 = vmatmul.f32.gmra.mxu0 %v1393
  %v1556 = vpop.f32.mrf.mxu0
  %v1557 = vadd.f32 %v67, %v1556
  %1558 = vmatmul.f32.gmra.mxu0 %v1396
  %v1559 = vpop.f32.mrf.mxu0
  %v1560 = vadd.f32 %v67, %v1559
  %1561 = vmatmul.f32.gmra.mxu0 %v1399
  %v1562 = vpop.f32.mrf.mxu0
  %v1563 = vadd.f32 %v67, %v1562
  %1564 = vmatmul.f32.gmra.mxu0 %v1402
  %v1565 = vpop.f32.mrf.mxu0
  %v1566 = vadd.f32 %v67, %v1565
  %1567 = vmatmul.f32.gmra.mxu0 %v1405
  %v1568 = vpop.f32.mrf.mxu0
  %v1569 = vadd.f32 %v67, %v1568
  %1570 = vmatmul.f32.gmra.mxu0 %v1408
  %v1571 = vpop.f32.mrf.mxu0
  %v1572 = vadd.f32 %v67, %v1571
  %1573 = vmatmul.f32.gmra.mxu0 %v1411
  %v1574 = vpop.f32.mrf.mxu0
  %v1575 = vadd.f32 %v67, %v1574
  %1576 = vmatmul.f32.gmra.mxu0 %v1414
  %v1577 = vpop.f32.mrf.mxu0
  %v1578 = vadd.f32 %v67, %v1577
  %1579 = vmatmul.f32.gmra.mxu0 %v1417
  %v1580 = vpop.f32.mrf.mxu0
  %v1581 = vadd.f32 %v67, %v1580
  %1582 = vmatmul.f32.gmra.mxu0 %v1420
  %v1583 = vpop.f32.mrf.mxu0
  %v1584 = vadd.f32 %v67, %v1583
  %1585 = vmatmul.f32.gmra.mxu0 %v1423
  %v1586 = vpop.f32.mrf.mxu0
  %v1587 = vadd.f32 %v67, %v1586
  %1588 = vmatmul.f32.gmra.mxu0 %v1426
  %v1589 = vpop.f32.mrf.mxu0
  %v1590 = vadd.f32 %v67, %v1589
  %1591 = vmatmul.f32.gmra.mxu0 %v1429
  %v1592 = vpop.f32.mrf.mxu0
  %v1593 = vadd.f32 %v67, %v1592
  %1594 = vmatmul.f32.gmra.mxu0 %v1432
  %v1595 = vpop.f32.mrf.mxu0
  %v1596 = vadd.f32 %v67, %v1595
  %1597 = vmatmul.f32.gmra.mxu0 %v1435
  %v1598 = vpop.f32.mrf.mxu0
  %v1599 = vadd.f32 %v67, %v1598
  %1600 = vmatmul.f32.gmra.mxu0 %v1438
  %v1601 = vpop.f32.mrf.mxu0
  %v1602 = vadd.f32 %v67, %v1601
  %1603 = vmatmul.f32.gmra.mxu0 %v1441
  %v1604 = vpop.f32.mrf.mxu0
  %v1605 = vadd.f32 %v67, %v1604
  %1606 = vmatmul.f32.gmra.mxu0 %v1444
  %v1607 = vpop.f32.mrf.mxu0
  %v1608 = vadd.f32 %v67, %v1607
  %1609 = vmatmul.f32.gmra.mxu0 %v1447
  %v1610 = vpop.f32.mrf.mxu0
  %v1611 = vadd.f32 %v67, %v1610
  %1612 = vmatmul.f32.gmra.mxu0 %v1450
  %v1613 = vpop.f32.mrf.mxu0
  %v1614 = vadd.f32 %v67, %v1613
  %1615 = vmatmul.f32.gmra.mxu0 %v1453
  %v1616 = vpop.f32.mrf.mxu0
  %v1617 = vadd.f32 %v67, %v1616
  %1618 = vmatmul.f32.gmra.mxu0 %v1456
  %v1619 = vpop.f32.mrf.mxu0
  %v1620 = vadd.f32 %v67, %v1619
  %1621 = vmatmul.f32.gmra.mxu0 %v1459
  %v1622 = vpop.f32.mrf.mxu0
  %v1623 = vadd.f32 %v67, %v1622
  %1624 = vmatmul.f32.gmra.mxu0 %v1462
  %v1625 = vpop.f32.mrf.mxu0
  %v1626 = vadd.f32 %v67, %v1625
  %1627 = vmatmul.f32.gmra.mxu0 %v1465
  %v1628 = vpop.f32.mrf.mxu0
  %v1629 = vadd.f32 %v67, %v1628
  %1630 = vmatmul.f32.gmra.mxu0 %v1468
  %v1631 = vpop.f32.mrf.mxu0
  %v1632 = vadd.f32 %v67, %v1631
  %1633 = vmatmul.f32.gmra.mxu0 %v1471
  %v1634 = vpop.f32.mrf.mxu0
  %v1635 = vadd.f32 %v67, %v1634
  %1636 = vmatmul.f32.gmra.mxu0 %v1474
  %v1637 = vpop.f32.mrf.mxu0
  %v1638 = vadd.f32 %v67, %v1637
  %1639 = vmatmul.f32.gmra.mxu0 %v1477
  %v1640 = vpop.f32.mrf.mxu0
  %v1641 = vadd.f32 %v67, %v1640
  %1642 = vmatmul.f32.gmra.mxu0 %v1480
  %v1643 = vpop.f32.mrf.mxu0
  %v1644 = vadd.f32 %v67, %v1643
  %1645 = vmatmul.f32.gmra.mxu0 %v1483
  %v1646 = vpop.f32.mrf.mxu0
  %v1647 = vadd.f32 %v67, %v1646
  %1648 = vmatmul.f32.gmra.mxu0 %v1486
  %v1649 = vpop.f32.mrf.mxu0
  %v1650 = vadd.f32 %v67, %v1649
  %1651 = vmatmul.f32.gmra.mxu0 %v1489
  %v1652 = vpop.f32.mrf.mxu0
  %v1653 = vadd.f32 %v67, %v1652
  %1654 = vmatmul.f32.gmra.mxu0 %v1492
  %v1655 = vpop.f32.mrf.mxu0
  %v1656 = vadd.f32 %v67, %v1655
  %1657 = vmatmul.f32.gmra.mxu0 %v1495
  %v1658 = vpop.f32.mrf.mxu0
  %v1659 = vadd.f32 %v67, %v1658
  %1660 = vmatmul.f32.gmra.mxu0 %v1498
  %v1661 = vpop.f32.mrf.mxu0
  %v1662 = vadd.f32 %v67, %v1661
  %1663 = vdwg.mxu0
  %v1664 = vmax.f32 %v1518, 0.0
  %v1665 = vmax.f32 %v1521, 0.0
  %v1666 = vmax.f32 %v1524, 0.0
  %v1667 = vmax.f32 %v1527, 0.0
  %v1668 = vmax.f32 %v1530, 0.0
  %v1669 = vmax.f32 %v1533, 0.0
  %v1670 = vmax.f32 %v1536, 0.0
  %v1671 = vmax.f32 %v1539, 0.0
  %v1672 = vmax.f32 %v1542, 0.0
  %v1673 = vmax.f32 %v1545, 0.0
  %v1674 = vmax.f32 %v1548, 0.0
  %v1675 = vmax.f32 %v1551, 0.0
  %v1676 = vmax.f32 %v1554, 0.0
  %v1677 = vmax.f32 %v1557, 0.0
  %v1678 = vmax.f32 %v1560, 0.0
  %v1679 = vmax.f32 %v1563, 0.0
  %v1680 = vmax.f32 %v1566, 0.0
  %v1681 = vmax.f32 %v1569, 0.0
  %v1682 = vmax.f32 %v1572, 0.0
  %v1683 = vmax.f32 %v1575, 0.0
  %v1684 = vmax.f32 %v1578, 0.0
  %v1685 = vmax.f32 %v1581, 0.0
  %v1686 = vmax.f32 %v1584, 0.0
  %v1687 = vmax.f32 %v1587, 0.0
  %v1688 = vmax.f32 %v1590, 0.0
  %v1689 = vmax.f32 %v1593, 0.0
  %v1690 = vmax.f32 %v1596, 0.0
  %v1691 = vmax.f32 %v1599, 0.0
  %v1692 = vmax.f32 %v1602, 0.0
  %v1693 = vmax.f32 %v1605, 0.0
  %v1694 = vmax.f32 %v1608, 0.0
  %v1695 = vmax.f32 %v1611, 0.0
  %v1696 = vmax.f32 %v1614, 0.0
  %v1697 = vmax.f32 %v1617, 0.0
  %v1698 = vmax.f32 %v1620, 0.0
  %v1699 = vmax.f32 %v1623, 0.0
  %v1700 = vmax.f32 %v1626, 0.0
  %v1701 = vmax.f32 %v1629, 0.0
  %v1702 = vmax.f32 %v1632, 0.0
  %v1703 = vmax.f32 %v1635, 0.0
  %v1704 = vmax.f32 %v1638, 0.0
  %v1705 = vmax.f32 %v1641, 0.0
  %v1706 = vmax.f32 %v1644, 0.0
  %v1707 = vmax.f32 %v1647, 0.0
  %v1708 = vmax.f32 %v1650, 0.0
  %v1709 = vmax.f32 %v1653, 0.0
  %v1710 = vmax.f32 %v1656, 0.0
  %v1711 = vmax.f32 %v1659, 0.0
  %v1712 = vmax.f32 %v1662, 0.0
  %v1713 = vmax.f32 %v1254, %v1664
  %v1714 = vmax.f32 %v1255, %v1665
  %v1715 = vmax.f32 %v1256, %v1666
  %v1716 = vmax.f32 %v1257, %v1667
  %v1717 = vmax.f32 %v1258, %v1668
  %v1718 = vmax.f32 %v1259, %v1669
  %v1719 = vmax.f32 %v1260, %v1670
  %v1720 = vmax.f32 %v1261, %v1671
  %v1721 = vmax.f32 %v1262, %v1672
  %v1722 = vmax.f32 %v1263, %v1673
  %v1723 = vmax.f32 %v1264, %v1674
  %v1724 = vmax.f32 %v1265, %v1675
  %v1725 = vmax.f32 %v1266, %v1676
  %v1726 = vmax.f32 %v1267, %v1677
  %v1727 = vmax.f32 %v1268, %v1678
  %v1728 = vmax.f32 %v1269, %v1679
  %v1729 = vmax.f32 %v1270, %v1680
  %v1730 = vmax.f32 %v1271, %v1681
  %v1731 = vmax.f32 %v1272, %v1682
  %v1732 = vmax.f32 %v1273, %v1683
  %v1733 = vmax.f32 %v1274, %v1684
  %v1734 = vmax.f32 %v1275, %v1685
  %v1735 = vmax.f32 %v1276, %v1686
  %v1736 = vmax.f32 %v1277, %v1687
  %v1737 = vmax.f32 %v1278, %v1688
  %v1738 = vmax.f32 %v1279, %v1689
  %v1739 = vmax.f32 %v1280, %v1690
  %v1740 = vmax.f32 %v1281, %v1691
  %v1741 = vmax.f32 %v1282, %v1692
  %v1742 = vmax.f32 %v1283, %v1693
  %v1743 = vmax.f32 %v1284, %v1694
  %v1744 = vmax.f32 %v1285, %v1695
  %v1745 = vmax.f32 %v1286, %v1696
  %v1746 = vmax.f32 %v1287, %v1697
  %v1747 = vmax.f32 %v1288, %v1698
  %v1748 = vmax.f32 %v1289, %v1699
  %v1749 = vmax.f32 %v1290, %v1700
  %v1750 = vmax.f32 %v1291, %v1701
  %v1751 = vmax.f32 %v1292, %v1702
  %v1752 = vmax.f32 %v1293, %v1703
  %v1753 = vmax.f32 %v1294, %v1704
  %v1754 = vmax.f32 %v1295, %v1705
  %v1755 = vmax.f32 %v1296, %v1706
  %v1756 = vmax.f32 %v1297, %v1707
  %v1757 = vmax.f32 %v1298, %v1708
  %v1758 = vmax.f32 %v1299, %v1709
  %v1759 = vmax.f32 %v1300, %v1710
  %v1760 = vmax.f32 %v1301, %v1711
  %v1761 = vmax.f32 %v1302, %v1712
  %v1762 = vmax.f32 %v844, %v1713
  %v1763 = vmax.f32 %v845, %v1714
  %v1764 = vmax.f32 %v846, %v1715
  %v1765 = vmax.f32 %v847, %v1716
  %v1766 = vmax.f32 %v848, %v1717
  %v1767 = vmax.f32 %v849, %v1718
  %v1768 = vmax.f32 %v850, %v1719
  %v1769 = vmax.f32 %v851, %v1720
  %v1770 = vmax.f32 %v852, %v1721
  %v1771 = vmax.f32 %v853, %v1722
  %v1772 = vmax.f32 %v854, %v1723
  %v1773 = vmax.f32 %v855, %v1724
  %v1774 = vmax.f32 %v856, %v1725
  %v1775 = vmax.f32 %v857, %v1726
  %v1776 = vmax.f32 %v858, %v1727
  %v1777 = vmax.f32 %v859, %v1728
  %v1778 = vmax.f32 %v860, %v1729
  %v1779 = vmax.f32 %v861, %v1730
  %v1780 = vmax.f32 %v862, %v1731
  %v1781 = vmax.f32 %v863, %v1732
  %v1782 = vmax.f32 %v864, %v1733
  %v1783 = vmax.f32 %v865, %v1734
  %v1784 = vmax.f32 %v866, %v1735
  %v1785 = vmax.f32 %v867, %v1736
  %v1786 = vmax.f32 %v868, %v1737
  %v1787 = vmax.f32 %v869, %v1738
  %v1788 = vmax.f32 %v870, %v1739
  %v1789 = vmax.f32 %v871, %v1740
  %v1790 = vmax.f32 %v872, %v1741
  %v1791 = vmax.f32 %v873, %v1742
  %v1792 = vmax.f32 %v874, %v1743
  %v1793 = vmax.f32 %v875, %v1744
  %v1794 = vmax.f32 %v876, %v1745
  %v1795 = vmax.f32 %v877, %v1746
  %v1796 = vmax.f32 %v878, %v1747
  %v1797 = vmax.f32 %v879, %v1748
  %v1798 = vmax.f32 %v880, %v1749
  %v1799 = vmax.f32 %v881, %v1750
  %v1800 = vmax.f32 %v882, %v1751
  %v1801 = vmax.f32 %v883, %v1752
  %v1802 = vmax.f32 %v884, %v1753
  %v1803 = vmax.f32 %v885, %v1754
  %v1804 = vmax.f32 %v886, %v1755
  %v1805 = vmax.f32 %v887, %v1756
  %v1806 = vmax.f32 %v888, %v1757
  %v1807 = vmax.f32 %v889, %v1758
  %v1808 = vmax.f32 %v890, %v1759
  %v1809 = vmax.f32 %v891, %v1760
  %v1810 = vmax.f32 %v892, %v1761
  %vm1811 = vcmask 130048
  %1812 = vst.msk [vmem:[%s3] sm:$0xff] %vm1811, %v1762
  %1813 = vst.msk [vmem:[%s3 + $0x8] sm:$0xff] %vm1811, %v1763
  %1814 = vst.msk [vmem:[%s3 + $0x10] sm:$0xff] %vm1811, %v1764
  %1815 = vst.msk [vmem:[%s3 + $0x18] sm:$0xff] %vm1811, %v1765
  %1816 = vst.msk [vmem:[%s3 + $0x20] sm:$0xff] %vm1811, %v1766
  %1817 = vst.msk [vmem:[%s3 + $0x28] sm:$0xff] %vm1811, %v1767
  %1818 = vst.msk [vmem:[%s3 + $0x30] sm:$0xff] %vm1811, %v1768
  %1819 = vst.msk [vmem:[%s3 + $0x38] sm:$0xff] %vm1811, %v1769
  %1820 = vst.msk [vmem:[%s3 + $0x40] sm:$0xff] %vm1811, %v1770
  %1821 = vst.msk [vmem:[%s3 + $0x48] sm:$0xff] %vm1811, %v1771
  %1822 = vst.msk [vmem:[%s3 + $0x50] sm:$0xff] %vm1811, %v1772
  %1823 = vst.msk [vmem:[%s3 + $0x58] sm:$0xff] %vm1811, %v1773
  %1824 = vst.msk [vmem:[%s3 + $0x60] sm:$0xff] %vm1811, %v1774
  %1825 = vst.msk [vmem:[%s3 + $0x68] sm:$0xff] %vm1811, %v1775
  %1826 = vst.msk [vmem:[%s3 + $0x70] sm:$0xff] %vm1811, %v1776
  %1827 = vst.msk [vmem:[%s3 + $0x78] sm:$0xff] %vm1811, %v1777
  %1828 = vst.msk [vmem:[%s3 + $0x80] sm:$0xff] %vm1811, %v1778
  %1829 = vst.msk [vmem:[%s3 + $0x88] sm:$0xff] %vm1811, %v1779
  %1830 = vst.msk [vmem:[%s3 + $0x90] sm:$0xff] %vm1811, %v1780
  %1831 = vst.msk [vmem:[%s3 + $0x98] sm:$0xff] %vm1811, %v1781
  %1832 = vst.msk [vmem:[%s3 + $0xa0] sm:$0xff] %vm1811, %v1782
  %1833 = vst.msk [vmem:[%s3 + $0xa8] sm:$0xff] %vm1811, %v1783
  %1834 = vst.msk [vmem:[%s3 + $0xb0] sm:$0xff] %vm1811, %v1784
  %1835 = vst.msk [vmem:[%s3 + $0xb8] sm:$0xff] %vm1811, %v1785
  %1836 = vst.msk [vmem:[%s3 + $0xc0] sm:$0xff] %vm1811, %v1786
  %1837 = vst.msk [vmem:[%s3 + $0xc8] sm:$0xff] %vm1811, %v1787
  %1838 = vst.msk [vmem:[%s3 + $0xd0] sm:$0xff] %vm1811, %v1788
  %1839 = vst.msk [vmem:[%s3 + $0xd8] sm:$0xff] %vm1811, %v1789
  %1840 = vst.msk [vmem:[%s3 + $0xe0] sm:$0xff] %vm1811, %v1790
  %1841 = vst.msk [vmem:[%s3 + $0xe8] sm:$0xff] %vm1811, %v1791
  %1842 = vst.msk [vmem:[%s3 + $0xf0] sm:$0xff] %vm1811, %v1792
  %1843 = vst.msk [vmem:[%s3 + $0xf8] sm:$0xff] %vm1811, %v1793
  %1844 = vst.msk [vmem:[%s3 + $0x100] sm:$0xff] %vm1811, %v1794
  %1845 = vst.msk [vmem:[%s3 + $0x108] sm:$0xff] %vm1811, %v1795
  %1846 = vst.msk [vmem:[%s3 + $0x110] sm:$0xff] %vm1811, %v1796
  %1847 = vst.msk [vmem:[%s3 + $0x118] sm:$0xff] %vm1811, %v1797
  %1848 = vst.msk [vmem:[%s3 + $0x120] sm:$0xff] %vm1811, %v1798
  %1849 = vst.msk [vmem:[%s3 + $0x128] sm:$0xff] %vm1811, %v1799
  %1850 = vst.msk [vmem:[%s3 + $0x130] sm:$0xff] %vm1811, %v1800
  %1851 = vst.msk [vmem:[%s3 + $0x138] sm:$0xff] %vm1811, %v1801
  %1852 = vst.msk [vmem:[%s3 + $0x140] sm:$0xff] %vm1811, %v1802
  %1853 = vst.msk [vmem:[%s3 + $0x148] sm:$0xff] %vm1811, %v1803
  %1854 = vst.msk [vmem:[%s3 + $0x150] sm:$0xff] %vm1811, %v1804
  %1855 = vst.msk [vmem:[%s3 + $0x158] sm:$0xff] %vm1811, %v1805
  %1856 = vst.msk [vmem:[%s3 + $0x160] sm:$0xff] %vm1811, %v1806
  %1857 = vst.msk [vmem:[%s3 + $0x168] sm:$0xff] %vm1811, %v1807
  %1858 = vst.msk [vmem:[%s3 + $0x170] sm:$0xff] %vm1811, %v1808
  %1859 = vst.msk [vmem:[%s3 + $0x178] sm:$0xff] %vm1811, %v1809
  %1860 = vst.msk [vmem:[%s3 + $0x180] sm:$0xff] %vm1811, %v1810
  // Predicated region
  $region14: #{my_cnn_forward.3} parent=0 // pred_check
    _
  $region15: #{my_cnn_forward.3} parent=0 // pred_check_branch
    %1862 = sbr.rel (0) target = $region17
  $region16: #{my_cnn_forward.3} parent=0 // pred_region
    _
  $region17: #{my_cnn_forward.3} parent=0 // pred_fallthru
    _
  // Predicated region
  $region18: #{my_cnn_forward.3} parent=0 // pred_check
    _
  $region19: #{my_cnn_forward.3} parent=0 // pred_check_branch
    %1864 = sbr.rel (0) target = $region21
  $region20: #{my_cnn_forward.3} parent=0 // pred_region
    _
  $region21: #{my_cnn_forward.3} parent=0 // pred_fallthru
    _

// kernel: my_cnn_forward.4
$region0: #{my_cnn_forward.4}
  #allocation0 [shape = 'u32[]', space=smem, size = 0x4, offset = 0x4, fixed_abs, tag = 'smem constant byte address 0x4 - core index']
  #allocation1 [shape = 'u32[72,128]{1,0:T(1,128)}', space=vmem, size = 0x9000, scoped, tag = 'internal scratch']
  %s0 = inlined_call_operand.vmem [shape: bf16[98,144], index: 0, kind: input, shape index: {}]
  %s1 = inlined_call_operand.vmem [shape: bf16[144,32], index: 1, kind: input, shape index: {}]
  %s2 = inlined_call_operand.vmem [shape: f32[1,32], index: 2, kind: input, shape index: {}]
  %s3 = inlined_call_operand.vmem [shape: f32[98,32], index: 3, kind: output, shape index: {}]
  %s4 = sld [smem:[#allocation0]]
  $region22: #{my_cnn_forward.4} parent=0
    _
  %s6 = ssub.s32 1, %s4
  %s7 = scalar_select 0, %s6, %s4
  // Predicated region
  $region2: #{my_cnn_forward.4} parent=0 // pred_check
    _
  $region3: #{my_cnn_forward.4} parent=0 // pred_check_branch
    %9 = sbr.rel (0) target = $region5
  $region4: #{my_cnn_forward.4} parent=0 // pred_region
    _
  $region5: #{my_cnn_forward.4} parent=0 // pred_fallthru
    _
  // Predicated region
  $region6: #{my_cnn_forward.4} parent=0 // pred_check
    _
  $region7: #{my_cnn_forward.4} parent=0 // pred_check_branch
    %11 = sbr.rel (0) target = $region9
  $region8: #{my_cnn_forward.4} parent=0 // pred_region
    _
  $region9: #{my_cnn_forward.4} parent=0 // pred_fallthru
    _
  // Predicated region
  $region10: #{my_cnn_forward.4} parent=0 // pred_check
    _
  $region11: #{my_cnn_forward.4} parent=0 // pred_check_branch
    %13 = sbr.rel (0) target = $region13
  $region12: #{my_cnn_forward.4} parent=0 // pred_region
    _
  $region13: #{my_cnn_forward.4} parent=0 // pred_fallthru
    _
  %v15 = vld [vmem:[%s0] sm:$0xff]
  %v16 = vld [vmem:[%s0 + $0x8] sm:$0xff]
  %v17 = vld [vmem:[%s0 + $0x10] sm:$0xff]
  %v18 = vld [vmem:[%s0 + $0x18] sm:$0xff]
  %v19 = vld [vmem:[%s0 + $0x20] sm:$0xff]
  %v20 = vld [vmem:[%s0 + $0x28] sm:$0xff]
  %v21 = vld [vmem:[%s0 + $0x30] sm:$0xff]
  %v22 = vld [vmem:[%s0 + $0x38] sm:$0xff]
  %v23 = vld [vmem:[%s0 + $0x40] sm:$0xff]
  %v24 = vld [vmem:[%s0 + $0x48] sm:$0xff]
  %v25 = vld [vmem:[%s0 + $0x50] sm:$0xff]
  %v26 = vld [vmem:[%s0 + $0x58] sm:$0xff]
  %v27 = vld [vmem:[%s0 + $0x60] sm:$0x11]
  %v28 = vld [vmem:[%s1] sm:$0xf]
  %v29 = vld [vmem:[%s1 + $0x4] sm:$0xf]
  %v30 = vld [vmem:[%s1 + $0x8] sm:$0xf]
  %v31 = vld [vmem:[%s1 + $0xc] sm:$0xf]
  %v32 = vld [vmem:[%s1 + $0x10] sm:$0xf]
  %v33 = vld [vmem:[%s1 + $0x14] sm:$0xf]
  %v34 = vld [vmem:[%s1 + $0x18] sm:$0xf]
  %v35 = vld [vmem:[%s1 + $0x1c] sm:$0xf]
  %v36 = vld [vmem:[%s1 + $0x20] sm:$0xf]
  %v37 = vld [vmem:[%s1 + $0x24] sm:$0xf]
  %v38 = vld [vmem:[%s1 + $0x28] sm:$0xf]
  %v39 = vld [vmem:[%s1 + $0x2c] sm:$0xf]
  %v40 = vld [vmem:[%s1 + $0x30] sm:$0xf]
  %v41 = vld [vmem:[%s1 + $0x34] sm:$0xf]
  %v42 = vld [vmem:[%s1 + $0x38] sm:$0xf]
  %v43 = vld [vmem:[%s1 + $0x3c] sm:$0xf]
  %v44 = vld [vmem:[%s1 + $0x40] sm:$0xf]
  %v45 = vld [vmem:[%s1 + $0x44] sm:$0xf]
  %v46 = vld [vmem:[%s2] sm:$0x1]
  %v48 = vperm.slane %v46, 0
  %v63 = vunpack.c.l.b16 %v15
  %v64 = vunpack.c.h.b16 %v15
  %v65 = vunpack.c.l.b16 %v16
  %v66 = vunpack.c.h.b16 %v16
  %v67 = vunpack.c.l.b16 %v17
  %v68 = vunpack.c.h.b16 %v17
  %v69 = vunpack.c.l.b16 %v18
  %v70 = vunpack.c.h.b16 %v18
  %v71 = vunpack.c.l.b16 %v19
  %v72 = vunpack.c.h.b16 %v19
  %v73 = vunpack.c.l.b16 %v20
  %v74 = vunpack.c.h.b16 %v20
  %v75 = vunpack.c.l.b16 %v21
  %v76 = vunpack.c.h.b16 %v21
  %v77 = vunpack.c.l.b16 %v22
  %v78 = vunpack.c.h.b16 %v22
  %v79 = vunpack.c.l.b16 %v23
  %v80 = vunpack.c.h.b16 %v23
  %v81 = vunpack.c.l.b16 %v24
  %v82 = vunpack.c.h.b16 %v24
  %v83 = vunpack.c.l.b16 %v25
  %v84 = vunpack.c.h.b16 %v25
  %v85 = vunpack.c.l.b16 %v26
  %v86 = vunpack.c.h.b16 %v26
  %v87 = vunpack.c.l.b16 %v27
  %v88 = vunpack.c.h.b16 %v27
  %v89 = vpack.c.b16 %v65, %v63
  %v90 = vpack.c.b16 %v66, %v64
  %v91 = vpack.c.b16 %v69, %v67
  %v92 = vpack.c.b16 %v70, %v68
  %v93 = vpack.c.b16 %v73, %v71
  %v94 = vpack.c.b16 %v74, %v72
  %v95 = vpack.c.b16 %v77, %v75
  %v96 = vpack.c.b16 %v78, %v76
  %v97 = vpack.c.b16 %v81, %v79
  %v98 = vpack.c.b16 %v82, %v80
  %v99 = vpack.c.b16 %v85, %v83
  %v100 = vpack.c.b16 %v86, %v84
  %v101 = vpack.c.b16 %v87, %v87
  %v102 = vpack.c.b16 %v88, %v88
  %v128 = vunpack.c.l.b16 %v28
  %v129 = vunpack.c.l.b16 %v29
  %v130 = vunpack.c.l.b16 %v30
  %v131 = vunpack.c.l.b16 %v31
  %v132 = vunpack.c.l.b16 %v32
  %v133 = vunpack.c.l.b16 %v33
  %v134 = vunpack.c.l.b16 %v34
  %v135 = vunpack.c.l.b16 %v35
  %v136 = vunpack.c.l.b16 %v36
  %v137 = vunpack.c.l.b16 %v37
  %v138 = vunpack.c.l.b16 %v38
  %v139 = vunpack.c.l.b16 %v39
  %v140 = vunpack.c.l.b16 %v40
  %v141 = vunpack.c.l.b16 %v41
  %v142 = vunpack.c.l.b16 %v42
  %v143 = vunpack.c.l.b16 %v43
  %v144 = vunpack.c.l.b16 %v44
  %v145 = vunpack.c.l.b16 %v45
  %v146 = vpack.c.b16 %v129, %v128
  %v147 = vpack.c.b16 %v131, %v130
  %v148 = vpack.c.b16 %v133, %v132
  %v149 = vpack.c.b16 %v135, %v134
  %v150 = vpack.c.b16 %v137, %v136
  %v151 = vpack.c.b16 %v139, %v138
  %v152 = vpack.c.b16 %v141, %v140
  %v153 = vpack.c.b16 %v143, %v142
  %v154 = vpack.c.b16 %v145, %v144
  %vm164 = vcmask 130048
  %v166 = vsel %vm164, %v90, 0
  %v169 = vsel %vm164, %v92, 0
  %v172 = vsel %vm164, %v94, 0
  %v175 = vsel %vm164, %v96, 0
  %v178 = vsel %vm164, %v98, 0
  %v181 = vsel %vm164, %v100, 0
  %v184 = vsel %vm164, %v102, 0
  %186 = vmatpush.bf16.msra.mxu0 %v153
  %187 = vmatpush.bf16.msra.mxu0 %v152
  %188 = vmatpush.bf16.msra.mxu0 %v151
  %189 = vmatpush.bf16.msra.mxu0 %v150
  %190 = vmatpush.bf16.msra.mxu0 %v149
  %191 = vmatpush.bf16.msra.mxu0 %v148
  %192 = vmatpush.bf16.msra.mxu0 %v147
  %193 = vmatpush.bf16.msra.mxu0 %v146
  %194 = vmatmul.bf16.gmra.mxu0 %v89
  %v195 = vpop.f32.mrf.mxu0
  %v196 = vadd.f32 %v48, %v195
  %v197 = vpop.f32.mrf.mxu0
  %v198 = vadd.f32 %v48, %v197
  %199 = vmatmul.bf16.gmra.mxu0 %v91
  %v200 = vpop.f32.mrf.mxu0
  %v201 = vadd.f32 %v48, %v200
  %v202 = vpop.f32.mrf.mxu0
  %v203 = vadd.f32 %v48, %v202
  %204 = vmatmul.bf16.gmra.mxu0 %v93
  %v205 = vpop.f32.mrf.mxu0
  %v206 = vadd.f32 %v48, %v205
  %v207 = vpop.f32.mrf.mxu0
  %v208 = vadd.f32 %v48, %v207
  %209 = vmatmul.bf16.gmra.mxu0 %v95
  %v210 = vpop.f32.mrf.mxu0
  %v211 = vadd.f32 %v48, %v210
  %v212 = vpop.f32.mrf.mxu0
  %v213 = vadd.f32 %v48, %v212
  %214 = vmatmul.bf16.gmra.mxu0 %v97
  %v215 = vpop.f32.mrf.mxu0
  %v216 = vadd.f32 %v48, %v215
  %v217 = vpop.f32.mrf.mxu0
  %v218 = vadd.f32 %v48, %v217
  %219 = vmatmul.bf16.gmra.mxu0 %v99
  %v220 = vpop.f32.mrf.mxu0
  %v221 = vadd.f32 %v48, %v220
  %v222 = vpop.f32.mrf.mxu0
  %v223 = vadd.f32 %v48, %v222
  %224 = vmatmul.bf16.gmra.mxu0 %v101
  %v225 = vpop.f32.mrf.mxu0
  %v226 = vadd.f32 %v48, %v225
  %v227 = vpop.f32.mrf.mxu0
  %228 = vdwg.mxu0
  %229 = vmatpush.bf16.msra.mxu0 0
  %230 = vmatpush.bf16.msra.mxu0 0
  %231 = vmatpush.bf16.msra.mxu0 0
  %232 = vmatpush.bf16.msra.mxu0 0
  %233 = vmatpush.bf16.msra.mxu0 0
  %234 = vmatpush.bf16.msra.mxu0 0
  %235 = vmatpush.bf16.msra.mxu0 0
  %236 = vmatpush.bf16.msra.mxu0 %v154
  %237 = vmatmul.bf16.gmra.mxu0 %v166
  %v238 = vpop.f32.mrf.mxu0
  %v239 = vadd.f32 %v196, %v238
  %v240 = vpop.f32.mrf.mxu0
  %v241 = vadd.f32 %v198, %v240
  %242 = vmatmul.bf16.gmra.mxu0 %v169
  %v243 = vpop.f32.mrf.mxu0
  %v244 = vadd.f32 %v201, %v243
  %v245 = vpop.f32.mrf.mxu0
  %v246 = vadd.f32 %v203, %v245
  %247 = vmatmul.bf16.gmra.mxu0 %v172
  %v248 = vpop.f32.mrf.mxu0
  %v249 = vadd.f32 %v206, %v248
  %v250 = vpop.f32.mrf.mxu0
  %v251 = vadd.f32 %v208, %v250
  %252 = vmatmul.bf16.gmra.mxu0 %v175
  %v253 = vpop.f32.mrf.mxu0
  %v254 = vadd.f32 %v211, %v253
  %v255 = vpop.f32.mrf.mxu0
  %v256 = vadd.f32 %v213, %v255
  %257 = vmatmul.bf16.gmra.mxu0 %v178
  %v258 = vpop.f32.mrf.mxu0
  %v259 = vadd.f32 %v216, %v258
  %v260 = vpop.f32.mrf.mxu0
  %v261 = vadd.f32 %v218, %v260
  %262 = vmatmul.bf16.gmra.mxu0 %v181
  %v263 = vpop.f32.mrf.mxu0
  %v264 = vadd.f32 %v221, %v263
  %v265 = vpop.f32.mrf.mxu0
  %v266 = vadd.f32 %v223, %v265
  %267 = vmatmul.bf16.gmra.mxu0 %v184
  %v268 = vpop.f32.mrf.mxu0
  %v269 = vadd.f32 %v226, %v268
  %v270 = vpop.f32.mrf.mxu0
  %271 = vdwg.mxu0
  %v272 = vmax.f32 %v239, 0.0
  %v273 = vmax.f32 %v241, 0.0
  %v274 = vmax.f32 %v244, 0.0
  %v275 = vmax.f32 %v246, 0.0
  %v276 = vmax.f32 %v249, 0.0
  %v277 = vmax.f32 %v251, 0.0
  %v278 = vmax.f32 %v254, 0.0
  %v279 = vmax.f32 %v256, 0.0
  %v280 = vmax.f32 %v259, 0.0
  %v281 = vmax.f32 %v261, 0.0
  %v282 = vmax.f32 %v264, 0.0
  %v283 = vmax.f32 %v266, 0.0
  %v284 = vmax.f32 %v269, 0.0
  %vm285 = vcmask 261120
  %286 = vst.msk [vmem:[%s3] sm:$0xff] %vm285, %v272
  %287 = vst.msk [vmem:[%s3 + $0x8] sm:$0xff] %vm285, %v273
  %288 = vst.msk [vmem:[%s3 + $0x10] sm:$0xff] %vm285, %v274
  %289 = vst.msk [vmem:[%s3 + $0x18] sm:$0xff] %vm285, %v275
  %290 = vst.msk [vmem:[%s3 + $0x20] sm:$0xff] %vm285, %v276
  %291 = vst.msk [vmem:[%s3 + $0x28] sm:$0xff] %vm285, %v277
  %292 = vst.msk [vmem:[%s3 + $0x30] sm:$0xff] %vm285, %v278
  %293 = vst.msk [vmem:[%s3 + $0x38] sm:$0xff] %vm285, %v279
  %294 = vst.msk [vmem:[%s3 + $0x40] sm:$0xff] %vm285, %v280
  %295 = vst.msk [vmem:[%s3 + $0x48] sm:$0xff] %vm285, %v281
  %296 = vst.msk [vmem:[%s3 + $0x50] sm:$0xff] %vm285, %v282
  %297 = vst.msk [vmem:[%s3 + $0x58] sm:$0xff] %vm285, %v283
  %vm298 = vcmask 254976
  %299 = vst.msk [vmem:[%s3 + $0x60] sm:$0x3] %vm298, %v284
  // Predicated region
  $region14: #{my_cnn_forward.4} parent=0 // pred_check
    _
  $region15: #{my_cnn_forward.4} parent=0 // pred_check_branch
    %301 = sbr.rel (0) target = $region17
  $region16: #{my_cnn_forward.4} parent=0 // pred_region
    _
  $region17: #{my_cnn_forward.4} parent=0 // pred_fallthru
    _
  // Predicated region
  $region18: #{my_cnn_forward.4} parent=0 // pred_check
    _
  $region19: #{my_cnn_forward.4} parent=0 // pred_check_branch
    %303 = sbr.rel (0) target = $region21
  $region20: #{my_cnn_forward.4} parent=0 // pred_region
    _
  $region21: #{my_cnn_forward.4} parent=0 // pred_fallthru
    _

// kernel: my_cnn_forward.5
$region0: #{my_cnn_forward.5}
  #allocation0 [shape = 'u32[]', space=smem, size = 0x4, offset = 0x4, fixed_abs, tag = 'smem constant byte address 0x4 - core index']
  #allocation1 [shape = 'u32[72,128]{1,0:T(1,128)}', space=vmem, size = 0x9000, scoped, tag = 'internal scratch']
  %s0 = inlined_call_operand.vmem [shape: bf16[16,2,288], index: 0, kind: input, shape index: {}]
  %s1 = inlined_call_operand.vmem [shape: bf16[288,64], index: 1, kind: input, shape index: {}]
  %s2 = inlined_call_operand.vmem [shape: f32[1,64], index: 2, kind: input, shape index: {}]
  %s3 = inlined_call_operand.vmem [shape: bf16[16,64,128], index: 3, kind: input, shape index: {}]
  %s4 = inlined_call_operand.vmem [shape: f32[1,128], index: 4, kind: input, shape index: {}]
  %s5 = inlined_call_operand.vmem [shape: f32[128,10], index: 5, kind: input, shape index: {}]
  %s6 = inlined_call_operand.vmem [shape: f32[1,10], index: 6, kind: input, shape index: {}]
  %s7 = inlined_call_operand.hbm [shape: f32[2,10], index: 7, kind: output, shape index: {}]
  %s8 = sld [smem:[#allocation0]]
  $region38: #{my_cnn_forward.5} parent=0
    _
  %s10 = ssub.s32 1, %s8
  %s11 = scalar_select 0, %s10, %s8
  $region1: #{my_cnn_forward.5} parent=0
    #allocation2 [shape = 'u8[1024]{0}', space=vmem, size = 0x400, scoped, tag = 'output window, operand 0, single buffered']
    #allocation3 [shape = 's32[1]{0}', space=sflag, size = 0x4, scoped, tag = 'scoped memory for my_cnn_forward.5']
    %12 = vsyncpa [#allocation3], 0
    // Predicated region
    $region2: #{my_cnn_forward.5} parent=1 // pred_check
      _
    $region3: #{my_cnn_forward.5} parent=1 // pred_check_branch
      %14 = sbr.rel (0) target = $region5
    $region4: #{my_cnn_forward.5} parent=1 // pred_region
      _
    $region5: #{my_cnn_forward.5} parent=1 // pred_fallthru
      _
    // Predicated region
    $region6: #{my_cnn_forward.5} parent=1 // pred_check
      _
    $region7: #{my_cnn_forward.5} parent=1 // pred_check_branch
      %16 = sbr.rel (0) target = $region9
    $region8: #{my_cnn_forward.5} parent=1 // pred_region
      _
    $region9: #{my_cnn_forward.5} parent=1 // pred_fallthru
      _
    // Predicated region
    $region10: #{my_cnn_forward.5} parent=1 // pred_check
      _
    $region11: #{my_cnn_forward.5} parent=1 // pred_check_branch
      %18 = sbr.rel (0) target = $region13
    $region12: #{my_cnn_forward.5} parent=1 // pred_region
      _
    $region13: #{my_cnn_forward.5} parent=1 // pred_fallthru
      _
    // Predicated region
    $region14: #{my_cnn_forward.5} parent=1 // pred_check
      _
    $region15: #{my_cnn_forward.5} parent=1 // pred_check_branch
      %20 = sbr.rel (0) target = $region17
    $region16: #{my_cnn_forward.5} parent=1 // pred_region
      _
    $region17: #{my_cnn_forward.5} parent=1 // pred_fallthru
      _
    // Predicated region
    $region18: #{my_cnn_forward.5} parent=1 // pred_check
      _
    $region19: #{my_cnn_forward.5} parent=1 // pred_check_branch
      %22 = sbr.rel (0) target = $region21
    $region20: #{my_cnn_forward.5} parent=1 // pred_region
      _
    $region21: #{my_cnn_forward.5} parent=1 // pred_fallthru
      _
    // Predicated region
    $region22: #{my_cnn_forward.5} parent=1 // pred_check
      _
    $region23: #{my_cnn_forward.5} parent=1 // pred_check_branch
      %24 = sbr.rel (0) target = $region25
    $region24: #{my_cnn_forward.5} parent=1 // pred_region
      _
    $region25: #{my_cnn_forward.5} parent=1 // pred_fallthru
      _
    // Predicated region
    $region26: #{my_cnn_forward.5} parent=1 // pred_check
      _
    $region27: #{my_cnn_forward.5} parent=1 // pred_check_branch
      %26 = sbr.rel (0) target = $region29
    $region28: #{my_cnn_forward.5} parent=1 // pred_region
      _
    $region29: #{my_cnn_forward.5} parent=1 // pred_fallthru
      _
    %v28 = vld [vmem:[%s4] sm:$0x1]
    %v30 = vperm.slane %v28, 0
    %v32 = vadd.f32 %v30, 0.0
    %v33 = vld [vmem:[%s0] sm:$0x7]
    %v34 = vld [vmem:[%s1] sm:$0xf]
    %v35 = vld [vmem:[%s1 + $0x4] sm:$0xf]
    %v36 = vld [vmem:[%s1 + $0x8] sm:$0xf]
    %v37 = vld [vmem:[%s1 + $0xc] sm:$0xf]
    %v38 = vld [vmem:[%s1 + $0x10] sm:$0xf]
    %v39 = vld [vmem:[%s1 + $0x14] sm:$0xf]
    %v40 = vld [vmem:[%s1 + $0x18] sm:$0xf]
    %v41 = vld [vmem:[%s1 + $0x1c] sm:$0xf]
    %v42 = vld [vmem:[%s1 + $0x20] sm:$0xf]
    %v43 = vld [vmem:[%s1 + $0x24] sm:$0xf]
    %v44 = vld [vmem:[%s1 + $0x28] sm:$0xf]
    %v45 = vld [vmem:[%s1 + $0x2c] sm:$0xf]
    %v46 = vld [vmem:[%s1 + $0x30] sm:$0xf]
    %v47 = vld [vmem:[%s1 + $0x34] sm:$0xf]
    %v48 = vld [vmem:[%s1 + $0x38] sm:$0xf]
    %v49 = vld [vmem:[%s1 + $0x3c] sm:$0xf]
    %v50 = vld [vmem:[%s1 + $0x40] sm:$0xf]
    %v51 = vld [vmem:[%s1 + $0x44] sm:$0xf]
    %v52 = vld [vmem:[%s1 + $0x48] sm:$0xf]
    %v53 = vld [vmem:[%s1 + $0x4c] sm:$0xf]
    %v54 = vld [vmem:[%s1 + $0x50] sm:$0xf]
    %v55 = vld [vmem:[%s1 + $0x54] sm:$0xf]
    %v56 = vld [vmem:[%s1 + $0x58] sm:$0xf]
    %v57 = vld [vmem:[%s1 + $0x5c] sm:$0xf]
    %v58 = vld [vmem:[%s1 + $0x60] sm:$0xf]
    %v59 = vld [vmem:[%s1 + $0x64] sm:$0xf]
    %v60 = vld [vmem:[%s1 + $0x68] sm:$0xf]
    %v61 = vld [vmem:[%s1 + $0x6c] sm:$0xf]
    %v62 = vld [vmem:[%s1 + $0x70] sm:$0xf]
    %v63 = vld [vmem:[%s1 + $0x74] sm:$0xf]
    %v64 = vld [vmem:[%s1 + $0x78] sm:$0xf]
    %v65 = vld [vmem:[%s1 + $0x7c] sm:$0xf]
    %v66 = vld [vmem:[%s1 + $0x80] sm:$0xf]
    %v67 = vld [vmem:[%s1 + $0x84] sm:$0xf]
    %v68 = vld [vmem:[%s1 + $0x88] sm:$0xf]
    %v69 = vld [vmem:[%s1 + $0x8c] sm:$0xf]
    %v70 = vld [vmem:[%s2] sm:$0x1]
    %v72 = vperm.slane %v70, 0
    %75 = vst [vmem:[#allocation1] ss:$9 sm:$0xff] %v33
    %v76 = vld [vmem:[#allocation1] sm:$0xff]
    %v77 = vld [vmem:[#allocation1 + $0x9] sm:$0xff]
    %v78 = vld [vmem:[#allocation1 + $0x12] sm:$0xff]
    %v117 = vunpack.c.l.b16 %v34
    %v118 = vunpack.c.l.b16 %v35
    %v119 = vunpack.c.l.b16 %v36
    %v120 = vunpack.c.l.b16 %v37
    %v121 = vunpack.c.l.b16 %v38
    %v122 = vunpack.c.l.b16 %v39
    %v123 = vunpack.c.l.b16 %v40
    %v124 = vunpack.c.l.b16 %v41
    %v125 = vunpack.c.l.b16 %v42
    %v126 = vunpack.c.l.b16 %v43
    %v127 = vunpack.c.l.b16 %v44
    %v128 = vunpack.c.l.b16 %v45
    %v129 = vunpack.c.l.b16 %v46
    %v130 = vunpack.c.l.b16 %v47
    %v131 = vunpack.c.l.b16 %v48
    %v132 = vunpack.c.l.b16 %v49
    %v133 = vunpack.c.l.b16 %v50
    %v134 = vunpack.c.l.b16 %v51
    %v135 = vunpack.c.l.b16 %v52
    %v136 = vunpack.c.l.b16 %v53
    %v137 = vunpack.c.l.b16 %v54
    %v138 = vunpack.c.l.b16 %v55
    %v139 = vunpack.c.l.b16 %v56
    %v140 = vunpack.c.l.b16 %v57
    %v141 = vunpack.c.l.b16 %v58
    %v142 = vunpack.c.l.b16 %v59
    %v143 = vunpack.c.l.b16 %v60
    %v144 = vunpack.c.l.b16 %v61
    %v145 = vunpack.c.l.b16 %v62
    %v146 = vunpack.c.l.b16 %v63
    %v147 = vunpack.c.l.b16 %v64
    %v148 = vunpack.c.l.b16 %v65
    %v149 = vunpack.c.l.b16 %v66
    %v150 = vunpack.c.l.b16 %v67
    %v151 = vunpack.c.l.b16 %v68
    %v152 = vunpack.c.l.b16 %v69
    %v153 = vpack.c.b16 %v118, %v117
    %v154 = vpack.c.b16 %v120, %v119
    %v155 = vpack.c.b16 %v122, %v121
    %v156 = vpack.c.b16 %v124, %v123
    %v157 = vpack.c.b16 %v126, %v125
    %v158 = vpack.c.b16 %v128, %v127
    %v159 = vpack.c.b16 %v130, %v129
    %v160 = vpack.c.b16 %v132, %v131
    %v161 = vpack.c.b16 %v134, %v133
    %v162 = vpack.c.b16 %v136, %v135
    %v163 = vpack.c.b16 %v138, %v137
    %v164 = vpack.c.b16 %v140, %v139
    %v165 = vpack.c.b16 %v142, %v141
    %v166 = vpack.c.b16 %v144, %v143
    %v167 = vpack.c.b16 %v146, %v145
    %v168 = vpack.c.b16 %v148, %v147
    %v169 = vpack.c.b16 %v150, %v149
    %v170 = vpack.c.b16 %v152, %v151
    %vm189 = vcmask 261120
    %v190 = vsel %vm189, %v78, 0
    %192 = vmatpush.bf16.msra.mxu0 %v160
    %193 = vmatpush.bf16.msra.mxu0 %v159
    %194 = vmatpush.bf16.msra.mxu0 %v158
    %195 = vmatpush.bf16.msra.mxu0 %v157
    %196 = vmatpush.bf16.msra.mxu0 %v156
    %197 = vmatpush.bf16.msra.mxu0 %v155
    %198 = vmatpush.bf16.msra.mxu0 %v154
    %199 = vmatpush.bf16.msra.mxu0 %v153
    %200 = vmatmul.bf16.gmra.mxu0 %v76
    %v201 = vpop.f32.mrf.mxu0
    %v202 = vadd.f32 %v72, %v201
    %v203 = vpop.f32.mrf.mxu0
    %204 = vdwg.mxu0
    %205 = vmatpush.bf16.msra.mxu0 %v168
    %206 = vmatpush.bf16.msra.mxu0 %v167
    %207 = vmatpush.bf16.msra.mxu0 %v166
    %208 = vmatpush.bf16.msra.mxu0 %v165
    %209 = vmatpush.bf16.msra.mxu0 %v164
    %210 = vmatpush.bf16.msra.mxu0 %v163
    %211 = vmatpush.bf16.msra.mxu0 %v162
    %212 = vmatpush.bf16.msra.mxu0 %v161
    %213 = vmatmul.bf16.gmra.mxu0 %v77
    %v214 = vpop.f32.mrf.mxu0
    %v215 = vadd.f32 %v202, %v214
    %v216 = vpop.f32.mrf.mxu0
    %217 = vdwg.mxu0
    %218 = vmatpush.bf16.msra.mxu0 0
    %219 = vmatpush.bf16.msra.mxu0 0
    %220 = vmatpush.bf16.msra.mxu0 0
    %221 = vmatpush.bf16.msra.mxu0 0
    %222 = vmatpush.bf16.msra.mxu0 0
    %223 = vmatpush.bf16.msra.mxu0 0
    %224 = vmatpush.bf16.msra.mxu0 %v170
    %225 = vmatpush.bf16.msra.mxu0 %v169
    %226 = vmatmul.bf16.gmra.mxu0 %v190
    %v227 = vpop.f32.mrf.mxu0
    %v228 = vadd.f32 %v215, %v227
    %v229 = vpop.f32.mrf.mxu0
    %230 = vdwg.mxu0
    %v231 = vmax.f32 %v228, 0.0
    %v232 = vpack.c.bf16 %v231, %v231
    %v233 = vld [vmem:[%s3] sm:$0xf]
    %v234 = vld [vmem:[%s3 + $0x4] sm:$0xf]
    %v235 = vld [vmem:[%s3 + $0x8] sm:$0xf]
    %v236 = vld [vmem:[%s3 + $0xc] sm:$0xf]
    %v237 = vld [vmem:[%s3 + $0x10] sm:$0xf]
    %v238 = vld [vmem:[%s3 + $0x14] sm:$0xf]
    %v239 = vld [vmem:[%s3 + $0x18] sm:$0xf]
    %v240 = vld [vmem:[%s3 + $0x1c] sm:$0xf]
    %v249 = vunpack.c.l.b16 %v233
    %v250 = vunpack.c.l.b16 %v234
    %v251 = vunpack.c.l.b16 %v235
    %v252 = vunpack.c.l.b16 %v236
    %v253 = vunpack.c.l.b16 %v237
    %v254 = vunpack.c.l.b16 %v238
    %v255 = vunpack.c.l.b16 %v239
    %v256 = vunpack.c.l.b16 %v240
    %v257 = vpack.c.b16 %v250, %v249
    %v258 = vpack.c.b16 %v252, %v251
    %v259 = vpack.c.b16 %v254, %v253
    %v260 = vpack.c.b16 %v256, %v255
    %vm265 = vcmask 523264
    %v267 = vsel %vm265, %v232, 0
    %269 = vmatpush.bf16.msra.mxu0 0
    %270 = vmatpush.bf16.msra.mxu0 0
    %271 = vmatpush.bf16.msra.mxu0 0
    %272 = vmatpush.bf16.msra.mxu0 0
    %273 = vmatpush.bf16.msra.mxu0 %v260
    %274 = vmatpush.bf16.msra.mxu0 %v259
    %275 = vmatpush.bf16.msra.mxu0 %v258
    %276 = vmatpush.bf16.msra.mxu0 %v257
    %277 = vmatmul.bf16.gmra.mxu0 %v267
    %v278 = vpop.f32.mrf.mxu0
    %v279 = vadd.f32 0.0, %v278
    %v280 = vpop.f32.mrf.mxu0
    %281 = vdwg.mxu0
    %v282 = vadd.f32 %v32, %v279
    %s283 = scalar_lea.vmem %s0, 3
    %v284 = vld [vmem:[%s283] sm:$0x7]
    %286 = vst [vmem:[#allocation1] ss:$9 sm:$0xff] %v284
    %v287 = vld [vmem:[#allocation1] sm:$0xff]
    %v288 = vld [vmem:[#allocation1 + $0x9] sm:$0xff]
    %v289 = vld [vmem:[#allocation1 + $0x12] sm:$0xff]
    %v292 = vsel %vm189, %v289, 0
    %294 = vmatpush.bf16.msra.mxu0 %v160
    %295 = vmatpush.bf16.msra.mxu0 %v159
    %296 = vmatpush.bf16.msra.mxu0 %v158
    %297 = vmatpush.bf16.msra.mxu0 %v157
    %298 = vmatpush.bf16.msra.mxu0 %v156
    %299 = vmatpush.bf16.msra.mxu0 %v155
    %300 = vmatpush.bf16.msra.mxu0 %v154
    %301 = vmatpush.bf16.msra.mxu0 %v153
    %302 = vmatmul.bf16.gmra.mxu0 %v287
    %v303 = vpop.f32.mrf.mxu0
    %v304 = vadd.f32 %v72, %v303
    %v305 = vpop.f32.mrf.mxu0
    %306 = vdwg.mxu0
    %307 = vmatpush.bf16.msra.mxu0 %v168
    %308 = vmatpush.bf16.msra.mxu0 %v167
    %309 = vmatpush.bf16.msra.mxu0 %v166
    %310 = vmatpush.bf16.msra.mxu0 %v165
    %311 = vmatpush.bf16.msra.mxu0 %v164
    %312 = vmatpush.bf16.msra.mxu0 %v163
    %313 = vmatpush.bf16.msra.mxu0 %v162
    %314 = vmatpush.bf16.msra.mxu0 %v161
    %315 = vmatmul.bf16.gmra.mxu0 %v288
    %v316 = vpop.f32.mrf.mxu0
    %v317 = vadd.f32 %v304, %v316
    %v318 = vpop.f32.mrf.mxu0
    %319 = vdwg.mxu0
    %320 = vmatpush.bf16.msra.mxu0 0
    %321 = vmatpush.bf16.msra.mxu0 0
    %322 = vmatpush.bf16.msra.mxu0 0
    %323 = vmatpush.bf16.msra.mxu0 0
    %324 = vmatpush.bf16.msra.mxu0 0
    %325 = vmatpush.bf16.msra.mxu0 0
    %326 = vmatpush.bf16.msra.mxu0 %v170
    %327 = vmatpush.bf16.msra.mxu0 %v169
    %328 = vmatmul.bf16.gmra.mxu0 %v292
    %v329 = vpop.f32.mrf.mxu0
    %v330 = vadd.f32 %v317, %v329
    %v331 = vpop.f32.mrf.mxu0
    %332 = vdwg.mxu0
    %v333 = vmax.f32 %v330, 0.0
    %v334 = vpack.c.bf16 %v333, %v333
    %s335 = scalar_lea.vmem %s3, 32
    %v336 = vld [vmem:[%s335] sm:$0xf]
    %v337 = vld [vmem:[%s335 + $0x4] sm:$0xf]
    %v338 = vld [vmem:[%s335 + $0x8] sm:$0xf]
    %v339 = vld [vmem:[%s335 + $0xc] sm:$0xf]
    %v340 = vld [vmem:[%s335 + $0x10] sm:$0xf]
    %v341 = vld [vmem:[%s335 + $0x14] sm:$0xf]
    %v342 = vld [vmem:[%s335 + $0x18] sm:$0xf]
    %v343 = vld [vmem:[%s335 + $0x1c] sm:$0xf]
    %v352 = vunpack.c.l.b16 %v336
    %v353 = vunpack.c.l.b16 %v337
    %v354 = vunpack.c.l.b16 %v338
    %v355 = vunpack.c.l.b16 %v339
    %v356 = vunpack.c.l.b16 %v340
    %v357 = vunpack.c.l.b16 %v341
    %v358 = vunpack.c.l.b16 %v342
    %v359 = vunpack.c.l.b16 %v343
    %v360 = vpack.c.b16 %v353, %v352
    %v361 = vpack.c.b16 %v355, %v354
    %v362 = vpack.c.b16 %v357, %v356
    %v363 = vpack.c.b16 %v359, %v358
    %v369 = vsel %vm265, %v334, 0
    %371 = vmatpush.bf16.msra.mxu0 0
    %372 = vmatpush.bf16.msra.mxu0 0
    %373 = vmatpush.bf16.msra.mxu0 0
    %374 = vmatpush.bf16.msra.mxu0 0
    %375 = vmatpush.bf16.msra.mxu0 %v363
    %376 = vmatpush.bf16.msra.mxu0 %v362
    %377 = vmatpush.bf16.msra.mxu0 %v361
    %378 = vmatpush.bf16.msra.mxu0 %v360
    %379 = vmatmul.bf16.gmra.mxu0 %v369
    %v380 = vpop.f32.mrf.mxu0
    %v381 = vadd.f32 0.0, %v380
    %v382 = vpop.f32.mrf.mxu0
    %383 = vdwg.mxu0
    %v384 = vadd.f32 %v282, %v381
    %s385 = scalar_lea.vmem %s0, 6
    %v386 = vld [vmem:[%s385] sm:$0x7]
    %388 = vst [vmem:[#allocation1] ss:$9 sm:$0xff] %v386
    %v389 = vld [vmem:[#allocation1] sm:$0xff]
    %v390 = vld [vmem:[#allocation1 + $0x9] sm:$0xff]
    %v391 = vld [vmem:[#allocation1 + $0x12] sm:$0xff]
    %v394 = vsel %vm189, %v391, 0
    %396 = vmatpush.bf16.msra.mxu0 %v160
    %397 = vmatpush.bf16.msra.mxu0 %v159
    %398 = vmatpush.bf16.msra.mxu0 %v158
    %399 = vmatpush.bf16.msra.mxu0 %v157
    %400 = vmatpush.bf16.msra.mxu0 %v156
    %401 = vmatpush.bf16.msra.mxu0 %v155
    %402 = vmatpush.bf16.msra.mxu0 %v154
    %403 = vmatpush.bf16.msra.mxu0 %v153
    %404 = vmatmul.bf16.gmra.mxu0 %v389
    %v405 = vpop.f32.mrf.mxu0
    %v406 = vadd.f32 %v72, %v405
    %v407 = vpop.f32.mrf.mxu0
    %408 = vdwg.mxu0
    %409 = vmatpush.bf16.msra.mxu0 %v168
    %410 = vmatpush.bf16.msra.mxu0 %v167
    %411 = vmatpush.bf16.msra.mxu0 %v166
    %412 = vmatpush.bf16.msra.mxu0 %v165
    %413 = vmatpush.bf16.msra.mxu0 %v164
    %414 = vmatpush.bf16.msra.mxu0 %v163
    %415 = vmatpush.bf16.msra.mxu0 %v162
    %416 = vmatpush.bf16.msra.mxu0 %v161
    %417 = vmatmul.bf16.gmra.mxu0 %v390
    %v418 = vpop.f32.mrf.mxu0
    %v419 = vadd.f32 %v406, %v418
    %v420 = vpop.f32.mrf.mxu0
    %421 = vdwg.mxu0
    %422 = vmatpush.bf16.msra.mxu0 0
    %423 = vmatpush.bf16.msra.mxu0 0
    %424 = vmatpush.bf16.msra.mxu0 0
    %425 = vmatpush.bf16.msra.mxu0 0
    %426 = vmatpush.bf16.msra.mxu0 0
    %427 = vmatpush.bf16.msra.mxu0 0
    %428 = vmatpush.bf16.msra.mxu0 %v170
    %429 = vmatpush.bf16.msra.mxu0 %v169
    %430 = vmatmul.bf16.gmra.mxu0 %v394
    %v431 = vpop.f32.mrf.mxu0
    %v432 = vadd.f32 %v419, %v431
    %v433 = vpop.f32.mrf.mxu0
    %434 = vdwg.mxu0
    %v435 = vmax.f32 %v432, 0.0
    %v436 = vpack.c.bf16 %v435, %v435
    %s437 = scalar_lea.vmem %s3, 64
    %v438 = vld [vmem:[%s437] sm:$0xf]
    %v439 = vld [vmem:[%s437 + $0x4] sm:$0xf]
    %v440 = vld [vmem:[%s437 + $0x8] sm:$0xf]
    %v441 = vld [vmem:[%s437 + $0xc] sm:$0xf]
    %v442 = vld [vmem:[%s437 + $0x10] sm:$0xf]
    %v443 = vld [vmem:[%s437 + $0x14] sm:$0xf]
    %v444 = vld [vmem:[%s437 + $0x18] sm:$0xf]
    %v445 = vld [vmem:[%s437 + $0x1c] sm:$0xf]
    %v454 = vunpack.c.l.b16 %v438
    %v455 = vunpack.c.l.b16 %v439
    %v456 = vunpack.c.l.b16 %v440
    %v457 = vunpack.c.l.b16 %v441
    %v458 = vunpack.c.l.b16 %v442
    %v459 = vunpack.c.l.b16 %v443
    %v460 = vunpack.c.l.b16 %v444
    %v461 = vunpack.c.l.b16 %v445
    %v462 = vpack.c.b16 %v455, %v454
    %v463 = vpack.c.b16 %v457, %v456
    %v464 = vpack.c.b16 %v459, %v458
    %v465 = vpack.c.b16 %v461, %v460
    %v471 = vsel %vm265, %v436, 0
    %473 = vmatpush.bf16.msra.mxu0 0
    %474 = vmatpush.bf16.msra.mxu0 0
    %475 = vmatpush.bf16.msra.mxu0 0
    %476 = vmatpush.bf16.msra.mxu0 0
    %477 = vmatpush.bf16.msra.mxu0 %v465
    %478 = vmatpush.bf16.msra.mxu0 %v464
    %479 = vmatpush.bf16.msra.mxu0 %v463
    %480 = vmatpush.bf16.msra.mxu0 %v462
    %481 = vmatmul.bf16.gmra.mxu0 %v471
    %v482 = vpop.f32.mrf.mxu0
    %v483 = vadd.f32 0.0, %v482
    %v484 = vpop.f32.mrf.mxu0
    %485 = vdwg.mxu0
    %v486 = vadd.f32 %v384, %v483
    %s487 = scalar_lea.vmem %s0, 9
    %v488 = vld [vmem:[%s487] sm:$0x7]
    %490 = vst [vmem:[#allocation1] ss:$9 sm:$0xff] %v488
    %v491 = vld [vmem:[#allocation1] sm:$0xff]
    %v492 = vld [vmem:[#allocation1 + $0x9] sm:$0xff]
    %v493 = vld [vmem:[#allocation1 + $0x12] sm:$0xff]
    %v496 = vsel %vm189, %v493, 0
    %498 = vmatpush.bf16.msra.mxu0 %v160
    %499 = vmatpush.bf16.msra.mxu0 %v159
    %500 = vmatpush.bf16.msra.mxu0 %v158
    %501 = vmatpush.bf16.msra.mxu0 %v157
    %502 = vmatpush.bf16.msra.mxu0 %v156
    %503 = vmatpush.bf16.msra.mxu0 %v155
    %504 = vmatpush.bf16.msra.mxu0 %v154
    %505 = vmatpush.bf16.msra.mxu0 %v153
    %506 = vmatmul.bf16.gmra.mxu0 %v491
    %v507 = vpop.f32.mrf.mxu0
    %v508 = vadd.f32 %v72, %v507
    %v509 = vpop.f32.mrf.mxu0
    %510 = vdwg.mxu0
    %511 = vmatpush.bf16.msra.mxu0 %v168
    %512 = vmatpush.bf16.msra.mxu0 %v167
    %513 = vmatpush.bf16.msra.mxu0 %v166
    %514 = vmatpush.bf16.msra.mxu0 %v165
    %515 = vmatpush.bf16.msra.mxu0 %v164
    %516 = vmatpush.bf16.msra.mxu0 %v163
    %517 = vmatpush.bf16.msra.mxu0 %v162
    %518 = vmatpush.bf16.msra.mxu0 %v161
    %519 = vmatmul.bf16.gmra.mxu0 %v492
    %v520 = vpop.f32.mrf.mxu0
    %v521 = vadd.f32 %v508, %v520
    %v522 = vpop.f32.mrf.mxu0
    %523 = vdwg.mxu0
    %524 = vmatpush.bf16.msra.mxu0 0
    %525 = vmatpush.bf16.msra.mxu0 0
    %526 = vmatpush.bf16.msra.mxu0 0
    %527 = vmatpush.bf16.msra.mxu0 0
    %528 = vmatpush.bf16.msra.mxu0 0
    %529 = vmatpush.bf16.msra.mxu0 0
    %530 = vmatpush.bf16.msra.mxu0 %v170
    %531 = vmatpush.bf16.msra.mxu0 %v169
    %532 = vmatmul.bf16.gmra.mxu0 %v496
    %v533 = vpop.f32.mrf.mxu0
    %v534 = vadd.f32 %v521, %v533
    %v535 = vpop.f32.mrf.mxu0
    %536 = vdwg.mxu0
    %v537 = vmax.f32 %v534, 0.0
    %v538 = vpack.c.bf16 %v537, %v537
    %s539 = scalar_lea.vmem %s3, 96
    %v540 = vld [vmem:[%s539] sm:$0xf]
    %v541 = vld [vmem:[%s539 + $0x4] sm:$0xf]
    %v542 = vld [vmem:[%s539 + $0x8] sm:$0xf]
    %v543 = vld [vmem:[%s539 + $0xc] sm:$0xf]
    %v544 = vld [vmem:[%s539 + $0x10] sm:$0xf]
    %v545 = vld [vmem:[%s539 + $0x14] sm:$0xf]
    %v546 = vld [vmem:[%s539 + $0x18] sm:$0xf]
    %v547 = vld [vmem:[%s539 + $0x1c] sm:$0xf]
    %v556 = vunpack.c.l.b16 %v540
    %v557 = vunpack.c.l.b16 %v541
    %v558 = vunpack.c.l.b16 %v542
    %v559 = vunpack.c.l.b16 %v543
    %v560 = vunpack.c.l.b16 %v544
    %v561 = vunpack.c.l.b16 %v545
    %v562 = vunpack.c.l.b16 %v546
    %v563 = vunpack.c.l.b16 %v547
    %v564 = vpack.c.b16 %v557, %v556
    %v565 = vpack.c.b16 %v559, %v558
    %v566 = vpack.c.b16 %v561, %v560
    %v567 = vpack.c.b16 %v563, %v562
    %v573 = vsel %vm265, %v538, 0
    %575 = vmatpush.bf16.msra.mxu0 0
    %576 = vmatpush.bf16.msra.mxu0 0
    %577 = vmatpush.bf16.msra.mxu0 0
    %578 = vmatpush.bf16.msra.mxu0 0
    %579 = vmatpush.bf16.msra.mxu0 %v567
    %580 = vmatpush.bf16.msra.mxu0 %v566
    %581 = vmatpush.bf16.msra.mxu0 %v565
    %582 = vmatpush.bf16.msra.mxu0 %v564
    %583 = vmatmul.bf16.gmra.mxu0 %v573
    %v584 = vpop.f32.mrf.mxu0
    %v585 = vadd.f32 0.0, %v584
    %v586 = vpop.f32.mrf.mxu0
    %587 = vdwg.mxu0
    %v588 = vadd.f32 %v486, %v585
    %s589 = scalar_lea.vmem %s0, 12
    %v590 = vld [vmem:[%s589] sm:$0x7]
    %592 = vst [vmem:[#allocation1] ss:$9 sm:$0xff] %v590
    %v593 = vld [vmem:[#allocation1] sm:$0xff]
    %v594 = vld [vmem:[#allocation1 + $0x9] sm:$0xff]
    %v595 = vld [vmem:[#allocation1 + $0x12] sm:$0xff]
    %v598 = vsel %vm189, %v595, 0
    %600 = vmatpush.bf16.msra.mxu0 %v160
    %601 = vmatpush.bf16.msra.mxu0 %v159
    %602 = vmatpush.bf16.msra.mxu0 %v158
    %603 = vmatpush.bf16.msra.mxu0 %v157
    %604 = vmatpush.bf16.msra.mxu0 %v156
    %605 = vmatpush.bf16.msra.mxu0 %v155
    %606 = vmatpush.bf16.msra.mxu0 %v154
    %607 = vmatpush.bf16.msra.mxu0 %v153
    %608 = vmatmul.bf16.gmra.mxu0 %v593
    %v609 = vpop.f32.mrf.mxu0
    %v610 = vadd.f32 %v72, %v609
    %v611 = vpop.f32.mrf.mxu0
    %612 = vdwg.mxu0
    %613 = vmatpush.bf16.msra.mxu0 %v168
    %614 = vmatpush.bf16.msra.mxu0 %v167
    %615 = vmatpush.bf16.msra.mxu0 %v166
    %616 = vmatpush.bf16.msra.mxu0 %v165
    %617 = vmatpush.bf16.msra.mxu0 %v164
    %618 = vmatpush.bf16.msra.mxu0 %v163
    %619 = vmatpush.bf16.msra.mxu0 %v162
    %620 = vmatpush.bf16.msra.mxu0 %v161
    %621 = vmatmul.bf16.gmra.mxu0 %v594
    %v622 = vpop.f32.mrf.mxu0
    %v623 = vadd.f32 %v610, %v622
    %v624 = vpop.f32.mrf.mxu0
    %625 = vdwg.mxu0
    %626 = vmatpush.bf16.msra.mxu0 0
    %627 = vmatpush.bf16.msra.mxu0 0
    %628 = vmatpush.bf16.msra.mxu0 0
    %629 = vmatpush.bf16.msra.mxu0 0
    %630 = vmatpush.bf16.msra.mxu0 0
    %631 = vmatpush.bf16.msra.mxu0 0
    %632 = vmatpush.bf16.msra.mxu0 %v170
    %633 = vmatpush.bf16.msra.mxu0 %v169
    %634 = vmatmul.bf16.gmra.mxu0 %v598
    %v635 = vpop.f32.mrf.mxu0
    %v636 = vadd.f32 %v623, %v635
    %v637 = vpop.f32.mrf.mxu0
    %638 = vdwg.mxu0
    %v639 = vmax.f32 %v636, 0.0
    %v640 = vpack.c.bf16 %v639, %v639
    %s641 = scalar_lea.vmem %s3, 128
    %v642 = vld [vmem:[%s641] sm:$0xf]
    %v643 = vld [vmem:[%s641 + $0x4] sm:$0xf]
    %v644 = vld [vmem:[%s641 + $0x8] sm:$0xf]
    %v645 = vld [vmem:[%s641 + $0xc] sm:$0xf]
    %v646 = vld [vmem:[%s641 + $0x10] sm:$0xf]
    %v647 = vld [vmem:[%s641 + $0x14] sm:$0xf]
    %v648 = vld [vmem:[%s641 + $0x18] sm:$0xf]
    %v649 = vld [vmem:[%s641 + $0x1c] sm:$0xf]
    %v658 = vunpack.c.l.b16 %v642
    %v659 = vunpack.c.l.b16 %v643
    %v660 = vunpack.c.l.b16 %v644
    %v661 = vunpack.c.l.b16 %v645
    %v662 = vunpack.c.l.b16 %v646
    %v663 = vunpack.c.l.b16 %v647
    %v664 = vunpack.c.l.b16 %v648
    %v665 = vunpack.c.l.b16 %v649
    %v666 = vpack.c.b16 %v659, %v658
    %v667 = vpack.c.b16 %v661, %v660
    %v668 = vpack.c.b16 %v663, %v662
    %v669 = vpack.c.b16 %v665, %v664
    %v675 = vsel %vm265, %v640, 0
    %677 = vmatpush.bf16.msra.mxu0 0
    %678 = vmatpush.bf16.msra.mxu0 0
    %679 = vmatpush.bf16.msra.mxu0 0
    %680 = vmatpush.bf16.msra.mxu0 0
    %681 = vmatpush.bf16.msra.mxu0 %v669
    %682 = vmatpush.bf16.msra.mxu0 %v668
    %683 = vmatpush.bf16.msra.mxu0 %v667
    %684 = vmatpush.bf16.msra.mxu0 %v666
    %685 = vmatmul.bf16.gmra.mxu0 %v675
    %v686 = vpop.f32.mrf.mxu0
    %v687 = vadd.f32 0.0, %v686
    %v688 = vpop.f32.mrf.mxu0
    %689 = vdwg.mxu0
    %v690 = vadd.f32 %v588, %v687
    %s691 = scalar_lea.vmem %s0, 15
    %v692 = vld [vmem:[%s691] sm:$0x7]
    %694 = vst [vmem:[#allocation1] ss:$9 sm:$0xff] %v692
    %v695 = vld [vmem:[#allocation1] sm:$0xff]
    %v696 = vld [vmem:[#allocation1 + $0x9] sm:$0xff]
    %v697 = vld [vmem:[#allocation1 + $0x12] sm:$0xff]
    %v700 = vsel %vm189, %v697, 0
    %702 = vmatpush.bf16.msra.mxu0 %v160
    %703 = vmatpush.bf16.msra.mxu0 %v159
    %704 = vmatpush.bf16.msra.mxu0 %v158
    %705 = vmatpush.bf16.msra.mxu0 %v157
    %706 = vmatpush.bf16.msra.mxu0 %v156
    %707 = vmatpush.bf16.msra.mxu0 %v155
    %708 = vmatpush.bf16.msra.mxu0 %v154
    %709 = vmatpush.bf16.msra.mxu0 %v153
    %710 = vmatmul.bf16.gmra.mxu0 %v695
    %v711 = vpop.f32.mrf.mxu0
    %v712 = vadd.f32 %v72, %v711
    %v713 = vpop.f32.mrf.mxu0
    %714 = vdwg.mxu0
    %715 = vmatpush.bf16.msra.mxu0 %v168
    %716 = vmatpush.bf16.msra.mxu0 %v167
    %717 = vmatpush.bf16.msra.mxu0 %v166
    %718 = vmatpush.bf16.msra.mxu0 %v165
    %719 = vmatpush.bf16.msra.mxu0 %v164
    %720 = vmatpush.bf16.msra.mxu0 %v163
    %721 = vmatpush.bf16.msra.mxu0 %v162
    %722 = vmatpush.bf16.msra.mxu0 %v161
    %723 = vmatmul.bf16.gmra.mxu0 %v696
    %v724 = vpop.f32.mrf.mxu0
    %v725 = vadd.f32 %v712, %v724
    %v726 = vpop.f32.mrf.mxu0
    %727 = vdwg.mxu0
    %728 = vmatpush.bf16.msra.mxu0 0
    %729 = vmatpush.bf16.msra.mxu0 0
    %730 = vmatpush.bf16.msra.mxu0 0
    %731 = vmatpush.bf16.msra.mxu0 0
    %732 = vmatpush.bf16.msra.mxu0 0
    %733 = vmatpush.bf16.msra.mxu0 0
    %734 = vmatpush.bf16.msra.mxu0 %v170
    %735 = vmatpush.bf16.msra.mxu0 %v169
    %736 = vmatmul.bf16.gmra.mxu0 %v700
    %v737 = vpop.f32.mrf.mxu0
    %v738 = vadd.f32 %v725, %v737
    %v739 = vpop.f32.mrf.mxu0
    %740 = vdwg.mxu0
    %v741 = vmax.f32 %v738, 0.0
    %v742 = vpack.c.bf16 %v741, %v741
    %s743 = scalar_lea.vmem %s3, 160
    %v744 = vld [vmem:[%s743] sm:$0xf]
    %v745 = vld [vmem:[%s743 + $0x4] sm:$0xf]
    %v746 = vld [vmem:[%s743 + $0x8] sm:$0xf]
    %v747 = vld [vmem:[%s743 + $0xc] sm:$0xf]
    %v748 = vld [vmem:[%s743 + $0x10] sm:$0xf]
    %v749 = vld [vmem:[%s743 + $0x14] sm:$0xf]
    %v750 = vld [vmem:[%s743 + $0x18] sm:$0xf]
    %v751 = vld [vmem:[%s743 + $0x1c] sm:$0xf]
    %v760 = vunpack.c.l.b16 %v744
    %v761 = vunpack.c.l.b16 %v745
    %v762 = vunpack.c.l.b16 %v746
    %v763 = vunpack.c.l.b16 %v747
    %v764 = vunpack.c.l.b16 %v748
    %v765 = vunpack.c.l.b16 %v749
    %v766 = vunpack.c.l.b16 %v750
    %v767 = vunpack.c.l.b16 %v751
    %v768 = vpack.c.b16 %v761, %v760
    %v769 = vpack.c.b16 %v763, %v762
    %v770 = vpack.c.b16 %v765, %v764
    %v771 = vpack.c.b16 %v767, %v766
    %v777 = vsel %vm265, %v742, 0
    %779 = vmatpush.bf16.msra.mxu0 0
    %780 = vmatpush.bf16.msra.mxu0 0
    %781 = vmatpush.bf16.msra.mxu0 0
    %782 = vmatpush.bf16.msra.mxu0 0
    %783 = vmatpush.bf16.msra.mxu0 %v771
    %784 = vmatpush.bf16.msra.mxu0 %v770
    %785 = vmatpush.bf16.msra.mxu0 %v769
    %786 = vmatpush.bf16.msra.mxu0 %v768
    %787 = vmatmul.bf16.gmra.mxu0 %v777
    %v788 = vpop.f32.mrf.mxu0
    %v789 = vadd.f32 0.0, %v788
    %v790 = vpop.f32.mrf.mxu0
    %791 = vdwg.mxu0
    %v792 = vadd.f32 %v690, %v789
    %s793 = scalar_lea.vmem %s0, 18
    %v794 = vld [vmem:[%s793] sm:$0x7]
    %796 = vst [vmem:[#allocation1] ss:$9 sm:$0xff] %v794
    %v797 = vld [vmem:[#allocation1] sm:$0xff]
    %v798 = vld [vmem:[#allocation1 + $0x9] sm:$0xff]
    %v799 = vld [vmem:[#allocation1 + $0x12] sm:$0xff]
    %v802 = vsel %vm189, %v799, 0
    %804 = vmatpush.bf16.msra.mxu0 %v160
    %805 = vmatpush.bf16.msra.mxu0 %v159
    %806 = vmatpush.bf16.msra.mxu0 %v158
    %807 = vmatpush.bf16.msra.mxu0 %v157
    %808 = vmatpush.bf16.msra.mxu0 %v156
    %809 = vmatpush.bf16.msra.mxu0 %v155
    %810 = vmatpush.bf16.msra.mxu0 %v154
    %811 = vmatpush.bf16.msra.mxu0 %v153
    %812 = vmatmul.bf16.gmra.mxu0 %v797
    %v813 = vpop.f32.mrf.mxu0
    %v814 = vadd.f32 %v72, %v813
    %v815 = vpop.f32.mrf.mxu0
    %816 = vdwg.mxu0
    %817 = vmatpush.bf16.msra.mxu0 %v168
    %818 = vmatpush.bf16.msra.mxu0 %v167
    %819 = vmatpush.bf16.msra.mxu0 %v166
    %820 = vmatpush.bf16.msra.mxu0 %v165
    %821 = vmatpush.bf16.msra.mxu0 %v164
    %822 = vmatpush.bf16.msra.mxu0 %v163
    %823 = vmatpush.bf16.msra.mxu0 %v162
    %824 = vmatpush.bf16.msra.mxu0 %v161
    %825 = vmatmul.bf16.gmra.mxu0 %v798
    %v826 = vpop.f32.mrf.mxu0
    %v827 = vadd.f32 %v814, %v826
    %v828 = vpop.f32.mrf.mxu0
    %829 = vdwg.mxu0
    %830 = vmatpush.bf16.msra.mxu0 0
    %831 = vmatpush.bf16.msra.mxu0 0
    %832 = vmatpush.bf16.msra.mxu0 0
    %833 = vmatpush.bf16.msra.mxu0 0
    %834 = vmatpush.bf16.msra.mxu0 0
    %835 = vmatpush.bf16.msra.mxu0 0
    %836 = vmatpush.bf16.msra.mxu0 %v170
    %837 = vmatpush.bf16.msra.mxu0 %v169
    %838 = vmatmul.bf16.gmra.mxu0 %v802
    %v839 = vpop.f32.mrf.mxu0
    %v840 = vadd.f32 %v827, %v839
    %v841 = vpop.f32.mrf.mxu0
    %842 = vdwg.mxu0
    %v843 = vmax.f32 %v840, 0.0
    %v844 = vpack.c.bf16 %v843, %v843
    %s845 = scalar_lea.vmem %s3, 192
    %v846 = vld [vmem:[%s845] sm:$0xf]
    %v847 = vld [vmem:[%s845 + $0x4] sm:$0xf]
    %v848 = vld [vmem:[%s845 + $0x8] sm:$0xf]
    %v849 = vld [vmem:[%s845 + $0xc] sm:$0xf]
    %v850 = vld [vmem:[%s845 + $0x10] sm:$0xf]
    %v851 = vld [vmem:[%s845 + $0x14] sm:$0xf]
    %v852 = vld [vmem:[%s845 + $0x18] sm:$0xf]
    %v853 = vld [vmem:[%s845 + $0x1c] sm:$0xf]
    %v862 = vunpack.c.l.b16 %v846
    %v863 = vunpack.c.l.b16 %v847
    %v864 = vunpack.c.l.b16 %v848
    %v865 = vunpack.c.l.b16 %v849
    %v866 = vunpack.c.l.b16 %v850
    %v867 = vunpack.c.l.b16 %v851
    %v868 = vunpack.c.l.b16 %v852
    %v869 = vunpack.c.l.b16 %v853
    %v870 = vpack.c.b16 %v863, %v862
    %v871 = vpack.c.b16 %v865, %v864
    %v872 = vpack.c.b16 %v867, %v866
    %v873 = vpack.c.b16 %v869, %v868
    %v879 = vsel %vm265, %v844, 0
    %881 = vmatpush.bf16.msra.mxu0 0
    %882 = vmatpush.bf16.msra.mxu0 0
    %883 = vmatpush.bf16.msra.mxu0 0
    %884 = vmatpush.bf16.msra.mxu0 0
    %885 = vmatpush.bf16.msra.mxu0 %v873
    %886 = vmatpush.bf16.msra.mxu0 %v872
    %887 = vmatpush.bf16.msra.mxu0 %v871
    %888 = vmatpush.bf16.msra.mxu0 %v870
    %889 = vmatmul.bf16.gmra.mxu0 %v879
    %v890 = vpop.f32.mrf.mxu0
    %v891 = vadd.f32 0.0, %v890
    %v892 = vpop.f32.mrf.mxu0
    %893 = vdwg.mxu0
    %v894 = vadd.f32 %v792, %v891
    %s895 = scalar_lea.vmem %s0, 21
    %v896 = vld [vmem:[%s895] sm:$0x7]
    %898 = vst [vmem:[#allocation1] ss:$9 sm:$0xff] %v896
    %v899 = vld [vmem:[#allocation1] sm:$0xff]
    %v900 = vld [vmem:[#allocation1 + $0x9] sm:$0xff]
    %v901 = vld [vmem:[#allocation1 + $0x12] sm:$0xff]
    %v904 = vsel %vm189, %v901, 0
    %906 = vmatpush.bf16.msra.mxu0 %v160
    %907 = vmatpush.bf16.msra.mxu0 %v159
    %908 = vmatpush.bf16.msra.mxu0 %v158
    %909 = vmatpush.bf16.msra.mxu0 %v157
    %910 = vmatpush.bf16.msra.mxu0 %v156
    %911 = vmatpush.bf16.msra.mxu0 %v155
    %912 = vmatpush.bf16.msra.mxu0 %v154
    %913 = vmatpush.bf16.msra.mxu0 %v153
    %914 = vmatmul.bf16.gmra.mxu0 %v899
    %v915 = vpop.f32.mrf.mxu0
    %v916 = vadd.f32 %v72, %v915
    %v917 = vpop.f32.mrf.mxu0
    %918 = vdwg.mxu0
    %919 = vmatpush.bf16.msra.mxu0 %v168
    %920 = vmatpush.bf16.msra.mxu0 %v167
    %921 = vmatpush.bf16.msra.mxu0 %v166
    %922 = vmatpush.bf16.msra.mxu0 %v165
    %923 = vmatpush.bf16.msra.mxu0 %v164
    %924 = vmatpush.bf16.msra.mxu0 %v163
    %925 = vmatpush.bf16.msra.mxu0 %v162
    %926 = vmatpush.bf16.msra.mxu0 %v161
    %927 = vmatmul.bf16.gmra.mxu0 %v900
    %v928 = vpop.f32.mrf.mxu0
    %v929 = vadd.f32 %v916, %v928
    %v930 = vpop.f32.mrf.mxu0
    %931 = vdwg.mxu0
    %932 = vmatpush.bf16.msra.mxu0 0
    %933 = vmatpush.bf16.msra.mxu0 0
    %934 = vmatpush.bf16.msra.mxu0 0
    %935 = vmatpush.bf16.msra.mxu0 0
    %936 = vmatpush.bf16.msra.mxu0 0
    %937 = vmatpush.bf16.msra.mxu0 0
    %938 = vmatpush.bf16.msra.mxu0 %v170
    %939 = vmatpush.bf16.msra.mxu0 %v169
    %940 = vmatmul.bf16.gmra.mxu0 %v904
    %v941 = vpop.f32.mrf.mxu0
    %v942 = vadd.f32 %v929, %v941
    %v943 = vpop.f32.mrf.mxu0
    %944 = vdwg.mxu0
    %v945 = vmax.f32 %v942, 0.0
    %v946 = vpack.c.bf16 %v945, %v945
    %s947 = scalar_lea.vmem %s3, 224
    %v948 = vld [vmem:[%s947] sm:$0xf]
    %v949 = vld [vmem:[%s947 + $0x4] sm:$0xf]
    %v950 = vld [vmem:[%s947 + $0x8] sm:$0xf]
    %v951 = vld [vmem:[%s947 + $0xc] sm:$0xf]
    %v952 = vld [vmem:[%s947 + $0x10] sm:$0xf]
    %v953 = vld [vmem:[%s947 + $0x14] sm:$0xf]
    %v954 = vld [vmem:[%s947 + $0x18] sm:$0xf]
    %v955 = vld [vmem:[%s947 + $0x1c] sm:$0xf]
    %v964 = vunpack.c.l.b16 %v948
    %v965 = vunpack.c.l.b16 %v949
    %v966 = vunpack.c.l.b16 %v950
    %v967 = vunpack.c.l.b16 %v951
    %v968 = vunpack.c.l.b16 %v952
    %v969 = vunpack.c.l.b16 %v953
    %v970 = vunpack.c.l.b16 %v954
    %v971 = vunpack.c.l.b16 %v955
    %v972 = vpack.c.b16 %v965, %v964
    %v973 = vpack.c.b16 %v967, %v966
    %v974 = vpack.c.b16 %v969, %v968
    %v975 = vpack.c.b16 %v971, %v970
    %v981 = vsel %vm265, %v946, 0
    %983 = vmatpush.bf16.msra.mxu0 0
    %984 = vmatpush.bf16.msra.mxu0 0
    %985 = vmatpush.bf16.msra.mxu0 0
    %986 = vmatpush.bf16.msra.mxu0 0
    %987 = vmatpush.bf16.msra.mxu0 %v975
    %988 = vmatpush.bf16.msra.mxu0 %v974
    %989 = vmatpush.bf16.msra.mxu0 %v973
    %990 = vmatpush.bf16.msra.mxu0 %v972
    %991 = vmatmul.bf16.gmra.mxu0 %v981
    %v992 = vpop.f32.mrf.mxu0
    %v993 = vadd.f32 0.0, %v992
    %v994 = vpop.f32.mrf.mxu0
    %995 = vdwg.mxu0
    %v996 = vadd.f32 %v894, %v993
    %s997 = scalar_lea.vmem %s0, 24
    %v998 = vld [vmem:[%s997] sm:$0x7]
    %1000 = vst [vmem:[#allocation1] ss:$9 sm:$0xff] %v998
    %v1001 = vld [vmem:[#allocation1] sm:$0xff]
    %v1002 = vld [vmem:[#allocation1 + $0x9] sm:$0xff]
    %v1003 = vld [vmem:[#allocation1 + $0x12] sm:$0xff]
    %v1006 = vsel %vm189, %v1003, 0
    %1008 = vmatpush.bf16.msra.mxu0 %v160
    %1009 = vmatpush.bf16.msra.mxu0 %v159
    %1010 = vmatpush.bf16.msra.mxu0 %v158
    %1011 = vmatpush.bf16.msra.mxu0 %v157
    %1012 = vmatpush.bf16.msra.mxu0 %v156
    %1013 = vmatpush.bf16.msra.mxu0 %v155
    %1014 = vmatpush.bf16.msra.mxu0 %v154
    %1015 = vmatpush.bf16.msra.mxu0 %v153
    %1016 = vmatmul.bf16.gmra.mxu0 %v1001
    %v1017 = vpop.f32.mrf.mxu0
    %v1018 = vadd.f32 %v72, %v1017
    %v1019 = vpop.f32.mrf.mxu0
    %1020 = vdwg.mxu0
    %1021 = vmatpush.bf16.msra.mxu0 %v168
    %1022 = vmatpush.bf16.msra.mxu0 %v167
    %1023 = vmatpush.bf16.msra.mxu0 %v166
    %1024 = vmatpush.bf16.msra.mxu0 %v165
    %1025 = vmatpush.bf16.msra.mxu0 %v164
    %1026 = vmatpush.bf16.msra.mxu0 %v163
    %1027 = vmatpush.bf16.msra.mxu0 %v162
    %1028 = vmatpush.bf16.msra.mxu0 %v161
    %1029 = vmatmul.bf16.gmra.mxu0 %v1002
    %v1030 = vpop.f32.mrf.mxu0
    %v1031 = vadd.f32 %v1018, %v1030
    %v1032 = vpop.f32.mrf.mxu0
    %1033 = vdwg.mxu0
    %1034 = vmatpush.bf16.msra.mxu0 0
    %1035 = vmatpush.bf16.msra.mxu0 0
    %1036 = vmatpush.bf16.msra.mxu0 0
    %1037 = vmatpush.bf16.msra.mxu0 0
    %1038 = vmatpush.bf16.msra.mxu0 0
    %1039 = vmatpush.bf16.msra.mxu0 0
    %1040 = vmatpush.bf16.msra.mxu0 %v170
    %1041 = vmatpush.bf16.msra.mxu0 %v169
    %1042 = vmatmul.bf16.gmra.mxu0 %v1006
    %v1043 = vpop.f32.mrf.mxu0
    %v1044 = vadd.f32 %v1031, %v1043
    %v1045 = vpop.f32.mrf.mxu0
    %1046 = vdwg.mxu0
    %v1047 = vmax.f32 %v1044, 0.0
    %v1048 = vpack.c.bf16 %v1047, %v1047
    %s1049 = scalar_lea.vmem %s3, 256
    %v1050 = vld [vmem:[%s1049] sm:$0xf]
    %v1051 = vld [vmem:[%s1049 + $0x4] sm:$0xf]
    %v1052 = vld [vmem:[%s1049 + $0x8] sm:$0xf]
    %v1053 = vld [vmem:[%s1049 + $0xc] sm:$0xf]
    %v1054 = vld [vmem:[%s1049 + $0x10] sm:$0xf]
    %v1055 = vld [vmem:[%s1049 + $0x14] sm:$0xf]
    %v1056 = vld [vmem:[%s1049 + $0x18] sm:$0xf]
    %v1057 = vld [vmem:[%s1049 + $0x1c] sm:$0xf]
    %v1066 = vunpack.c.l.b16 %v1050
    %v1067 = vunpack.c.l.b16 %v1051
    %v1068 = vunpack.c.l.b16 %v1052
    %v1069 = vunpack.c.l.b16 %v1053
    %v1070 = vunpack.c.l.b16 %v1054
    %v1071 = vunpack.c.l.b16 %v1055
    %v1072 = vunpack.c.l.b16 %v1056
    %v1073 = vunpack.c.l.b16 %v1057
    %v1074 = vpack.c.b16 %v1067, %v1066
    %v1075 = vpack.c.b16 %v1069, %v1068
    %v1076 = vpack.c.b16 %v1071, %v1070
    %v1077 = vpack.c.b16 %v1073, %v1072
    %v1083 = vsel %vm265, %v1048, 0
    %1085 = vmatpush.bf16.msra.mxu0 0
    %1086 = vmatpush.bf16.msra.mxu0 0
    %1087 = vmatpush.bf16.msra.mxu0 0
    %1088 = vmatpush.bf16.msra.mxu0 0
    %1089 = vmatpush.bf16.msra.mxu0 %v1077
    %1090 = vmatpush.bf16.msra.mxu0 %v1076
    %1091 = vmatpush.bf16.msra.mxu0 %v1075
    %1092 = vmatpush.bf16.msra.mxu0 %v1074
    %1093 = vmatmul.bf16.gmra.mxu0 %v1083
    %v1094 = vpop.f32.mrf.mxu0
    %v1095 = vadd.f32 0.0, %v1094
    %v1096 = vpop.f32.mrf.mxu0
    %1097 = vdwg.mxu0
    %v1098 = vadd.f32 %v996, %v1095
    %s1099 = scalar_lea.vmem %s0, 27
    %v1100 = vld [vmem:[%s1099] sm:$0x7]
    %1102 = vst [vmem:[#allocation1] ss:$9 sm:$0xff] %v1100
    %v1103 = vld [vmem:[#allocation1] sm:$0xff]
    %v1104 = vld [vmem:[#allocation1 + $0x9] sm:$0xff]
    %v1105 = vld [vmem:[#allocation1 + $0x12] sm:$0xff]
    %v1108 = vsel %vm189, %v1105, 0
    %1110 = vmatpush.bf16.msra.mxu0 %v160
    %1111 = vmatpush.bf16.msra.mxu0 %v159
    %1112 = vmatpush.bf16.msra.mxu0 %v158
    %1113 = vmatpush.bf16.msra.mxu0 %v157
    %1114 = vmatpush.bf16.msra.mxu0 %v156
    %1115 = vmatpush.bf16.msra.mxu0 %v155
    %1116 = vmatpush.bf16.msra.mxu0 %v154
    %1117 = vmatpush.bf16.msra.mxu0 %v153
    %1118 = vmatmul.bf16.gmra.mxu0 %v1103
    %v1119 = vpop.f32.mrf.mxu0
    %v1120 = vadd.f32 %v72, %v1119
    %v1121 = vpop.f32.mrf.mxu0
    %1122 = vdwg.mxu0
    %1123 = vmatpush.bf16.msra.mxu0 %v168
    %1124 = vmatpush.bf16.msra.mxu0 %v167
    %1125 = vmatpush.bf16.msra.mxu0 %v166
    %1126 = vmatpush.bf16.msra.mxu0 %v165
    %1127 = vmatpush.bf16.msra.mxu0 %v164
    %1128 = vmatpush.bf16.msra.mxu0 %v163
    %1129 = vmatpush.bf16.msra.mxu0 %v162
    %1130 = vmatpush.bf16.msra.mxu0 %v161
    %1131 = vmatmul.bf16.gmra.mxu0 %v1104
    %v1132 = vpop.f32.mrf.mxu0
    %v1133 = vadd.f32 %v1120, %v1132
    %v1134 = vpop.f32.mrf.mxu0
    %1135 = vdwg.mxu0
    %1136 = vmatpush.bf16.msra.mxu0 0
    %1137 = vmatpush.bf16.msra.mxu0 0
    %1138 = vmatpush.bf16.msra.mxu0 0
    %1139 = vmatpush.bf16.msra.mxu0 0
    %1140 = vmatpush.bf16.msra.mxu0 0
    %1141 = vmatpush.bf16.msra.mxu0 0
    %1142 = vmatpush.bf16.msra.mxu0 %v170
    %1143 = vmatpush.bf16.msra.mxu0 %v169
    %1144 = vmatmul.bf16.gmra.mxu0 %v1108
    %v1145 = vpop.f32.mrf.mxu0
    %v1146 = vadd.f32 %v1133, %v1145
    %v1147 = vpop.f32.mrf.mxu0
    %1148 = vdwg.mxu0
    %v1149 = vmax.f32 %v1146, 0.0
    %v1150 = vpack.c.bf16 %v1149, %v1149
    %s1151 = scalar_lea.vmem %s3, 288
    %v1152 = vld [vmem:[%s1151] sm:$0xf]
    %v1153 = vld [vmem:[%s1151 + $0x4] sm:$0xf]
    %v1154 = vld [vmem:[%s1151 + $0x8] sm:$0xf]
    %v1155 = vld [vmem:[%s1151 + $0xc] sm:$0xf]
    %v1156 = vld [vmem:[%s1151 + $0x10] sm:$0xf]
    %v1157 = vld [vmem:[%s1151 + $0x14] sm:$0xf]
    %v1158 = vld [vmem:[%s1151 + $0x18] sm:$0xf]
    %v1159 = vld [vmem:[%s1151 + $0x1c] sm:$0xf]
    %v1168 = vunpack.c.l.b16 %v1152
    %v1169 = vunpack.c.l.b16 %v1153
    %v1170 = vunpack.c.l.b16 %v1154
    %v1171 = vunpack.c.l.b16 %v1155
    %v1172 = vunpack.c.l.b16 %v1156
    %v1173 = vunpack.c.l.b16 %v1157
    %v1174 = vunpack.c.l.b16 %v1158
    %v1175 = vunpack.c.l.b16 %v1159
    %v1176 = vpack.c.b16 %v1169, %v1168
    %v1177 = vpack.c.b16 %v1171, %v1170
    %v1178 = vpack.c.b16 %v1173, %v1172
    %v1179 = vpack.c.b16 %v1175, %v1174
    %v1185 = vsel %vm265, %v1150, 0
    %1187 = vmatpush.bf16.msra.mxu0 0
    %1188 = vmatpush.bf16.msra.mxu0 0
    %1189 = vmatpush.bf16.msra.mxu0 0
    %1190 = vmatpush.bf16.msra.mxu0 0
    %1191 = vmatpush.bf16.msra.mxu0 %v1179
    %1192 = vmatpush.bf16.msra.mxu0 %v1178
    %1193 = vmatpush.bf16.msra.mxu0 %v1177
    %1194 = vmatpush.bf16.msra.mxu0 %v1176
    %1195 = vmatmul.bf16.gmra.mxu0 %v1185
    %v1196 = vpop.f32.mrf.mxu0
    %v1197 = vadd.f32 0.0, %v1196
    %v1198 = vpop.f32.mrf.mxu0
    %1199 = vdwg.mxu0
    %v1200 = vadd.f32 %v1098, %v1197
    %s1201 = scalar_lea.vmem %s0, 30
    %v1202 = vld [vmem:[%s1201] sm:$0x7]
    %1204 = vst [vmem:[#allocation1] ss:$9 sm:$0xff] %v1202
    %v1205 = vld [vmem:[#allocation1] sm:$0xff]
    %v1206 = vld [vmem:[#allocation1 + $0x9] sm:$0xff]
    %v1207 = vld [vmem:[#allocation1 + $0x12] sm:$0xff]
    %v1210 = vsel %vm189, %v1207, 0
    %1212 = vmatpush.bf16.msra.mxu0 %v160
    %1213 = vmatpush.bf16.msra.mxu0 %v159
    %1214 = vmatpush.bf16.msra.mxu0 %v158
    %1215 = vmatpush.bf16.msra.mxu0 %v157
    %1216 = vmatpush.bf16.msra.mxu0 %v156
    %1217 = vmatpush.bf16.msra.mxu0 %v155
    %1218 = vmatpush.bf16.msra.mxu0 %v154
    %1219 = vmatpush.bf16.msra.mxu0 %v153
    %1220 = vmatmul.bf16.gmra.mxu0 %v1205
    %v1221 = vpop.f32.mrf.mxu0
    %v1222 = vadd.f32 %v72, %v1221
    %v1223 = vpop.f32.mrf.mxu0
    %1224 = vdwg.mxu0
    %1225 = vmatpush.bf16.msra.mxu0 %v168
    %1226 = vmatpush.bf16.msra.mxu0 %v167
    %1227 = vmatpush.bf16.msra.mxu0 %v166
    %1228 = vmatpush.bf16.msra.mxu0 %v165
    %1229 = vmatpush.bf16.msra.mxu0 %v164
    %1230 = vmatpush.bf16.msra.mxu0 %v163
    %1231 = vmatpush.bf16.msra.mxu0 %v162
    %1232 = vmatpush.bf16.msra.mxu0 %v161
    %1233 = vmatmul.bf16.gmra.mxu0 %v1206
    %v1234 = vpop.f32.mrf.mxu0
    %v1235 = vadd.f32 %v1222, %v1234
    %v1236 = vpop.f32.mrf.mxu0
    %1237 = vdwg.mxu0
    %1238 = vmatpush.bf16.msra.mxu0 0
    %1239 = vmatpush.bf16.msra.mxu0 0
    %1240 = vmatpush.bf16.msra.mxu0 0
    %1241 = vmatpush.bf16.msra.mxu0 0
    %1242 = vmatpush.bf16.msra.mxu0 0
    %1243 = vmatpush.bf16.msra.mxu0 0
    %1244 = vmatpush.bf16.msra.mxu0 %v170
    %1245 = vmatpush.bf16.msra.mxu0 %v169
    %1246 = vmatmul.bf16.gmra.mxu0 %v1210
    %v1247 = vpop.f32.mrf.mxu0
    %v1248 = vadd.f32 %v1235, %v1247
    %v1249 = vpop.f32.mrf.mxu0
    %1250 = vdwg.mxu0
    %v1251 = vmax.f32 %v1248, 0.0
    %v1252 = vpack.c.bf16 %v1251, %v1251
    %s1253 = scalar_lea.vmem %s3, 320
    %v1254 = vld [vmem:[%s1253] sm:$0xf]
    %v1255 = vld [vmem:[%s1253 + $0x4] sm:$0xf]
    %v1256 = vld [vmem:[%s1253 + $0x8] sm:$0xf]
    %v1257 = vld [vmem:[%s1253 + $0xc] sm:$0xf]
    %v1258 = vld [vmem:[%s1253 + $0x10] sm:$0xf]
    %v1259 = vld [vmem:[%s1253 + $0x14] sm:$0xf]
    %v1260 = vld [vmem:[%s1253 + $0x18] sm:$0xf]
    %v1261 = vld [vmem:[%s1253 + $0x1c] sm:$0xf]
    %v1270 = vunpack.c.l.b16 %v1254
    %v1271 = vunpack.c.l.b16 %v1255
    %v1272 = vunpack.c.l.b16 %v1256
    %v1273 = vunpack.c.l.b16 %v1257
    %v1274 = vunpack.c.l.b16 %v1258
    %v1275 = vunpack.c.l.b16 %v1259
    %v1276 = vunpack.c.l.b16 %v1260
    %v1277 = vunpack.c.l.b16 %v1261
    %v1278 = vpack.c.b16 %v1271, %v1270
    %v1279 = vpack.c.b16 %v1273, %v1272
    %v1280 = vpack.c.b16 %v1275, %v1274
    %v1281 = vpack.c.b16 %v1277, %v1276
    %v1287 = vsel %vm265, %v1252, 0
    %1289 = vmatpush.bf16.msra.mxu0 0
    %1290 = vmatpush.bf16.msra.mxu0 0
    %1291 = vmatpush.bf16.msra.mxu0 0
    %1292 = vmatpush.bf16.msra.mxu0 0
    %1293 = vmatpush.bf16.msra.mxu0 %v1281
    %1294 = vmatpush.bf16.msra.mxu0 %v1280
    %1295 = vmatpush.bf16.msra.mxu0 %v1279
    %1296 = vmatpush.bf16.msra.mxu0 %v1278
    %1297 = vmatmul.bf16.gmra.mxu0 %v1287
    %v1298 = vpop.f32.mrf.mxu0
    %v1299 = vadd.f32 0.0, %v1298
    %v1300 = vpop.f32.mrf.mxu0
    %1301 = vdwg.mxu0
    %v1302 = vadd.f32 %v1200, %v1299
    %s1303 = scalar_lea.vmem %s0, 33
    %v1304 = vld [vmem:[%s1303] sm:$0x7]
    %1306 = vst [vmem:[#allocation1] ss:$9 sm:$0xff] %v1304
    %v1307 = vld [vmem:[#allocation1] sm:$0xff]
    %v1308 = vld [vmem:[#allocation1 + $0x9] sm:$0xff]
    %v1309 = vld [vmem:[#allocation1 + $0x12] sm:$0xff]
    %v1312 = vsel %vm189, %v1309, 0
    %1314 = vmatpush.bf16.msra.mxu0 %v160
    %1315 = vmatpush.bf16.msra.mxu0 %v159
    %1316 = vmatpush.bf16.msra.mxu0 %v158
    %1317 = vmatpush.bf16.msra.mxu0 %v157
    %1318 = vmatpush.bf16.msra.mxu0 %v156
    %1319 = vmatpush.bf16.msra.mxu0 %v155
    %1320 = vmatpush.bf16.msra.mxu0 %v154
    %1321 = vmatpush.bf16.msra.mxu0 %v153
    %1322 = vmatmul.bf16.gmra.mxu0 %v1307
    %v1323 = vpop.f32.mrf.mxu0
    %v1324 = vadd.f32 %v72, %v1323
    %v1325 = vpop.f32.mrf.mxu0
    %1326 = vdwg.mxu0
    %1327 = vmatpush.bf16.msra.mxu0 %v168
    %1328 = vmatpush.bf16.msra.mxu0 %v167
    %1329 = vmatpush.bf16.msra.mxu0 %v166
    %1330 = vmatpush.bf16.msra.mxu0 %v165
    %1331 = vmatpush.bf16.msra.mxu0 %v164
    %1332 = vmatpush.bf16.msra.mxu0 %v163
    %1333 = vmatpush.bf16.msra.mxu0 %v162
    %1334 = vmatpush.bf16.msra.mxu0 %v161
    %1335 = vmatmul.bf16.gmra.mxu0 %v1308
    %v1336 = vpop.f32.mrf.mxu0
    %v1337 = vadd.f32 %v1324, %v1336
    %v1338 = vpop.f32.mrf.mxu0
    %1339 = vdwg.mxu0
    %1340 = vmatpush.bf16.msra.mxu0 0
    %1341 = vmatpush.bf16.msra.mxu0 0
    %1342 = vmatpush.bf16.msra.mxu0 0
    %1343 = vmatpush.bf16.msra.mxu0 0
    %1344 = vmatpush.bf16.msra.mxu0 0
    %1345 = vmatpush.bf16.msra.mxu0 0
    %1346 = vmatpush.bf16.msra.mxu0 %v170
    %1347 = vmatpush.bf16.msra.mxu0 %v169
    %1348 = vmatmul.bf16.gmra.mxu0 %v1312
    %v1349 = vpop.f32.mrf.mxu0
    %v1350 = vadd.f32 %v1337, %v1349
    %v1351 = vpop.f32.mrf.mxu0
    %1352 = vdwg.mxu0
    %v1353 = vmax.f32 %v1350, 0.0
    %v1354 = vpack.c.bf16 %v1353, %v1353
    %s1355 = scalar_lea.vmem %s3, 352
    %v1356 = vld [vmem:[%s1355] sm:$0xf]
    %v1357 = vld [vmem:[%s1355 + $0x4] sm:$0xf]
    %v1358 = vld [vmem:[%s1355 + $0x8] sm:$0xf]
    %v1359 = vld [vmem:[%s1355 + $0xc] sm:$0xf]
    %v1360 = vld [vmem:[%s1355 + $0x10] sm:$0xf]
    %v1361 = vld [vmem:[%s1355 + $0x14] sm:$0xf]
    %v1362 = vld [vmem:[%s1355 + $0x18] sm:$0xf]
    %v1363 = vld [vmem:[%s1355 + $0x1c] sm:$0xf]
    %v1372 = vunpack.c.l.b16 %v1356
    %v1373 = vunpack.c.l.b16 %v1357
    %v1374 = vunpack.c.l.b16 %v1358
    %v1375 = vunpack.c.l.b16 %v1359
    %v1376 = vunpack.c.l.b16 %v1360
    %v1377 = vunpack.c.l.b16 %v1361
    %v1378 = vunpack.c.l.b16 %v1362
    %v1379 = vunpack.c.l.b16 %v1363
    %v1380 = vpack.c.b16 %v1373, %v1372
    %v1381 = vpack.c.b16 %v1375, %v1374
    %v1382 = vpack.c.b16 %v1377, %v1376
    %v1383 = vpack.c.b16 %v1379, %v1378
    %v1389 = vsel %vm265, %v1354, 0
    %1391 = vmatpush.bf16.msra.mxu0 0
    %1392 = vmatpush.bf16.msra.mxu0 0
    %1393 = vmatpush.bf16.msra.mxu0 0
    %1394 = vmatpush.bf16.msra.mxu0 0
    %1395 = vmatpush.bf16.msra.mxu0 %v1383
    %1396 = vmatpush.bf16.msra.mxu0 %v1382
    %1397 = vmatpush.bf16.msra.mxu0 %v1381
    %1398 = vmatpush.bf16.msra.mxu0 %v1380
    %1399 = vmatmul.bf16.gmra.mxu0 %v1389
    %v1400 = vpop.f32.mrf.mxu0
    %v1401 = vadd.f32 0.0, %v1400
    %v1402 = vpop.f32.mrf.mxu0
    %1403 = vdwg.mxu0
    %v1404 = vadd.f32 %v1302, %v1401
    %s1405 = scalar_lea.vmem %s0, 36
    %v1406 = vld [vmem:[%s1405] sm:$0x7]
    %1408 = vst [vmem:[#allocation1] ss:$9 sm:$0xff] %v1406
    %v1409 = vld [vmem:[#allocation1] sm:$0xff]
    %v1410 = vld [vmem:[#allocation1 + $0x9] sm:$0xff]
    %v1411 = vld [vmem:[#allocation1 + $0x12] sm:$0xff]
    %v1414 = vsel %vm189, %v1411, 0
    %1416 = vmatpush.bf16.msra.mxu0 %v160
    %1417 = vmatpush.bf16.msra.mxu0 %v159
    %1418 = vmatpush.bf16.msra.mxu0 %v158
    %1419 = vmatpush.bf16.msra.mxu0 %v157
    %1420 = vmatpush.bf16.msra.mxu0 %v156
    %1421 = vmatpush.bf16.msra.mxu0 %v155
    %1422 = vmatpush.bf16.msra.mxu0 %v154
    %1423 = vmatpush.bf16.msra.mxu0 %v153
    %1424 = vmatmul.bf16.gmra.mxu0 %v1409
    %v1425 = vpop.f32.mrf.mxu0
    %v1426 = vadd.f32 %v72, %v1425
    %v1427 = vpop.f32.mrf.mxu0
    %1428 = vdwg.mxu0
    %1429 = vmatpush.bf16.msra.mxu0 %v168
    %1430 = vmatpush.bf16.msra.mxu0 %v167
    %1431 = vmatpush.bf16.msra.mxu0 %v166
    %1432 = vmatpush.bf16.msra.mxu0 %v165
    %1433 = vmatpush.bf16.msra.mxu0 %v164
    %1434 = vmatpush.bf16.msra.mxu0 %v163
    %1435 = vmatpush.bf16.msra.mxu0 %v162
    %1436 = vmatpush.bf16.msra.mxu0 %v161
    %1437 = vmatmul.bf16.gmra.mxu0 %v1410
    %v1438 = vpop.f32.mrf.mxu0
    %v1439 = vadd.f32 %v1426, %v1438
    %v1440 = vpop.f32.mrf.mxu0
    %1441 = vdwg.mxu0
    %1442 = vmatpush.bf16.msra.mxu0 0
    %1443 = vmatpush.bf16.msra.mxu0 0
    %1444 = vmatpush.bf16.msra.mxu0 0
    %1445 = vmatpush.bf16.msra.mxu0 0
    %1446 = vmatpush.bf16.msra.mxu0 0
    %1447 = vmatpush.bf16.msra.mxu0 0
    %1448 = vmatpush.bf16.msra.mxu0 %v170
    %1449 = vmatpush.bf16.msra.mxu0 %v169
    %1450 = vmatmul.bf16.gmra.mxu0 %v1414
    %v1451 = vpop.f32.mrf.mxu0
    %v1452 = vadd.f32 %v1439, %v1451
    %v1453 = vpop.f32.mrf.mxu0
    %1454 = vdwg.mxu0
    %v1455 = vmax.f32 %v1452, 0.0
    %v1456 = vpack.c.bf16 %v1455, %v1455
    %s1457 = scalar_lea.vmem %s3, 384
    %v1458 = vld [vmem:[%s1457] sm:$0xf]
    %v1459 = vld [vmem:[%s1457 + $0x4] sm:$0xf]
    %v1460 = vld [vmem:[%s1457 + $0x8] sm:$0xf]
    %v1461 = vld [vmem:[%s1457 + $0xc] sm:$0xf]
    %v1462 = vld [vmem:[%s1457 + $0x10] sm:$0xf]
    %v1463 = vld [vmem:[%s1457 + $0x14] sm:$0xf]
    %v1464 = vld [vmem:[%s1457 + $0x18] sm:$0xf]
    %v1465 = vld [vmem:[%s1457 + $0x1c] sm:$0xf]
    %v1474 = vunpack.c.l.b16 %v1458
    %v1475 = vunpack.c.l.b16 %v1459
    %v1476 = vunpack.c.l.b16 %v1460
    %v1477 = vunpack.c.l.b16 %v1461
    %v1478 = vunpack.c.l.b16 %v1462
    %v1479 = vunpack.c.l.b16 %v1463
    %v1480 = vunpack.c.l.b16 %v1464
    %v1481 = vunpack.c.l.b16 %v1465
    %v1482 = vpack.c.b16 %v1475, %v1474
    %v1483 = vpack.c.b16 %v1477, %v1476
    %v1484 = vpack.c.b16 %v1479, %v1478
    %v1485 = vpack.c.b16 %v1481, %v1480
    %v1491 = vsel %vm265, %v1456, 0
    %1493 = vmatpush.bf16.msra.mxu0 0
    %1494 = vmatpush.bf16.msra.mxu0 0
    %1495 = vmatpush.bf16.msra.mxu0 0
    %1496 = vmatpush.bf16.msra.mxu0 0
    %1497 = vmatpush.bf16.msra.mxu0 %v1485
    %1498 = vmatpush.bf16.msra.mxu0 %v1484
    %1499 = vmatpush.bf16.msra.mxu0 %v1483
    %1500 = vmatpush.bf16.msra.mxu0 %v1482
    %1501 = vmatmul.bf16.gmra.mxu0 %v1491
    %v1502 = vpop.f32.mrf.mxu0
    %v1503 = vadd.f32 0.0, %v1502
    %v1504 = vpop.f32.mrf.mxu0
    %1505 = vdwg.mxu0
    %v1506 = vadd.f32 %v1404, %v1503
    %s1507 = scalar_lea.vmem %s0, 39
    %v1508 = vld [vmem:[%s1507] sm:$0x7]
    %1510 = vst [vmem:[#allocation1] ss:$9 sm:$0xff] %v1508
    %v1511 = vld [vmem:[#allocation1] sm:$0xff]
    %v1512 = vld [vmem:[#allocation1 + $0x9] sm:$0xff]
    %v1513 = vld [vmem:[#allocation1 + $0x12] sm:$0xff]
    %v1516 = vsel %vm189, %v1513, 0
    %1518 = vmatpush.bf16.msra.mxu0 %v160
    %1519 = vmatpush.bf16.msra.mxu0 %v159
    %1520 = vmatpush.bf16.msra.mxu0 %v158
    %1521 = vmatpush.bf16.msra.mxu0 %v157
    %1522 = vmatpush.bf16.msra.mxu0 %v156
    %1523 = vmatpush.bf16.msra.mxu0 %v155
    %1524 = vmatpush.bf16.msra.mxu0 %v154
    %1525 = vmatpush.bf16.msra.mxu0 %v153
    %1526 = vmatmul.bf16.gmra.mxu0 %v1511
    %v1527 = vpop.f32.mrf.mxu0
    %v1528 = vadd.f32 %v72, %v1527
    %v1529 = vpop.f32.mrf.mxu0
    %1530 = vdwg.mxu0
    %1531 = vmatpush.bf16.msra.mxu0 %v168
    %1532 = vmatpush.bf16.msra.mxu0 %v167
    %1533 = vmatpush.bf16.msra.mxu0 %v166
    %1534 = vmatpush.bf16.msra.mxu0 %v165
    %1535 = vmatpush.bf16.msra.mxu0 %v164
    %1536 = vmatpush.bf16.msra.mxu0 %v163
    %1537 = vmatpush.bf16.msra.mxu0 %v162
    %1538 = vmatpush.bf16.msra.mxu0 %v161
    %1539 = vmatmul.bf16.gmra.mxu0 %v1512
    %v1540 = vpop.f32.mrf.mxu0
    %v1541 = vadd.f32 %v1528, %v1540
    %v1542 = vpop.f32.mrf.mxu0
    %1543 = vdwg.mxu0
    %1544 = vmatpush.bf16.msra.mxu0 0
    %1545 = vmatpush.bf16.msra.mxu0 0
    %1546 = vmatpush.bf16.msra.mxu0 0
    %1547 = vmatpush.bf16.msra.mxu0 0
    %1548 = vmatpush.bf16.msra.mxu0 0
    %1549 = vmatpush.bf16.msra.mxu0 0
    %1550 = vmatpush.bf16.msra.mxu0 %v170
    %1551 = vmatpush.bf16.msra.mxu0 %v169
    %1552 = vmatmul.bf16.gmra.mxu0 %v1516
    %v1553 = vpop.f32.mrf.mxu0
    %v1554 = vadd.f32 %v1541, %v1553
    %v1555 = vpop.f32.mrf.mxu0
    %1556 = vdwg.mxu0
    %v1557 = vmax.f32 %v1554, 0.0
    %v1558 = vpack.c.bf16 %v1557, %v1557
    %s1559 = scalar_lea.vmem %s3, 416
    %v1560 = vld [vmem:[%s1559] sm:$0xf]
    %v1561 = vld [vmem:[%s1559 + $0x4] sm:$0xf]
    %v1562 = vld [vmem:[%s1559 + $0x8] sm:$0xf]
    %v1563 = vld [vmem:[%s1559 + $0xc] sm:$0xf]
    %v1564 = vld [vmem:[%s1559 + $0x10] sm:$0xf]
    %v1565 = vld [vmem:[%s1559 + $0x14] sm:$0xf]
    %v1566 = vld [vmem:[%s1559 + $0x18] sm:$0xf]
    %v1567 = vld [vmem:[%s1559 + $0x1c] sm:$0xf]
    %v1576 = vunpack.c.l.b16 %v1560
    %v1577 = vunpack.c.l.b16 %v1561
    %v1578 = vunpack.c.l.b16 %v1562
    %v1579 = vunpack.c.l.b16 %v1563
    %v1580 = vunpack.c.l.b16 %v1564
    %v1581 = vunpack.c.l.b16 %v1565
    %v1582 = vunpack.c.l.b16 %v1566
    %v1583 = vunpack.c.l.b16 %v1567
    %v1584 = vpack.c.b16 %v1577, %v1576
    %v1585 = vpack.c.b16 %v1579, %v1578
    %v1586 = vpack.c.b16 %v1581, %v1580
    %v1587 = vpack.c.b16 %v1583, %v1582
    %v1593 = vsel %vm265, %v1558, 0
    %1595 = vmatpush.bf16.msra.mxu0 0
    %1596 = vmatpush.bf16.msra.mxu0 0
    %1597 = vmatpush.bf16.msra.mxu0 0
    %1598 = vmatpush.bf16.msra.mxu0 0
    %1599 = vmatpush.bf16.msra.mxu0 %v1587
    %1600 = vmatpush.bf16.msra.mxu0 %v1586
    %1601 = vmatpush.bf16.msra.mxu0 %v1585
    %1602 = vmatpush.bf16.msra.mxu0 %v1584
    %1603 = vmatmul.bf16.gmra.mxu0 %v1593
    %v1604 = vpop.f32.mrf.mxu0
    %v1605 = vadd.f32 0.0, %v1604
    %v1606 = vpop.f32.mrf.mxu0
    %1607 = vdwg.mxu0
    %v1608 = vadd.f32 %v1506, %v1605
    %s1609 = scalar_lea.vmem %s0, 42
    %v1610 = vld [vmem:[%s1609] sm:$0x7]
    %1612 = vst [vmem:[#allocation1] ss:$9 sm:$0xff] %v1610
    %v1613 = vld [vmem:[#allocation1] sm:$0xff]
    %v1614 = vld [vmem:[#allocation1 + $0x9] sm:$0xff]
    %v1615 = vld [vmem:[#allocation1 + $0x12] sm:$0xff]
    %v1618 = vsel %vm189, %v1615, 0
    %1620 = vmatpush.bf16.msra.mxu0 %v160
    %1621 = vmatpush.bf16.msra.mxu0 %v159
    %1622 = vmatpush.bf16.msra.mxu0 %v158
    %1623 = vmatpush.bf16.msra.mxu0 %v157
    %1624 = vmatpush.bf16.msra.mxu0 %v156
    %1625 = vmatpush.bf16.msra.mxu0 %v155
    %1626 = vmatpush.bf16.msra.mxu0 %v154
    %1627 = vmatpush.bf16.msra.mxu0 %v153
    %1628 = vmatmul.bf16.gmra.mxu0 %v1613
    %v1629 = vpop.f32.mrf.mxu0
    %v1630 = vadd.f32 %v72, %v1629
    %v1631 = vpop.f32.mrf.mxu0
    %1632 = vdwg.mxu0
    %1633 = vmatpush.bf16.msra.mxu0 %v168
    %1634 = vmatpush.bf16.msra.mxu0 %v167
    %1635 = vmatpush.bf16.msra.mxu0 %v166
    %1636 = vmatpush.bf16.msra.mxu0 %v165
    %1637 = vmatpush.bf16.msra.mxu0 %v164
    %1638 = vmatpush.bf16.msra.mxu0 %v163
    %1639 = vmatpush.bf16.msra.mxu0 %v162
    %1640 = vmatpush.bf16.msra.mxu0 %v161
    %1641 = vmatmul.bf16.gmra.mxu0 %v1614
    %v1642 = vpop.f32.mrf.mxu0
    %v1643 = vadd.f32 %v1630, %v1642
    %v1644 = vpop.f32.mrf.mxu0
    %1645 = vdwg.mxu0
    %1646 = vmatpush.bf16.msra.mxu0 0
    %1647 = vmatpush.bf16.msra.mxu0 0
    %1648 = vmatpush.bf16.msra.mxu0 0
    %1649 = vmatpush.bf16.msra.mxu0 0
    %1650 = vmatpush.bf16.msra.mxu0 0
    %1651 = vmatpush.bf16.msra.mxu0 0
    %1652 = vmatpush.bf16.msra.mxu0 %v170
    %1653 = vmatpush.bf16.msra.mxu0 %v169
    %1654 = vmatmul.bf16.gmra.mxu0 %v1618
    %v1655 = vpop.f32.mrf.mxu0
    %v1656 = vadd.f32 %v1643, %v1655
    %v1657 = vpop.f32.mrf.mxu0
    %1658 = vdwg.mxu0
    %v1659 = vmax.f32 %v1656, 0.0
    %v1660 = vpack.c.bf16 %v1659, %v1659
    %s1661 = scalar_lea.vmem %s3, 448
    %v1662 = vld [vmem:[%s1661] sm:$0xf]
    %v1663 = vld [vmem:[%s1661 + $0x4] sm:$0xf]
    %v1664 = vld [vmem:[%s1661 + $0x8] sm:$0xf]
    %v1665 = vld [vmem:[%s1661 + $0xc] sm:$0xf]
    %v1666 = vld [vmem:[%s1661 + $0x10] sm:$0xf]
    %v1667 = vld [vmem:[%s1661 + $0x14] sm:$0xf]
    %v1668 = vld [vmem:[%s1661 + $0x18] sm:$0xf]
    %v1669 = vld [vmem:[%s1661 + $0x1c] sm:$0xf]
    %v1678 = vunpack.c.l.b16 %v1662
    %v1679 = vunpack.c.l.b16 %v1663
    %v1680 = vunpack.c.l.b16 %v1664
    %v1681 = vunpack.c.l.b16 %v1665
    %v1682 = vunpack.c.l.b16 %v1666
    %v1683 = vunpack.c.l.b16 %v1667
    %v1684 = vunpack.c.l.b16 %v1668
    %v1685 = vunpack.c.l.b16 %v1669
    %v1686 = vpack.c.b16 %v1679, %v1678
    %v1687 = vpack.c.b16 %v1681, %v1680
    %v1688 = vpack.c.b16 %v1683, %v1682
    %v1689 = vpack.c.b16 %v1685, %v1684
    %v1695 = vsel %vm265, %v1660, 0
    %1697 = vmatpush.bf16.msra.mxu0 0
    %1698 = vmatpush.bf16.msra.mxu0 0
    %1699 = vmatpush.bf16.msra.mxu0 0
    %1700 = vmatpush.bf16.msra.mxu0 0
    %1701 = vmatpush.bf16.msra.mxu0 %v1689
    %1702 = vmatpush.bf16.msra.mxu0 %v1688
    %1703 = vmatpush.bf16.msra.mxu0 %v1687
    %1704 = vmatpush.bf16.msra.mxu0 %v1686
    %1705 = vmatmul.bf16.gmra.mxu0 %v1695
    %v1706 = vpop.f32.mrf.mxu0
    %v1707 = vadd.f32 0.0, %v1706
    %v1708 = vpop.f32.mrf.mxu0
    %1709 = vdwg.mxu0
    %v1710 = vadd.f32 %v1608, %v1707
    %s1711 = scalar_lea.vmem %s0, 45
    %v1712 = vld [vmem:[%s1711] sm:$0x7]
    %1714 = vst [vmem:[#allocation1] ss:$9 sm:$0xff] %v1712
    %v1715 = vld [vmem:[#allocation1] sm:$0xff]
    %v1716 = vld [vmem:[#allocation1 + $0x9] sm:$0xff]
    %v1717 = vld [vmem:[#allocation1 + $0x12] sm:$0xff]
    %v1720 = vsel %vm189, %v1717, 0
    %1722 = vmatpush.bf16.msra.mxu0 %v160
    %1723 = vmatpush.bf16.msra.mxu0 %v159
    %1724 = vmatpush.bf16.msra.mxu0 %v158
    %1725 = vmatpush.bf16.msra.mxu0 %v157
    %1726 = vmatpush.bf16.msra.mxu0 %v156
    %1727 = vmatpush.bf16.msra.mxu0 %v155
    %1728 = vmatpush.bf16.msra.mxu0 %v154
    %1729 = vmatpush.bf16.msra.mxu0 %v153
    %1730 = vmatmul.bf16.gmra.mxu0 %v1715
    %v1731 = vpop.f32.mrf.mxu0
    %v1732 = vadd.f32 %v72, %v1731
    %v1733 = vpop.f32.mrf.mxu0
    %1734 = vdwg.mxu0
    %1735 = vmatpush.bf16.msra.mxu0 %v168
    %1736 = vmatpush.bf16.msra.mxu0 %v167
    %1737 = vmatpush.bf16.msra.mxu0 %v166
    %1738 = vmatpush.bf16.msra.mxu0 %v165
    %1739 = vmatpush.bf16.msra.mxu0 %v164
    %1740 = vmatpush.bf16.msra.mxu0 %v163
    %1741 = vmatpush.bf16.msra.mxu0 %v162
    %1742 = vmatpush.bf16.msra.mxu0 %v161
    %1743 = vmatmul.bf16.gmra.mxu0 %v1716
    %v1744 = vpop.f32.mrf.mxu0
    %v1745 = vadd.f32 %v1732, %v1744
    %v1746 = vpop.f32.mrf.mxu0
    %1747 = vdwg.mxu0
    %1748 = vmatpush.bf16.msra.mxu0 0
    %1749 = vmatpush.bf16.msra.mxu0 0
    %1750 = vmatpush.bf16.msra.mxu0 0
    %1751 = vmatpush.bf16.msra.mxu0 0
    %1752 = vmatpush.bf16.msra.mxu0 0
    %1753 = vmatpush.bf16.msra.mxu0 0
    %1754 = vmatpush.bf16.msra.mxu0 %v170
    %1755 = vmatpush.bf16.msra.mxu0 %v169
    %1756 = vmatmul.bf16.gmra.mxu0 %v1720
    %v1757 = vpop.f32.mrf.mxu0
    %v1758 = vadd.f32 %v1745, %v1757
    %v1759 = vpop.f32.mrf.mxu0
    %1760 = vdwg.mxu0
    %v1761 = vmax.f32 %v1758, 0.0
    %v1762 = vpack.c.bf16 %v1761, %v1761
    %s1763 = scalar_lea.vmem %s3, 480
    %v1764 = vld [vmem:[%s1763] sm:$0xf]
    %v1765 = vld [vmem:[%s1763 + $0x4] sm:$0xf]
    %v1766 = vld [vmem:[%s1763 + $0x8] sm:$0xf]
    %v1767 = vld [vmem:[%s1763 + $0xc] sm:$0xf]
    %v1768 = vld [vmem:[%s1763 + $0x10] sm:$0xf]
    %v1769 = vld [vmem:[%s1763 + $0x14] sm:$0xf]
    %v1770 = vld [vmem:[%s1763 + $0x18] sm:$0xf]
    %v1771 = vld [vmem:[%s1763 + $0x1c] sm:$0xf]
    %v1780 = vunpack.c.l.b16 %v1764
    %v1781 = vunpack.c.l.b16 %v1765
    %v1782 = vunpack.c.l.b16 %v1766
    %v1783 = vunpack.c.l.b16 %v1767
    %v1784 = vunpack.c.l.b16 %v1768
    %v1785 = vunpack.c.l.b16 %v1769
    %v1786 = vunpack.c.l.b16 %v1770
    %v1787 = vunpack.c.l.b16 %v1771
    %v1788 = vpack.c.b16 %v1781, %v1780
    %v1789 = vpack.c.b16 %v1783, %v1782
    %v1790 = vpack.c.b16 %v1785, %v1784
    %v1791 = vpack.c.b16 %v1787, %v1786
    %v1797 = vsel %vm265, %v1762, 0
    %1799 = vmatpush.bf16.msra.mxu0 0
    %1800 = vmatpush.bf16.msra.mxu0 0
    %1801 = vmatpush.bf16.msra.mxu0 0
    %1802 = vmatpush.bf16.msra.mxu0 0
    %1803 = vmatpush.bf16.msra.mxu0 %v1791
    %1804 = vmatpush.bf16.msra.mxu0 %v1790
    %1805 = vmatpush.bf16.msra.mxu0 %v1789
    %1806 = vmatpush.bf16.msra.mxu0 %v1788
    %1807 = vmatmul.bf16.gmra.mxu0 %v1797
    %v1808 = vpop.f32.mrf.mxu0
    %v1809 = vadd.f32 0.0, %v1808
    %v1810 = vpop.f32.mrf.mxu0
    %1811 = vdwg.mxu0
    %v1812 = vadd.f32 %v1710, %v1809
    %v1813 = vld [vmem:[%s5] sm:$0xff]
    %v1814 = vld [vmem:[%s5 + $0x8] sm:$0xff]
    %v1815 = vld [vmem:[%s5 + $0x10] sm:$0xff]
    %v1816 = vld [vmem:[%s5 + $0x18] sm:$0xff]
    %v1817 = vld [vmem:[%s5 + $0x20] sm:$0xff]
    %v1818 = vld [vmem:[%s5 + $0x28] sm:$0xff]
    %v1819 = vld [vmem:[%s5 + $0x30] sm:$0xff]
    %v1820 = vld [vmem:[%s5 + $0x38] sm:$0xff]
    %v1821 = vld [vmem:[%s5 + $0x40] sm:$0xff]
    %v1822 = vld [vmem:[%s5 + $0x48] sm:$0xff]
    %v1823 = vld [vmem:[%s5 + $0x50] sm:$0xff]
    %v1824 = vld [vmem:[%s5 + $0x58] sm:$0xff]
    %v1825 = vld [vmem:[%s5 + $0x60] sm:$0xff]
    %v1826 = vld [vmem:[%s5 + $0x68] sm:$0xff]
    %v1827 = vld [vmem:[%s5 + $0x70] sm:$0xff]
    %v1828 = vld [vmem:[%s5 + $0x78] sm:$0xff]
    %v1829 = vld [vmem:[%s6] sm:$0x1]
    %v1831 = vperm.slane %v1829, 0
    %1833 = vmatpush.msra.mxu0 %v1828
    %1834 = vmatpush.msra.mxu0 %v1827
    %1835 = vmatpush.msra.mxu0 %v1826
    %1836 = vmatpush.msra.mxu0 %v1825
    %1837 = vmatpush.msra.mxu0 %v1824
    %1838 = vmatpush.msra.mxu0 %v1823
    %1839 = vmatpush.msra.mxu0 %v1822
    %1840 = vmatpush.msra.mxu0 %v1821
    %1841 = vmatpush.msra.mxu0 %v1820
    %1842 = vmatpush.msra.mxu0 %v1819
    %1843 = vmatpush.msra.mxu0 %v1818
    %1844 = vmatpush.msra.mxu0 %v1817
    %1845 = vmatpush.msra.mxu0 %v1816
    %1846 = vmatpush.msra.mxu0 %v1815
    %1847 = vmatpush.msra.mxu0 %v1814
    %1848 = vmatpush.msra.mxu0 %v1813
    %1849 = vmatmul.f32.gmra.mxu0 %v1812
    %v1850 = vpop.f32.mrf.mxu0
    %v1851 = vadd.f32 %v1831, %v1850
    %1852 = vdwg.mxu0
    %vm1853 = vcmask 74752
    %1854 = vst.msk [vmem:[#allocation2] sm:$0x3] %vm1853, %v1851
    // Predicated region
    $region30: #{my_cnn_forward.5} parent=1 // pred_check
      _
    $region31: #{my_cnn_forward.5} parent=1 // pred_check_branch
      %1856 = sbr.rel (0) target = $region33
    $region32: #{my_cnn_forward.5} parent=1 // pred_region
      %1858 = vsyncadd [#allocation3], 0
      %s1860 = sshll.u32 [#allocation2], 4
      %s1861 = int_to_ptr.vmem [resolvable:$true] %s1860
      %s1862 = sshll.u32 %s7, 4
      %s1863 = int_to_ptr.hbm [resolvable:$true] %s1862
      %1865 = dma.vmem_to_hbm [thread:$0]  %s1861, 32, %s1863, [#allocation3]
    $region33: #{my_cnn_forward.5} parent=1 // pred_fallthru
      _
    // Predicated region
    $region34: #{my_cnn_forward.5} parent=1 // pred_check
      _
    $region35: #{my_cnn_forward.5} parent=1 // pred_check_branch
      %1867 = sbr.rel (0) target = $region37
    $region36: #{my_cnn_forward.5} parent=1 // pred_region
      %1869 = dma.done [#allocation3], 32
    $region37: #{my_cnn_forward.5} parent=1 // pred_fallthru
      _
    %1870 = vsyncpa [#allocation3], 1

</llo_original>
